<compile_context>
chip_gen: v6e
topology: v6e:2x2x1
jax: 0.10.0
libtpu: 0.0.40
codegen_flags: <defaults>
</compile_context>

<pallas_src>
import functools

import jax
import jax.numpy as jnp
from jax.experimental import pallas as pl
from jax.experimental.pallas import tpu as pltpu


# ----------------------------- fused Pallas kernel -------------------------- #

def _fused_kernel(nhead, num_layers,
                  x0_ref,
                  wqkv_ref, bqkv_ref, wo_ref, bo_ref,
                  g1_ref, be1_ref,
                  w1_ref, b1_ref, w2_ref, b2_ref,
                  g2_ref, be2_ref,
                  wc_all_ref, wc_last_ref, bc_ref,
                  out_ref,
                  x_vmem):
    """Grid step l = one post-norm TransformerEncoderLayer; classifier on last step."""
    l = pl.program_id(0)

    @pl.when(l == 0)
    def _():
        x_vmem[...] = x0_ref[...]

    x = x_vmem[...]                                  # (B, T, D) f32, VMEM-resident
    B, T, D = x.shape
    dh = D // nhead
    scale = 1.0 / (dh ** 0.5)

    # causal mask built in-kernel (additive, f32) -- no (T,T) HBM input
    row = jax.lax.broadcasted_iota(jnp.int32, (T, T), 0)
    col = jax.lax.broadcasted_iota(jnp.int32, (T, T), 1)
    mask = jnp.where(col > row, -1e30, 0.0).astype(jnp.float32)

    # ---- multi-head self-attention (bf16 MXU operands, f32 accumulation) ----
    xb = x.astype(jnp.bfloat16)
    qkv = jnp.einsum('btd,de->bte', xb, wqkv_ref[0],
                     preferred_element_type=jnp.float32) + bqkv_ref[0]     # (B,T,3D) f32
    q = qkv[:, :, 0 * D:1 * D]
    k = qkv[:, :, 1 * D:2 * D]
    v = qkv[:, :, 2 * D:3 * D]

    ctx_heads = []
    for h in range(nhead):                           # static; scores are tiny (T x T)
        qh = q[:, :, h * dh:(h + 1) * dh].astype(jnp.bfloat16)
        kh = k[:, :, h * dh:(h + 1) * dh].astype(jnp.bfloat16)
        vh = v[:, :, h * dh:(h + 1) * dh].astype(jnp.bfloat16)
        s = jnp.einsum('bqd,bkd->bqk', qh, kh,
                       preferred_element_type=jnp.float32) * scale + mask  # f32
        s = s - jnp.max(s, axis=-1, keepdims=True)
        p = jnp.exp(s)
        p = p * pl.reciprocal(jnp.sum(p, axis=-1, keepdims=True), approx=True)
        ctx_heads.append(jnp.einsum('bqk,bkd->bqd', p.astype(jnp.bfloat16), vh,
                                    preferred_element_type=jnp.float32))   # (B,T,dh)
    ctx = jnp.concatenate(ctx_heads, axis=-1)        # (B, T, D) f32

    attn = jnp.einsum('btd,de->bte', ctx.astype(jnp.bfloat16), wo_ref[0],
                      preferred_element_type=jnp.float32) + bo_ref[0]      # one full-Wo matmul

    # ---- residual + LayerNorm1 (post-norm, eps=1e-5), all f32 ----
    h1 = x + attn
    mu1 = jnp.mean(h1, axis=-1, keepdims=True)
    var1 = jnp.mean(jnp.square(h1 - mu1), axis=-1, keepdims=True)
    h1 = (h1 - mu1) * jax.lax.rsqrt(var1 + 1e-5) * g1_ref[0] + be1_ref[0]

    # ---- feed-forward (Linear -> ReLU -> Linear), bf16 MXU / f32 acc ----
    f = jnp.einsum('btd,df->btf', h1.astype(jnp.bfloat16), w1_ref[0],
                   preferred_element_type=jnp.float32) + b1_ref[0]
    f = jnp.maximum(f, 0.0)
    f = jnp.einsum('btf,fd->btd', f.astype(jnp.bfloat16), w2_ref[0],
                   preferred_element_type=jnp.float32) + b2_ref[0]

    # ---- residual + LayerNorm2 ----
    h2 = h1 + f
    mu2 = jnp.mean(h2, axis=-1, keepdims=True)
    var2 = jnp.mean(jnp.square(h2 - mu2), axis=-1, keepdims=True)
    y = (h2 - mu2) * jax.lax.rsqrt(var2 + 1e-5) * g2_ref[0] + be2_ref[0]

    x_vmem[...] = y                                  # carry activation to next layer

    # ---- classifier head fused into the last grid step ----
    @pl.when(l == num_layers - 1)
    def _():
        yb = y.astype(jnp.bfloat16)
        last = yb[:, T - 1:T, :]                     # (B,1,D) broadcasts over T
        logits = (jnp.einsum('btd,dl->btl', yb, wc_all_ref[...],
                             preferred_element_type=jnp.float32)
                  + jnp.einsum('btd,dl->btl', last, wc_last_ref[...],
                               preferred_element_type=jnp.float32)
                  + bc_ref[...])
        out_ref[...] = logits


# ------------------------------ JAX wrapper --------------------------------- #

def _per_layer_spec(*trail):
    n = len(trail)
    return pl.BlockSpec((1,) + trail, lambda l, n=n: (l,) + (0,) * n)


def _const_spec(*shape):
    n = len(shape)
    return pl.BlockSpec(shape, lambda l, n=n: (0,) * n)


@functools.partial(jax.jit, static_argnames=('nhead',))
def baseline_classifier_forward(token_ids, params, *, nhead):
    B, T = token_ids.shape
    # embedding gathers + positional add are plain-JAX glue (fused by XLA under jit)
    tok_emb = params['tok_table'][token_ids]                  # (B, T, D)
    pos_emb = params['pos_table'][:T][None, :, :]             # (1, T, D)
    x0 = (tok_emb + pos_emb).astype(jnp.float32)

    lp = params['layers']
    L, D, F = lp['w1'].shape                                  # (num_layers, d_model, dim_ff)
    NL = params['wc_all'].shape[1]

    def nbytes(a):
        return a.size * a.dtype.itemsize

    flops = int(L * (2 * B * T * D * 3 * D            # qkv proj
                     + 4 * B * T * T * D              # scores + PV (all heads)
                     + 2 * B * T * D * D              # out proj
                     + 4 * B * T * D * F)             # FFN
                + 4 * B * T * D * NL)                 # classifier
    transcendentals = int(L * B * nhead * T * T + 2 * L * B * T)
    bytes_accessed = int(sum(nbytes(a) for a in jax.tree_util.tree_leaves(lp))
                         + nbytes(params['wc_all']) + nbytes(params['wc_last'])
                         + nbytes(params['bc']) + nbytes(x0) + B * T * NL * 4)

    kernel = functools.partial(_fused_kernel, nhead, int(L))

    logits = pl.pallas_call(
        kernel,
        out_shape=jax.ShapeDtypeStruct((B, T, NL), jnp.float32),
        grid=(int(L),),
        in_specs=[
            _const_spec(B, T, D),                       # x0 (read once at l == 0)
            _per_layer_spec(D, 3 * D),                  # wqkv  (bf16)
            _per_layer_spec(1, 3 * D),                  # bqkv
            _per_layer_spec(D, D),                      # wo    (bf16)
            _per_layer_spec(1, D),                      # bo
            _per_layer_spec(1, D),                      # g1
            _per_layer_spec(1, D),                      # be1
            _per_layer_spec(D, F),                      # w1    (bf16)
            _per_layer_spec(1, F),                      # b1
            _per_layer_spec(F, D),                      # w2    (bf16)
            _per_layer_spec(1, D),                      # b2
            _per_layer_spec(1, D),                      # g2
            _per_layer_spec(1, D),                      # be2
            _const_spec(D, NL),                         # wc_all  (bf16)
            _const_spec(D, NL),                         # wc_last (bf16)
            _const_spec(1, NL),                         # bc
        ],
        out_specs=_const_spec(B, T, NL),                # resident; written on last step
        scratch_shapes=[pltpu.VMEM((B, T, D), jnp.float32)],
        compiler_params=pltpu.CompilerParams(
            dimension_semantics=("arbitrary",),         # layer axis is sequential
            vmem_limit_bytes=32 * 1024 * 1024,
        ),
        cost_estimate=pl.CostEstimate(
            flops=flops, transcendentals=transcendentals,
            bytes_accessed=bytes_accessed),
    )(x0,
      lp['wqkv'], lp['bqkv'], lp['wo'], lp['bo'],
      lp['g1'], lp['be1'], lp['w1'], lp['b1'], lp['w2'], lp['b2'],
      lp['g2'], lp['be2'],
      params['wc_all'], params['wc_last'], params['bc'])
    return logits


# ------------------------- deterministic param init ------------------------- #

def init_params(key, d_model, num_layers, nhead, max_seq_length,
                vocab_size, pad_token_id, num_labels, dim_ff):
    D, F, L, NL = d_model, dim_ff, num_layers, num_labels
    ks = iter(jax.random.split(key, 16))
    s = 0.02

    def nrm(shape, dtype=jnp.float32):
        return (s * jax.random.normal(next(ks), shape)).astype(dtype)

    tok_table = nrm((vocab_size, D)).at[pad_token_id].set(0.0)   # padding_idx row = 0
    pos_table = nrm((max_seq_length, D))

    # per-layer weights stacked on a leading (num_layers,) axis; matmul weights in bf16
    layers = dict(
        wqkv=nrm((L, D, 3 * D), jnp.bfloat16),
        bqkv=jnp.zeros((L, 1, 3 * D), jnp.float32),
        wo=nrm((L, D, D), jnp.bfloat16),
        bo=jnp.zeros((L, 1, D), jnp.float32),
        g1=jnp.ones((L, 1, D), jnp.float32),
        be1=jnp.zeros((L, 1, D), jnp.float32),
        w1=nrm((L, D, F), jnp.bfloat16),
        b1=jnp.zeros((L, 1, F), jnp.float32),
        w2=nrm((L, F, D), jnp.bfloat16),
        b2=jnp.zeros((L, 1, D), jnp.float32),
        g2=jnp.ones((L, 1, D), jnp.float32),
        be2=jnp.zeros((L, 1, D), jnp.float32),
    )

    # classifier Linear(2*d_model, num_labels) split into [all_hidden | last_hidden] halves
    wc = nrm((2 * D, NL))
    return dict(
        tok_table=tok_table, pos_table=pos_table, layers=layers,
        wc_all=wc[:D, :].astype(jnp.bfloat16),
        wc_last=wc[D:, :].astype(jnp.bfloat16),
        bc=jnp.zeros((1, NL), jnp.float32),
    )


# ---------------------------------- main ------------------------------------ #

if __name__ == "__main__":
    d_model, num_layers, nhead = 32, 2, 4
    max_seq_length, vocab_size, pad_token_id, num_labels = 8, 50, 0, 3
    dim_ff = 2048                      # nn.TransformerEncoderLayer default
    B, T = 2, 8

    root = jax.random.PRNGKey(0)
    k_tok, k_params = jax.random.split(root)

    params = init_params(k_params, d_model, num_layers, nhead,
                         max_seq_length, vocab_size, pad_token_id,
                         num_labels, dim_ff)
    token_ids = jax.random.randint(k_tok, (B, T), 0, vocab_size, dtype=jnp.int32)

    logits = baseline_classifier_forward(token_ids, params, nhead=nhead)
    logits = jax.block_until_ready(logits)
    assert logits.shape == (B, T, num_labels), logits.shape
    assert bool(jnp.all(jnp.isfinite(logits)))
    print("KERNEL_OK")
</pallas_src>

<mosaic_0001>
module attributes {stable_mosaic.version = 11 : i64} {
  func.func @_fused_kernel(%arg0: i32, %arg1: memref<2x8x32xf32, #tpu.memory_space<vmem>>, %arg2: memref<1x32x96xbf16, #tpu.memory_space<vmem>>, %arg3: memref<1x1x96xf32, #tpu.memory_space<vmem>>, %arg4: memref<1x32x32xbf16, #tpu.memory_space<vmem>>, %arg5: memref<1x1x32xf32, #tpu.memory_space<vmem>>, %arg6: memref<1x1x32xf32, #tpu.memory_space<vmem>>, %arg7: memref<1x1x32xf32, #tpu.memory_space<vmem>>, %arg8: memref<1x32x2048xbf16, #tpu.memory_space<vmem>>, %arg9: memref<1x1x2048xf32, #tpu.memory_space<vmem>>, %arg10: memref<1x2048x32xbf16, #tpu.memory_space<vmem>>, %arg11: memref<1x1x32xf32, #tpu.memory_space<vmem>>, %arg12: memref<1x1x32xf32, #tpu.memory_space<vmem>>, %arg13: memref<1x1x32xf32, #tpu.memory_space<vmem>>, %arg14: memref<32x3xbf16, #tpu.memory_space<vmem>>, %arg15: memref<32x3xbf16, #tpu.memory_space<vmem>>, %arg16: memref<1x3xf32, #tpu.memory_space<vmem>>, %arg17: memref<2x8x3xf32, #tpu.memory_space<vmem>>, %arg18: memref<2x8x32xf32, #tpu.memory_space<vmem>>) attributes {dimension_semantics = [#tpu.dimension_semantics<arbitrary>], iteration_bounds = array<i64: 2>, scalar_prefetch = 0 : i64, scratch_operands = 1 : i64, tpu.core_type = #tpu.core_type<tc>, window_params = [{pipeline_mode = #tpu.pipeline_mode<synchronous>, transform_indices = @transform_0, window_bounds = array<i64: 2, 8, 32>}, {transform_indices = @transform_1, window_bounds = array<i64: 1, 32, 96>}, {transform_indices = @transform_2, window_bounds = array<i64: 1, 1, 96>}, {transform_indices = @transform_3, window_bounds = array<i64: 1, 32, 32>}, {transform_indices = @transform_4, window_bounds = array<i64: 1, 1, 32>}, {transform_indices = @transform_5, window_bounds = array<i64: 1, 1, 32>}, {transform_indices = @transform_6, window_bounds = array<i64: 1, 1, 32>}, {transform_indices = @transform_7, window_bounds = array<i64: 1, 32, 2048>}, {transform_indices = @transform_8, window_bounds = array<i64: 1, 1, 2048>}, {transform_indices = @transform_9, window_bounds = array<i64: 1, 2048, 32>}, {transform_indices = @transform_10, window_bounds = array<i64: 1, 1, 32>}, {transform_indices = @transform_11, window_bounds = array<i64: 1, 1, 32>}, {transform_indices = @transform_12, window_bounds = array<i64: 1, 1, 32>}, {pipeline_mode = #tpu.pipeline_mode<synchronous>, transform_indices = @transform_13, window_bounds = array<i64: 32, 3>}, {pipeline_mode = #tpu.pipeline_mode<synchronous>, transform_indices = @transform_14, window_bounds = array<i64: 32, 3>}, {pipeline_mode = #tpu.pipeline_mode<synchronous>, transform_indices = @transform_15, window_bounds = array<i64: 1, 3>}, {pipeline_mode = #tpu.pipeline_mode<synchronous>, transform_indices = @transform_16, window_bounds = array<i64: 2, 8, 3>}]} {
    %c0_i32 = arith.constant 0 : i32
    %0 = arith.cmpi eq, %arg0, %c0_i32 : i32
    %1 = arith.extui %0 : i1 to i32
    %c0_i32_0 = arith.constant 0 : i32
    %2 = arith.cmpi ne, %1, %c0_i32_0 : i32
    scf.if %2 {
      %c0_79 = arith.constant 0 : index
      %c0_80 = arith.constant 0 : index
      %c0_81 = arith.constant 0 : index
      %210 = vector.load %arg1[%c0_79, %c0_80, %c0_81] : memref<2x8x32xf32, #tpu.memory_space<vmem>>, vector<2x8x32xf32>
      %c0_82 = arith.constant 0 : index
      %c0_83 = arith.constant 0 : index
      %c0_84 = arith.constant 0 : index
      %211 = vector.load %arg18[%c0_82, %c0_83, %c0_84] : memref<2x8x32xf32, #tpu.memory_space<vmem>>, vector<2x8x32xf32>
      tpu.vector_store %arg18[%c0_82, %c0_83, %c0_84], %210 {strides = array<i32>} : memref<2x8x32xf32, #tpu.memory_space<vmem>>, vector<2x8x32xf32>,
    } else {
    }
    %c0 = arith.constant 0 : index
    %c0_1 = arith.constant 0 : index
    %c0_2 = arith.constant 0 : index
    %3 = vector.load %arg18[%c0, %c0_1, %c0_2] : memref<2x8x32xf32, #tpu.memory_space<vmem>>, vector<2x8x32xf32>
    %4 = tpu.iota {dimensions = array<i32: 0>} : vector<8x8xi32>
    %5 = tpu.iota {dimensions = array<i32: 1>} : vector<8x8xi32>
    %6 = arith.cmpi sgt, %5, %4 : vector<8x8xi32>
    %cst = arith.constant -1.000000e+30 : f32
    %cst_3 = arith.constant 0.000000e+00 : f32
    %7 = vector.broadcast %cst : f32 to vector<8x8xf32>
    %8 = vector.broadcast %cst_3 : f32 to vector<8x8xf32>
    %9 = arith.select %6, %7, %8 : vector<8x8xi1>, vector<8x8xf32>
    %10 = arith.truncf %3 : vector<2x8x32xf32> to vector<2x8x32xbf16>
    %c0_4 = arith.constant 0 : index
    %c0_5 = arith.constant 0 : index
    %c0_6 = arith.constant 0 : index
    %11 = vector.load %arg2[%c0_4, %c0_5, %c0_6] : memref<1x32x96xbf16, #tpu.memory_space<vmem>>, vector<1x32x96xbf16>
    %12 = vector.shape_cast %11 : vector<1x32x96xbf16> to vector<32x96xbf16>
    "tpu.trace_start"() <{level = 10 : i32, message = "btd,de->bte"}> : () -> ()
    %cst_7 = arith.constant dense<0.000000e+00> : vector<2x8x96xf32>
    %13 = tpu.matmul %10, %12, %cst_7 {dimension_numbers = #tpu.dot_dimension_numbers<[2], [0], [0, 1], [1], [0, 0, 0, 1, 1, 1], [], []>} : vector<2x8x32xbf16>, vector<32x96xbf16>, vector<2x8x96xf32> -> vector<2x8x96xf32>
    "tpu.trace_stop"() : () -> ()
    %c0_8 = arith.constant 0 : index
    %c0_9 = arith.constant 0 : index
    %c0_10 = arith.constant 0 : index
    %14 = vector.load %arg3[%c0_8, %c0_9, %c0_10] : memref<1x1x96xf32, #tpu.memory_space<vmem>>, vector<1x1x96xf32>
    %15 = vector.shape_cast %14 : vector<1x1x96xf32> to vector<1x96xf32>
    %16 = vector.shape_cast %15 : vector<1x96xf32> to vector<1x1x96xf32>
    %17 = vector.broadcast %16 : vector<1x1x96xf32> to vector<2x8x96xf32>
    %18 = arith.addf %13, %17 : vector<2x8x96xf32>
    %19 = vector.extract_strided_slice %18 {offsets = [0, 0, 0], sizes = [2, 8, 32], strides = [1, 1, 1]} : vector<2x8x96xf32> to vector<2x8x32xf32>
    %20 = vector.extract_strided_slice %18 {offsets = [0, 0, 32], sizes = [2, 8, 32], strides = [1, 1, 1]} : vector<2x8x96xf32> to vector<2x8x32xf32>
    %21 = vector.extract_strided_slice %18 {offsets = [0, 0, 64], sizes = [2, 8, 32], strides = [1, 1, 1]} : vector<2x8x96xf32> to vector<2x8x32xf32>
    %22 = vector.extract_strided_slice %19 {offsets = [0, 0, 0], sizes = [2, 8, 8], strides = [1, 1, 1]} : vector<2x8x32xf32> to vector<2x8x8xf32>
    %23 = arith.truncf %22 : vector<2x8x8xf32> to vector<2x8x8xbf16>
    %24 = vector.extract_strided_slice %20 {offsets = [0, 0, 0], sizes = [2, 8, 8], strides = [1, 1, 1]} : vector<2x8x32xf32> to vector<2x8x8xf32>
    %25 = arith.truncf %24 : vector<2x8x8xf32> to vector<2x8x8xbf16>
    %26 = vector.extract_strided_slice %21 {offsets = [0, 0, 0], sizes = [2, 8, 8], strides = [1, 1, 1]} : vector<2x8x32xf32> to vector<2x8x8xf32>
    %27 = arith.truncf %26 : vector<2x8x8xf32> to vector<2x8x8xbf16>
    "tpu.trace_start"() <{level = 10 : i32, message = "bqd,bkd->bqk"}> : () -> ()
    %cst_11 = arith.constant dense<0.000000e+00> : vector<2x8x8xf32>
    %28 = tpu.matmul %23, %25, %cst_11 {dimension_numbers = #tpu.dot_dimension_numbers<[2], [2], [1], [1], [0, 0, 0, 1, 1, 1], [0], [0]>} : vector<2x8x8xbf16>, vector<2x8x8xbf16>, vector<2x8x8xf32> -> vector<2x8x8xf32>
    "tpu.trace_stop"() : () -> ()
    %cst_12 = arith.constant 0.353553385 : f32
    %29 = vector.broadcast %cst_12 : f32 to vector<2x8x8xf32>
    %30 = arith.mulf %28, %29 : vector<2x8x8xf32>
    %31 = vector.shape_cast %9 : vector<8x8xf32> to vector<1x8x8xf32>
    %32 = vector.broadcast %31 : vector<1x8x8xf32> to vector<2x8x8xf32>
    %33 = arith.addf %30, %32 : vector<2x8x8xf32>
    %cst_13 = arith.constant dense<0xFF800000> : vector<2x8xf32>
    %34 = vector.multi_reduction <maximumf>, %33, %cst_13 [2] : vector<2x8x8xf32> to vector<2x8xf32>
    %35 = vector.shape_cast %34 : vector<2x8xf32> to vector<2x8x1xf32>
    %36 = vector.broadcast %35 : vector<2x8x1xf32> to vector<2x8x8xf32>
    %37 = arith.subf %33, %36 : vector<2x8x8xf32>
    %38 = math.exp %37 : vector<2x8x8xf32>
    %cst_14 = arith.constant dense<0.000000e+00> : vector<2x8xf32>
    %39 = vector.multi_reduction <add>, %38, %cst_14 [2] : vector<2x8x8xf32> to vector<2x8xf32>
    %40 = vector.shape_cast %39 : vector<2x8xf32> to vector<2x8x1xf32>
    %41 = tpu.reciprocal %40 {approx = true} : vector<2x8x1xf32> -> vector<2x8x1xf32>
    %42 = vector.broadcast %41 : vector<2x8x1xf32> to vector<2x8x8xf32>
    %43 = arith.mulf %38, %42 : vector<2x8x8xf32>
    %44 = arith.truncf %43 : vector<2x8x8xf32> to vector<2x8x8xbf16>
    "tpu.trace_start"() <{level = 10 : i32, message = "bqk,bkd->bqd"}> : () -> ()
    %cst_15 = arith.constant dense<0.000000e+00> : vector<2x8x8xf32>
    %45 = tpu.matmul %44, %27, %cst_15 {dimension_numbers = #tpu.dot_dimension_numbers<[2], [1], [1], [2], [0, 0, 0, 1, 1, 2], [0], [0]>} : vector<2x8x8xbf16>, vector<2x8x8xbf16>, vector<2x8x8xf32> -> vector<2x8x8xf32>
    "tpu.trace_stop"() : () -> ()
    %46 = vector.extract_strided_slice %19 {offsets = [0, 0, 8], sizes = [2, 8, 8], strides = [1, 1, 1]} : vector<2x8x32xf32> to vector<2x8x8xf32>
    %47 = arith.truncf %46 : vector<2x8x8xf32> to vector<2x8x8xbf16>
    %48 = vector.extract_strided_slice %20 {offsets = [0, 0, 8], sizes = [2, 8, 8], strides = [1, 1, 1]} : vector<2x8x32xf32> to vector<2x8x8xf32>
    %49 = arith.truncf %48 : vector<2x8x8xf32> to vector<2x8x8xbf16>
    %50 = vector.extract_strided_slice %21 {offsets = [0, 0, 8], sizes = [2, 8, 8], strides = [1, 1, 1]} : vector<2x8x32xf32> to vector<2x8x8xf32>
    %51 = arith.truncf %50 : vector<2x8x8xf32> to vector<2x8x8xbf16>
    "tpu.trace_start"() <{level = 10 : i32, message = "bqd,bkd->bqk"}> : () -> ()
    %cst_16 = arith.constant dense<0.000000e+00> : vector<2x8x8xf32>
    %52 = tpu.matmul %47, %49, %cst_16 {dimension_numbers = #tpu.dot_dimension_numbers<[2], [2], [1], [1], [0, 0, 0, 1, 1, 1], [0], [0]>} : vector<2x8x8xbf16>, vector<2x8x8xbf16>, vector<2x8x8xf32> -> vector<2x8x8xf32>
    "tpu.trace_stop"() : () -> ()
    %cst_17 = arith.constant 0.353553385 : f32
    %53 = vector.broadcast %cst_17 : f32 to vector<2x8x8xf32>
    %54 = arith.mulf %52, %53 : vector<2x8x8xf32>
    %55 = vector.shape_cast %9 : vector<8x8xf32> to vector<1x8x8xf32>
    %56 = vector.broadcast %55 : vector<1x8x8xf32> to vector<2x8x8xf32>
    %57 = arith.addf %54, %56 : vector<2x8x8xf32>
    %cst_18 = arith.constant dense<0xFF800000> : vector<2x8xf32>
    %58 = vector.multi_reduction <maximumf>, %57, %cst_18 [2] : vector<2x8x8xf32> to vector<2x8xf32>
    %59 = vector.shape_cast %58 : vector<2x8xf32> to vector<2x8x1xf32>
    %60 = vector.broadcast %59 : vector<2x8x1xf32> to vector<2x8x8xf32>
    %61 = arith.subf %57, %60 : vector<2x8x8xf32>
    %62 = math.exp %61 : vector<2x8x8xf32>
    %cst_19 = arith.constant dense<0.000000e+00> : vector<2x8xf32>
    %63 = vector.multi_reduction <add>, %62, %cst_19 [2] : vector<2x8x8xf32> to vector<2x8xf32>
    %64 = vector.shape_cast %63 : vector<2x8xf32> to vector<2x8x1xf32>
    %65 = tpu.reciprocal %64 {approx = true} : vector<2x8x1xf32> -> vector<2x8x1xf32>
    %66 = vector.broadcast %65 : vector<2x8x1xf32> to vector<2x8x8xf32>
    %67 = arith.mulf %62, %66 : vector<2x8x8xf32>
    %68 = arith.truncf %67 : vector<2x8x8xf32> to vector<2x8x8xbf16>
    "tpu.trace_start"() <{level = 10 : i32, message = "bqk,bkd->bqd"}> : () -> ()
    %cst_20 = arith.constant dense<0.000000e+00> : vector<2x8x8xf32>
    %69 = tpu.matmul %68, %51, %cst_20 {dimension_numbers = #tpu.dot_dimension_numbers<[2], [1], [1], [2], [0, 0, 0, 1, 1, 2], [0], [0]>} : vector<2x8x8xbf16>, vector<2x8x8xbf16>, vector<2x8x8xf32> -> vector<2x8x8xf32>
    "tpu.trace_stop"() : () -> ()
    %70 = vector.extract_strided_slice %19 {offsets = [0, 0, 16], sizes = [2, 8, 8], strides = [1, 1, 1]} : vector<2x8x32xf32> to vector<2x8x8xf32>
    %71 = arith.truncf %70 : vector<2x8x8xf32> to vector<2x8x8xbf16>
    %72 = vector.extract_strided_slice %20 {offsets = [0, 0, 16], sizes = [2, 8, 8], strides = [1, 1, 1]} : vector<2x8x32xf32> to vector<2x8x8xf32>
    %73 = arith.truncf %72 : vector<2x8x8xf32> to vector<2x8x8xbf16>
    %74 = vector.extract_strided_slice %21 {offsets = [0, 0, 16], sizes = [2, 8, 8], strides = [1, 1, 1]} : vector<2x8x32xf32> to vector<2x8x8xf32>
    %75 = arith.truncf %74 : vector<2x8x8xf32> to vector<2x8x8xbf16>
    "tpu.trace_start"() <{level = 10 : i32, message = "bqd,bkd->bqk"}> : () -> ()
    %cst_21 = arith.constant dense<0.000000e+00> : vector<2x8x8xf32>
    %76 = tpu.matmul %71, %73, %cst_21 {dimension_numbers = #tpu.dot_dimension_numbers<[2], [2], [1], [1], [0, 0, 0, 1, 1, 1], [0], [0]>} : vector<2x8x8xbf16>, vector<2x8x8xbf16>, vector<2x8x8xf32> -> vector<2x8x8xf32>
    "tpu.trace_stop"() : () -> ()
    %cst_22 = arith.constant 0.353553385 : f32
    %77 = vector.broadcast %cst_22 : f32 to vector<2x8x8xf32>
    %78 = arith.mulf %76, %77 : vector<2x8x8xf32>
    %79 = vector.shape_cast %9 : vector<8x8xf32> to vector<1x8x8xf32>
    %80 = vector.broadcast %79 : vector<1x8x8xf32> to vector<2x8x8xf32>
    %81 = arith.addf %78, %80 : vector<2x8x8xf32>
    %cst_23 = arith.constant dense<0xFF800000> : vector<2x8xf32>
    %82 = vector.multi_reduction <maximumf>, %81, %cst_23 [2] : vector<2x8x8xf32> to vector<2x8xf32>
    %83 = vector.shape_cast %82 : vector<2x8xf32> to vector<2x8x1xf32>
    %84 = vector.broadcast %83 : vector<2x8x1xf32> to vector<2x8x8xf32>
    %85 = arith.subf %81, %84 : vector<2x8x8xf32>
    %86 = math.exp %85 : vector<2x8x8xf32>
    %cst_24 = arith.constant dense<0.000000e+00> : vector<2x8xf32>
    %87 = vector.multi_reduction <add>, %86, %cst_24 [2] : vector<2x8x8xf32> to vector<2x8xf32>
    %88 = vector.shape_cast %87 : vector<2x8xf32> to vector<2x8x1xf32>
    %89 = tpu.reciprocal %88 {approx = true} : vector<2x8x1xf32> -> vector<2x8x1xf32>
    %90 = vector.broadcast %89 : vector<2x8x1xf32> to vector<2x8x8xf32>
    %91 = arith.mulf %86, %90 : vector<2x8x8xf32>
    %92 = arith.truncf %91 : vector<2x8x8xf32> to vector<2x8x8xbf16>
    "tpu.trace_start"() <{level = 10 : i32, message = "bqk,bkd->bqd"}> : () -> ()
    %cst_25 = arith.constant dense<0.000000e+00> : vector<2x8x8xf32>
    %93 = tpu.matmul %92, %75, %cst_25 {dimension_numbers = #tpu.dot_dimension_numbers<[2], [1], [1], [2], [0, 0, 0, 1, 1, 2], [0], [0]>} : vector<2x8x8xbf16>, vector<2x8x8xbf16>, vector<2x8x8xf32> -> vector<2x8x8xf32>
    "tpu.trace_stop"() : () -> ()
    %94 = vector.extract_strided_slice %19 {offsets = [0, 0, 24], sizes = [2, 8, 8], strides = [1, 1, 1]} : vector<2x8x32xf32> to vector<2x8x8xf32>
    %95 = arith.truncf %94 : vector<2x8x8xf32> to vector<2x8x8xbf16>
    %96 = vector.extract_strided_slice %20 {offsets = [0, 0, 24], sizes = [2, 8, 8], strides = [1, 1, 1]} : vector<2x8x32xf32> to vector<2x8x8xf32>
    %97 = arith.truncf %96 : vector<2x8x8xf32> to vector<2x8x8xbf16>
    %98 = vector.extract_strided_slice %21 {offsets = [0, 0, 24], sizes = [2, 8, 8], strides = [1, 1, 1]} : vector<2x8x32xf32> to vector<2x8x8xf32>
    %99 = arith.truncf %98 : vector<2x8x8xf32> to vector<2x8x8xbf16>
    "tpu.trace_start"() <{level = 10 : i32, message = "bqd,bkd->bqk"}> : () -> ()
    %cst_26 = arith.constant dense<0.000000e+00> : vector<2x8x8xf32>
    %100 = tpu.matmul %95, %97, %cst_26 {dimension_numbers = #tpu.dot_dimension_numbers<[2], [2], [1], [1], [0, 0, 0, 1, 1, 1], [0], [0]>} : vector<2x8x8xbf16>, vector<2x8x8xbf16>, vector<2x8x8xf32> -> vector<2x8x8xf32>
    "tpu.trace_stop"() : () -> ()
    %cst_27 = arith.constant 0.353553385 : f32
    %101 = vector.broadcast %cst_27 : f32 to vector<2x8x8xf32>
    %102 = arith.mulf %100, %101 : vector<2x8x8xf32>
    %103 = vector.shape_cast %9 : vector<8x8xf32> to vector<1x8x8xf32>
    %104 = vector.broadcast %103 : vector<1x8x8xf32> to vector<2x8x8xf32>
    %105 = arith.addf %102, %104 : vector<2x8x8xf32>
    %cst_28 = arith.constant dense<0xFF800000> : vector<2x8xf32>
    %106 = vector.multi_reduction <maximumf>, %105, %cst_28 [2] : vector<2x8x8xf32> to vector<2x8xf32>
    %107 = vector.shape_cast %106 : vector<2x8xf32> to vector<2x8x1xf32>
    %108 = vector.broadcast %107 : vector<2x8x1xf32> to vector<2x8x8xf32>
    %109 = arith.subf %105, %108 : vector<2x8x8xf32>
    %110 = math.exp %109 : vector<2x8x8xf32>
    %cst_29 = arith.constant dense<0.000000e+00> : vector<2x8xf32>
    %111 = vector.multi_reduction <add>, %110, %cst_29 [2] : vector<2x8x8xf32> to vector<2x8xf32>
    %112 = vector.shape_cast %111 : vector<2x8xf32> to vector<2x8x1xf32>
    %113 = tpu.reciprocal %112 {approx = true} : vector<2x8x1xf32> -> vector<2x8x1xf32>
    %114 = vector.broadcast %113 : vector<2x8x1xf32> to vector<2x8x8xf32>
    %115 = arith.mulf %110, %114 : vector<2x8x8xf32>
    %116 = arith.truncf %115 : vector<2x8x8xf32> to vector<2x8x8xbf16>
    "tpu.trace_start"() <{level = 10 : i32, message = "bqk,bkd->bqd"}> : () -> ()
    %cst_30 = arith.constant dense<0.000000e+00> : vector<2x8x8xf32>
    %117 = tpu.matmul %116, %99, %cst_30 {dimension_numbers = #tpu.dot_dimension_numbers<[2], [1], [1], [2], [0, 0, 0, 1, 1, 2], [0], [0]>} : vector<2x8x8xbf16>, vector<2x8x8xbf16>, vector<2x8x8xf32> -> vector<2x8x8xf32>
    "tpu.trace_stop"() : () -> ()
    %118 = tpu.concatenate %45, %69, %93, %117 in 2 : vector<2x8x8xf32>, vector<2x8x8xf32>, vector<2x8x8xf32>, vector<2x8x8xf32> -> vector<2x8x32xf32>
    %119 = arith.truncf %118 : vector<2x8x32xf32> to vector<2x8x32xbf16>
    %c0_31 = arith.constant 0 : index
    %c0_32 = arith.constant 0 : index
    %c0_33 = arith.constant 0 : index
    %120 = vector.load %arg4[%c0_31, %c0_32, %c0_33] : memref<1x32x32xbf16, #tpu.memory_space<vmem>>, vector<1x32x32xbf16>
    %121 = vector.shape_cast %120 : vector<1x32x32xbf16> to vector<32x32xbf16>
    "tpu.trace_start"() <{level = 10 : i32, message = "btd,de->bte"}> : () -> ()
    %cst_34 = arith.constant dense<0.000000e+00> : vector<2x8x32xf32>
    %122 = tpu.matmul %119, %121, %cst_34 {dimension_numbers = #tpu.dot_dimension_numbers<[2], [0], [0, 1], [1], [0, 0, 0, 1, 1, 1], [], []>} : vector<2x8x32xbf16>, vector<32x32xbf16>, vector<2x8x32xf32> -> vector<2x8x32xf32>
    "tpu.trace_stop"() : () -> ()
    %c0_35 = arith.constant 0 : index
    %c0_36 = arith.constant 0 : index
    %c0_37 = arith.constant 0 : index
    %123 = vector.load %arg5[%c0_35, %c0_36, %c0_37] : memref<1x1x32xf32, #tpu.memory_space<vmem>>, vector<1x1x32xf32>
    %124 = vector.shape_cast %123 : vector<1x1x32xf32> to vector<1x32xf32>
    %125 = vector.shape_cast %124 : vector<1x32xf32> to vector<1x1x32xf32>
    %126 = vector.broadcast %125 : vector<1x1x32xf32> to vector<2x8x32xf32>
    %127 = arith.addf %122, %126 : vector<2x8x32xf32>
    %128 = arith.addf %3, %127 : vector<2x8x32xf32>
    %cst_38 = arith.constant dense<0.000000e+00> : vector<2x8xf32>
    %129 = vector.multi_reduction <add>, %128, %cst_38 [2] : vector<2x8x32xf32> to vector<2x8xf32>
    %130 = vector.shape_cast %129 : vector<2x8xf32> to vector<2x8x1xf32>
    %cst_39 = arith.constant 3.200000e+01 : f32
    %131 = vector.broadcast %cst_39 : f32 to vector<2x8x1xf32>
    %132 = arith.divf %130, %131 : vector<2x8x1xf32>
    %133 = vector.broadcast %132 : vector<2x8x1xf32> to vector<2x8x32xf32>
    %134 = arith.subf %128, %133 : vector<2x8x32xf32>
    %135 = arith.mulf %134, %134 : vector<2x8x32xf32>
    %cst_40 = arith.constant dense<0.000000e+00> : vector<2x8xf32>
    %136 = vector.multi_reduction <add>, %135, %cst_40 [2] : vector<2x8x32xf32> to vector<2x8xf32>
    %137 = vector.shape_cast %136 : vector<2x8xf32> to vector<2x8x1xf32>
    %cst_41 = arith.constant 3.200000e+01 : f32
    %138 = vector.broadcast %cst_41 : f32 to vector<2x8x1xf32>
    %139 = arith.divf %137, %138 : vector<2x8x1xf32>
    %140 = vector.broadcast %132 : vector<2x8x1xf32> to vector<2x8x32xf32>
    %141 = arith.subf %128, %140 : vector<2x8x32xf32>
    %cst_42 = arith.constant 9.99999974E-6 : f32
    %142 = vector.broadcast %cst_42 : f32 to vector<2x8x1xf32>
    %143 = arith.addf %139, %142 : vector<2x8x1xf32>
    %144 = math.rsqrt %143 : vector<2x8x1xf32>
    %145 = vector.broadcast %144 : vector<2x8x1xf32> to vector<2x8x32xf32>
    %146 = arith.mulf %141, %145 : vector<2x8x32xf32>
    %c0_43 = arith.constant 0 : index
    %c0_44 = arith.constant 0 : index
    %c0_45 = arith.constant 0 : index
    %147 = vector.load %arg6[%c0_43, %c0_44, %c0_45] : memref<1x1x32xf32, #tpu.memory_space<vmem>>, vector<1x1x32xf32>
    %148 = vector.shape_cast %147 : vector<1x1x32xf32> to vector<1x32xf32>
    %149 = vector.shape_cast %148 : vector<1x32xf32> to vector<1x1x32xf32>
    %150 = vector.broadcast %149 : vector<1x1x32xf32> to vector<2x8x32xf32>
    %151 = arith.mulf %146, %150 : vector<2x8x32xf32>
    %c0_46 = arith.constant 0 : index
    %c0_47 = arith.constant 0 : index
    %c0_48 = arith.constant 0 : index
    %152 = vector.load %arg7[%c0_46, %c0_47, %c0_48] : memref<1x1x32xf32, #tpu.memory_space<vmem>>, vector<1x1x32xf32>
    %153 = vector.shape_cast %152 : vector<1x1x32xf32> to vector<1x32xf32>
    %154 = vector.shape_cast %153 : vector<1x32xf32> to vector<1x1x32xf32>
    %155 = vector.broadcast %154 : vector<1x1x32xf32> to vector<2x8x32xf32>
    %156 = arith.addf %151, %155 : vector<2x8x32xf32>
    %157 = arith.truncf %156 : vector<2x8x32xf32> to vector<2x8x32xbf16>
    %c0_49 = arith.constant 0 : index
    %c0_50 = arith.constant 0 : index
    %c0_51 = arith.constant 0 : index
    %158 = vector.load %arg8[%c0_49, %c0_50, %c0_51] : memref<1x32x2048xbf16, #tpu.memory_space<vmem>>, vector<1x32x2048xbf16>
    %159 = vector.shape_cast %158 : vector<1x32x2048xbf16> to vector<32x2048xbf16>
    "tpu.trace_start"() <{level = 10 : i32, message = "btd,df->btf"}> : () -> ()
    %cst_52 = arith.constant dense<0.000000e+00> : vector<2x8x2048xf32>
    %160 = tpu.matmul %157, %159, %cst_52 {dimension_numbers = #tpu.dot_dimension_numbers<[2], [0], [0, 1], [1], [0, 0, 0, 1, 1, 1], [], []>} : vector<2x8x32xbf16>, vector<32x2048xbf16>, vector<2x8x2048xf32> -> vector<2x8x2048xf32>
    "tpu.trace_stop"() : () -> ()
    %c0_53 = arith.constant 0 : index
    %c0_54 = arith.constant 0 : index
    %c0_55 = arith.constant 0 : index
    %161 = vector.load %arg9[%c0_53, %c0_54, %c0_55] : memref<1x1x2048xf32, #tpu.memory_space<vmem>>, vector<1x1x2048xf32>
    %162 = vector.shape_cast %161 : vector<1x1x2048xf32> to vector<1x2048xf32>
    %163 = vector.shape_cast %162 : vector<1x2048xf32> to vector<1x1x2048xf32>
    %164 = vector.broadcast %163 : vector<1x1x2048xf32> to vector<2x8x2048xf32>
    %165 = arith.addf %160, %164 : vector<2x8x2048xf32>
    %cst_56 = arith.constant 0.000000e+00 : f32
    %166 = vector.broadcast %cst_56 : f32 to vector<2x8x2048xf32>
    %167 = arith.maximumf %165, %166 : vector<2x8x2048xf32>
    %168 = arith.truncf %167 : vector<2x8x2048xf32> to vector<2x8x2048xbf16>
    %c0_57 = arith.constant 0 : index
    %c0_58 = arith.constant 0 : index
    %c0_59 = arith.constant 0 : index
    %169 = vector.load %arg10[%c0_57, %c0_58, %c0_59] : memref<1x2048x32xbf16, #tpu.memory_space<vmem>>, vector<1x2048x32xbf16>
    %170 = vector.shape_cast %169 : vector<1x2048x32xbf16> to vector<2048x32xbf16>
    "tpu.trace_start"() <{level = 10 : i32, message = "btf,fd->btd"}> : () -> ()
    %cst_60 = arith.constant dense<0.000000e+00> : vector<2x8x32xf32>
    %171 = tpu.matmul %168, %170, %cst_60 {dimension_numbers = #tpu.dot_dimension_numbers<[2], [0], [0, 1], [1], [0, 0, 0, 1, 1, 1], [], []>} : vector<2x8x2048xbf16>, vector<2048x32xbf16>, vector<2x8x32xf32> -> vector<2x8x32xf32>
    "tpu.trace_stop"() : () -> ()
    %c0_61 = arith.constant 0 : index
    %c0_62 = arith.constant 0 : index
    %c0_63 = arith.constant 0 : index
    %172 = vector.load %arg11[%c0_61, %c0_62, %c0_63] : memref<1x1x32xf32, #tpu.memory_space<vmem>>, vector<1x1x32xf32>
    %173 = vector.shape_cast %172 : vector<1x1x32xf32> to vector<1x32xf32>
    %174 = vector.shape_cast %173 : vector<1x32xf32> to vector<1x1x32xf32>
    %175 = vector.broadcast %174 : vector<1x1x32xf32> to vector<2x8x32xf32>
    %176 = arith.addf %171, %175 : vector<2x8x32xf32>
    %177 = arith.addf %156, %176 : vector<2x8x32xf32>
    %cst_64 = arith.constant dense<0.000000e+00> : vector<2x8xf32>
    %178 = vector.multi_reduction <add>, %177, %cst_64 [2] : vector<2x8x32xf32> to vector<2x8xf32>
    %179 = vector.shape_cast %178 : vector<2x8xf32> to vector<2x8x1xf32>
    %cst_65 = arith.constant 3.200000e+01 : f32
    %180 = vector.broadcast %cst_65 : f32 to vector<2x8x1xf32>
    %181 = arith.divf %179, %180 : vector<2x8x1xf32>
    %182 = vector.broadcast %181 : vector<2x8x1xf32> to vector<2x8x32xf32>
    %183 = arith.subf %177, %182 : vector<2x8x32xf32>
    %184 = arith.mulf %183, %183 : vector<2x8x32xf32>
    %cst_66 = arith.constant dense<0.000000e+00> : vector<2x8xf32>
    %185 = vector.multi_reduction <add>, %184, %cst_66 [2] : vector<2x8x32xf32> to vector<2x8xf32>
    %186 = vector.shape_cast %185 : vector<2x8xf32> to vector<2x8x1xf32>
    %cst_67 = arith.constant 3.200000e+01 : f32
    %187 = vector.broadcast %cst_67 : f32 to vector<2x8x1xf32>
    %188 = arith.divf %186, %187 : vector<2x8x1xf32>
    %189 = vector.broadcast %181 : vector<2x8x1xf32> to vector<2x8x32xf32>
    %190 = arith.subf %177, %189 : vector<2x8x32xf32>
    %cst_68 = arith.constant 9.99999974E-6 : f32
    %191 = vector.broadcast %cst_68 : f32 to vector<2x8x1xf32>
    %192 = arith.addf %188, %191 : vector<2x8x1xf32>
    %193 = math.rsqrt %192 : vector<2x8x1xf32>
    %194 = vector.broadcast %193 : vector<2x8x1xf32> to vector<2x8x32xf32>
    %195 = arith.mulf %190, %194 : vector<2x8x32xf32>
    %c0_69 = arith.constant 0 : index
    %c0_70 = arith.constant 0 : index
    %c0_71 = arith.constant 0 : index
    %196 = vector.load %arg12[%c0_69, %c0_70, %c0_71] : memref<1x1x32xf32, #tpu.memory_space<vmem>>, vector<1x1x32xf32>
    %197 = vector.shape_cast %196 : vector<1x1x32xf32> to vector<1x32xf32>
    %198 = vector.shape_cast %197 : vector<1x32xf32> to vector<1x1x32xf32>
    %199 = vector.broadcast %198 : vector<1x1x32xf32> to vector<2x8x32xf32>
    %200 = arith.mulf %195, %199 : vector<2x8x32xf32>
    %c0_72 = arith.constant 0 : index
    %c0_73 = arith.constant 0 : index
    %c0_74 = arith.constant 0 : index
    %201 = vector.load %arg13[%c0_72, %c0_73, %c0_74] : memref<1x1x32xf32, #tpu.memory_space<vmem>>, vector<1x1x32xf32>
    %202 = vector.shape_cast %201 : vector<1x1x32xf32> to vector<1x32xf32>
    %203 = vector.shape_cast %202 : vector<1x32xf32> to vector<1x1x32xf32>
    %204 = vector.broadcast %203 : vector<1x1x32xf32> to vector<2x8x32xf32>
    %205 = arith.addf %200, %204 : vector<2x8x32xf32>
    %c0_75 = arith.constant 0 : index
    %c0_76 = arith.constant 0 : index
    %c0_77 = arith.constant 0 : index
    %206 = vector.load %arg18[%c0_75, %c0_76, %c0_77] : memref<2x8x32xf32, #tpu.memory_space<vmem>>, vector<2x8x32xf32>
    tpu.vector_store %arg18[%c0_75, %c0_76, %c0_77], %205 {strides = array<i32>} : memref<2x8x32xf32, #tpu.memory_space<vmem>>, vector<2x8x32xf32>,
    %c1_i32 = arith.constant 1 : i32
    %207 = arith.cmpi eq, %arg0, %c1_i32 : i32
    %208 = arith.extui %207 : i1 to i32
    %c0_i32_78 = arith.constant 0 : i32
    %209 = arith.cmpi ne, %208, %c0_i32_78 : i32
    scf.if %209 {
      %210 = arith.truncf %205 : vector<2x8x32xf32> to vector<2x8x32xbf16>
      %211 = vector.extract_strided_slice %210 {offsets = [0, 7, 0], sizes = [2, 1, 32], strides = [1, 1, 1]} : vector<2x8x32xbf16> to vector<2x1x32xbf16>
      %c0_79 = arith.constant 0 : index
      %c0_80 = arith.constant 0 : index
      %212 = vector.load %arg14[%c0_79, %c0_80] : memref<32x3xbf16, #tpu.memory_space<vmem>>, vector<32x3xbf16>
      "tpu.trace_start"() <{level = 10 : i32, message = "btd,dl->btl"}> : () -> ()
      %cst_81 = arith.constant dense<0.000000e+00> : vector<2x8x3xf32>
      %213 = tpu.matmul %210, %212, %cst_81 {dimension_numbers = #tpu.dot_dimension_numbers<[2], [0], [0, 1], [1], [0, 0, 0, 1, 1, 1], [], []>} : vector<2x8x32xbf16>, vector<32x3xbf16>, vector<2x8x3xf32> -> vector<2x8x3xf32>
      "tpu.trace_stop"() : () -> ()
      %c0_82 = arith.constant 0 : index
      %c0_83 = arith.constant 0 : index
      %214 = vector.load %arg15[%c0_82, %c0_83] : memref<32x3xbf16, #tpu.memory_space<vmem>>, vector<32x3xbf16>
      "tpu.trace_start"() <{level = 10 : i32, message = "btd,dl->btl"}> : () -> ()
      %cst_84 = arith.constant dense<0.000000e+00> : vector<2x1x3xf32>
      %215 = tpu.matmul %211, %214, %cst_84 {dimension_numbers = #tpu.dot_dimension_numbers<[2], [0], [0, 1], [1], [0, 0, 0, 1, 1, 1], [], []>} : vector<2x1x32xbf16>, vector<32x3xbf16>, vector<2x1x3xf32> -> vector<2x1x3xf32>
      "tpu.trace_stop"() : () -> ()
      %216 = vector.broadcast %215 : vector<2x1x3xf32> to vector<2x8x3xf32>
      %217 = arith.addf %213, %216 : vector<2x8x3xf32>
      %c0_85 = arith.constant 0 : index
      %c0_86 = arith.constant 0 : index
      %218 = vector.load %arg16[%c0_85, %c0_86] : memref<1x3xf32, #tpu.memory_space<vmem>>, vector<1x3xf32>
      %219 = vector.shape_cast %218 : vector<1x3xf32> to vector<1x1x3xf32>
      %220 = vector.broadcast %219 : vector<1x1x3xf32> to vector<2x8x3xf32>
      %221 = arith.addf %217, %220 : vector<2x8x3xf32>
      %c0_87 = arith.constant 0 : index
      %c0_88 = arith.constant 0 : index
      %c0_89 = arith.constant 0 : index
      %222 = vector.load %arg17[%c0_87, %c0_88, %c0_89] : memref<2x8x3xf32, #tpu.memory_space<vmem>>, vector<2x8x3xf32>
      tpu.vector_store %arg17[%c0_87, %c0_88, %c0_89], %221 {strides = array<i32>} : memref<2x8x3xf32, #tpu.memory_space<vmem>>, vector<2x8x3xf32>,
    } else {
    }
    return
  }
  func.func @transform_0(%arg0: i32) -> (i32, i32, i32) {
    %c0_i32 = arith.constant 0 : i32
    %c0_i32_0 = arith.constant 0 : i32
    %c0_i32_1 = arith.constant 0 : i32
    %c0_i32_2 = arith.constant 0 : i32
    return %c0_i32, %c0_i32_0, %c0_i32_1 : i32, i32, i32
  }
  func.func @transform_1(%arg0: i32) -> (i32, i32, i32) {
    %c0_i32 = arith.constant 0 : i32
    %c0_i32_0 = arith.constant 0 : i32
    %c0_i32_1 = arith.constant 0 : i32
    return %arg0, %c0_i32, %c0_i32_0 : i32, i32, i32
  }
  func.func @transform_2(%arg0: i32) -> (i32, i32, i32) {
    %c0_i32 = arith.constant 0 : i32
    %c0_i32_0 = arith.constant 0 : i32
    %c0_i32_1 = arith.constant 0 : i32
    return %arg0, %c0_i32, %c0_i32_0 : i32, i32, i32
  }
  func.func @transform_3(%arg0: i32) -> (i32, i32, i32) {
    %c0_i32 = arith.constant 0 : i32
    %c0_i32_0 = arith.constant 0 : i32
    %c0_i32_1 = arith.constant 0 : i32
    return %arg0, %c0_i32, %c0_i32_0 : i32, i32, i32
  }
  func.func @transform_4(%arg0: i32) -> (i32, i32, i32) {
    %c0_i32 = arith.constant 0 : i32
    %c0_i32_0 = arith.constant 0 : i32
    %c0_i32_1 = arith.constant 0 : i32
    return %arg0, %c0_i32, %c0_i32_0 : i32, i32, i32
  }
  func.func @transform_5(%arg0: i32) -> (i32, i32, i32) {
    %c0_i32 = arith.constant 0 : i32
    %c0_i32_0 = arith.constant 0 : i32
    %c0_i32_1 = arith.constant 0 : i32
    return %arg0, %c0_i32, %c0_i32_0 : i32, i32, i32
  }
  func.func @transform_6(%arg0: i32) -> (i32, i32, i32) {
    %c0_i32 = arith.constant 0 : i32
    %c0_i32_0 = arith.constant 0 : i32
    %c0_i32_1 = arith.constant 0 : i32
    return %arg0, %c0_i32, %c0_i32_0 : i32, i32, i32
  }
  func.func @transform_7(%arg0: i32) -> (i32, i32, i32) {
    %c0_i32 = arith.constant 0 : i32
    %c0_i32_0 = arith.constant 0 : i32
    %c0_i32_1 = arith.constant 0 : i32
    return %arg0, %c0_i32, %c0_i32_0 : i32, i32, i32
  }
  func.func @transform_8(%arg0: i32) -> (i32, i32, i32) {
    %c0_i32 = arith.constant 0 : i32
    %c0_i32_0 = arith.constant 0 : i32
    %c0_i32_1 = arith.constant 0 : i32
    return %arg0, %c0_i32, %c0_i32_0 : i32, i32, i32
  }
  func.func @transform_9(%arg0: i32) -> (i32, i32, i32) {
    %c0_i32 = arith.constant 0 : i32
    %c0_i32_0 = arith.constant 0 : i32
    %c0_i32_1 = arith.constant 0 : i32
    return %arg0, %c0_i32, %c0_i32_0 : i32, i32, i32
  }
  func.func @transform_10(%arg0: i32) -> (i32, i32, i32) {
    %c0_i32 = arith.constant 0 : i32
    %c0_i32_0 = arith.constant 0 : i32
    %c0_i32_1 = arith.constant 0 : i32
    return %arg0, %c0_i32, %c0_i32_0 : i32, i32, i32
  }
  func.func @transform_11(%arg0: i32) -> (i32, i32, i32) {
    %c0_i32 = arith.constant 0 : i32
    %c0_i32_0 = arith.constant 0 : i32
    %c0_i32_1 = arith.constant 0 : i32
    return %arg0, %c0_i32, %c0_i32_0 : i32, i32, i32
  }
  func.func @transform_12(%arg0: i32) -> (i32, i32, i32) {
    %c0_i32 = arith.constant 0 : i32
    %c0_i32_0 = arith.constant 0 : i32
    %c0_i32_1 = arith.constant 0 : i32
    return %arg0, %c0_i32, %c0_i32_0 : i32, i32, i32
  }
  func.func @transform_13(%arg0: i32) -> (i32, i32) {
    %c0_i32 = arith.constant 0 : i32
    %c0_i32_0 = arith.constant 0 : i32
    %c0_i32_1 = arith.constant 0 : i32
    return %c0_i32, %c0_i32_0 : i32, i32
  }
  func.func @transform_14(%arg0: i32) -> (i32, i32) {
    %c0_i32 = arith.constant 0 : i32
    %c0_i32_0 = arith.constant 0 : i32
    %c0_i32_1 = arith.constant 0 : i32
    return %c0_i32, %c0_i32_0 : i32, i32
  }
  func.func @transform_15(%arg0: i32) -> (i32, i32) {
    %c0_i32 = arith.constant 0 : i32
    %c0_i32_0 = arith.constant 0 : i32
    %c0_i32_1 = arith.constant 0 : i32
    return %c0_i32, %c0_i32_0 : i32, i32
  }
  func.func @transform_16(%arg0: i32) -> (i32, i32, i32) {
    %c0_i32 = arith.constant 0 : i32
    %c0_i32_0 = arith.constant 0 : i32
    %c0_i32_1 = arith.constant 0 : i32
    %c0_i32_2 = arith.constant 0 : i32
    return %c0_i32, %c0_i32_0, %c0_i32_1 : i32, i32, i32
  }
}

</mosaic_0001>

<llo_original>
// kernel: baseline_classifier_forward.1
$region0: #{baseline_classifier_forward.1}
  #allocation0 [shape = 'u32[]', space=smem, size = 0x4, offset = 0x4, fixed_abs, tag = 'smem constant byte address 0x4 - core index']
  #allocation1 [shape = 'u32[144,128]{1,0:T(1,128)}', space=vmem, size = 0x12000, scoped, tag = 'internal scratch']
  #allocation2 [shape = 'f32[2,8,32]{2,1,0:T(8,128)}', space=vmem, size = 0x2000, scoped, tag = 'scratch operand']
  %s0 = inlined_call_operand.vmem [shape: f32[2,8,32], index: 0, kind: input, shape index: {}]
  %s1 = inlined_call_operand.vmem [shape: bf16[2,32,96], index: 1, kind: input, shape index: {}]
  %s2 = inlined_call_operand.vmem [shape: f32[2,1,96], index: 2, kind: input, shape index: {}]
  %s3 = inlined_call_operand.vmem [shape: bf16[2,32,32], index: 3, kind: input, shape index: {}]
  %s4 = inlined_call_operand.vmem [shape: f32[2,1,32], index: 4, kind: input, shape index: {}]
  %s5 = inlined_call_operand.vmem [shape: f32[2,1,32], index: 5, kind: input, shape index: {}]
  %s6 = inlined_call_operand.vmem [shape: f32[2,1,32], index: 6, kind: input, shape index: {}]
  %s7 = inlined_call_operand.vmem [shape: bf16[2,32,2048], index: 7, kind: input, shape index: {}]
  %s8 = inlined_call_operand.vmem [shape: f32[2,1,2048], index: 8, kind: input, shape index: {}]
  %s9 = inlined_call_operand.vmem [shape: bf16[2,2048,32], index: 9, kind: input, shape index: {}]
  %s10 = inlined_call_operand.vmem [shape: f32[2,1,32], index: 10, kind: input, shape index: {}]
  %s11 = inlined_call_operand.vmem [shape: f32[2,1,32], index: 11, kind: input, shape index: {}]
  %s12 = inlined_call_operand.vmem [shape: f32[2,1,32], index: 12, kind: input, shape index: {}]
  %s13 = inlined_call_operand.vmem [shape: bf16[32,3], index: 13, kind: input, shape index: {}]
  %s14 = inlined_call_operand.vmem [shape: bf16[32,3], index: 14, kind: input, shape index: {}]
  %s15 = inlined_call_operand.vmem [shape: f32[1,3], index: 15, kind: input, shape index: {}]
  %s16 = inlined_call_operand.vmem [shape: f32[2,8,3], index: 16, kind: output, shape index: {}]
  %s17 = sld [smem:[#allocation0]]
  $region105: #{baseline_classifier_forward.1} parent=0
    _
  %s19 = ssub.s32 1, %s17
  %s20 = scalar_select 0, %s19, %s17
  loop: start=0, step=1, limit=4
  $region2: #{baseline_classifier_forward.1} parent=0 // loop_pre_header
    _
  $region3: #{baseline_classifier_forward.1} parent=0 // loop_header
    %s22 = sphi 0, %s26
    %p23 = scmp.ge.s32.totalorder %s22, 4
    %s30 = sphi 0, %s30
    %s32 = sphi 0, %s30
    %s33 = sphi 0, %s32
    %s47 = sphi 0, %s33
    %s53 = sphi 0, %s55
    %s56 = sphi 0, %s53
    %s57 = sphi 0, %s56
    %s73 = sphi 0, %s57
    %s79 = sphi 0, %s81
    %s82 = sphi 0, %s79
    %s83 = sphi 0, %s82
    %s99 = sphi 0, %s83
    %s105 = sphi 0, %s107
    %s108 = sphi 0, %s105
    %s109 = sphi 0, %s108
    %s125 = sphi 0, %s109
    %s131 = sphi 0, %s133
    %s134 = sphi 0, %s131
    %s135 = sphi 0, %s134
    %s151 = sphi 0, %s135
    %s157 = sphi 0, %s159
    %s160 = sphi 0, %s157
    %s161 = sphi 0, %s160
    %s177 = sphi 0, %s161
    %s183 = sphi 0, %s185
    %s186 = sphi 0, %s183
    %s187 = sphi 0, %s186
    %s203 = sphi 0, %s187
    %s209 = sphi 0, %s211
    %s212 = sphi 0, %s209
    %s213 = sphi 0, %s212
    %s229 = sphi 0, %s213
    %s235 = sphi 0, %s237
    %s238 = sphi 0, %s235
    %s239 = sphi 0, %s238
    %s255 = sphi 0, %s239
    %s261 = sphi 0, %s263
    %s264 = sphi 0, %s261
    %s265 = sphi 0, %s264
    %s281 = sphi 0, %s265
    %s287 = sphi 0, %s289
    %s290 = sphi 0, %s287
    %s291 = sphi 0, %s290
    %s307 = sphi 0, %s291
    %s313 = sphi 0, %s315
    %s316 = sphi 0, %s313
    %s317 = sphi 0, %s316
    %s333 = sphi 0, %s317
    %s339 = sphi 0, %s341
    %s342 = sphi 0, %s339
    %s343 = sphi 0, %s342
    %s359 = sphi 0, %s343
    %s363 = sphi 0, %s363
    %s365 = sphi 0, %s363
    %s366 = sphi 0, %s365
    %s380 = sphi 0, %s366
    %s384 = sphi 0, %s384
    %s386 = sphi 0, %s384
    %s387 = sphi 0, %s386
    %s401 = sphi 0, %s387
    %s405 = sphi 0, %s405
    %s407 = sphi 0, %s405
    %s408 = sphi 0, %s407
    %s422 = sphi 0, %s408
    %s426 = sphi 0, %s426
    %s428 = sphi 0, %s426
    %s429 = sphi 0, %s428
    %s443 = sphi 0, %s429
  $region4: #{baseline_classifier_forward.1} parent=0 // loop_header_branch
    %25 = sbr.rel (%p23) target = $region8
  $region5: #{baseline_classifier_forward.1} parent=0 // loop_body
    %s27 = ssub.s32 %s22, 1
    %s28 = ssub.s32 %s22, 2
    %s29 = sadd.s32 %s22, 1
    %s31 = sadd.s32 %s30, 1
    %p34 = scmp.eq.s32.totalorder %s22, 1
    %p35 = scmp.ne.s32.totalorder %s30, %s32
    %p36 = scmp.eq.s32.totalorder %s22, 0
    %p37 = por %p35, %p36
    %p38 = scmp.ne.s32.totalorder %s30, %s32
    %p39 = scmp.eq.s32.totalorder %s27, 1
    %p40 = por %p38, %p39
    %p41 = scmp.ne.s32.totalorder %s32, %s33
    %p42 = scmp.eq.s32.totalorder %s27, 0
    %p43 = por %p41, %p42
    %p44 = scmp.ne.s32.totalorder %s32, %s33
    %p45 = scmp.eq.s32.totalorder %s28, 1
    %p46 = por %p44, %p45
    %p48 = scmp.ne.s32.totalorder %s33, %s47
    %p49 = scmp.eq.s32.totalorder %s28, 0
    %p50 = por %p48, %p49
    %s51 = ssub.s32 %s22, %s29
    %p52 = scmp.eq.s32.totalorder %s51, 0
    %s54 = sadd.s32 %s53, 1
    %s55 = scalar_select %p52, %s53, %s54
    %p58 = pneg %p52
    %p59 = scmp.eq.s32.totalorder %s22, 1
    %p60 = por %p58, %p59
    %p61 = scmp.ne.s32.totalorder %s53, %s56
    %p62 = scmp.eq.s32.totalorder %s22, 0
    %p63 = por %p61, %p62
    %p64 = scmp.ne.s32.totalorder %s53, %s56
    %p65 = scmp.eq.s32.totalorder %s27, 1
    %p66 = por %p64, %p65
    %p67 = scmp.ne.s32.totalorder %s56, %s57
    %p68 = scmp.eq.s32.totalorder %s27, 0
    %p69 = por %p67, %p68
    %p70 = scmp.ne.s32.totalorder %s56, %s57
    %p71 = scmp.eq.s32.totalorder %s28, 1
    %p72 = por %p70, %p71
    %p74 = scmp.ne.s32.totalorder %s57, %s73
    %p75 = scmp.eq.s32.totalorder %s28, 0
    %p76 = por %p74, %p75
    %s77 = ssub.s32 %s22, %s29
    %p78 = scmp.eq.s32.totalorder %s77, 0
    %s80 = sadd.s32 %s79, 1
    %s81 = scalar_select %p78, %s79, %s80
    %p84 = pneg %p78
    %p85 = scmp.eq.s32.totalorder %s22, 1
    %p86 = por %p84, %p85
    %p87 = scmp.ne.s32.totalorder %s79, %s82
    %p88 = scmp.eq.s32.totalorder %s22, 0
    %p89 = por %p87, %p88
    %p90 = scmp.ne.s32.totalorder %s79, %s82
    %p91 = scmp.eq.s32.totalorder %s27, 1
    %p92 = por %p90, %p91
    %p93 = scmp.ne.s32.totalorder %s82, %s83
    %p94 = scmp.eq.s32.totalorder %s27, 0
    %p95 = por %p93, %p94
    %p96 = scmp.ne.s32.totalorder %s82, %s83
    %p97 = scmp.eq.s32.totalorder %s28, 1
    %p98 = por %p96, %p97
    %p100 = scmp.ne.s32.totalorder %s83, %s99
    %p101 = scmp.eq.s32.totalorder %s28, 0
    %p102 = por %p100, %p101
    %s103 = ssub.s32 %s22, %s29
    %p104 = scmp.eq.s32.totalorder %s103, 0
    %s106 = sadd.s32 %s105, 1
    %s107 = scalar_select %p104, %s105, %s106
    %p110 = pneg %p104
    %p111 = scmp.eq.s32.totalorder %s22, 1
    %p112 = por %p110, %p111
    %p113 = scmp.ne.s32.totalorder %s105, %s108
    %p114 = scmp.eq.s32.totalorder %s22, 0
    %p115 = por %p113, %p114
    %p116 = scmp.ne.s32.totalorder %s105, %s108
    %p117 = scmp.eq.s32.totalorder %s27, 1
    %p118 = por %p116, %p117
    %p119 = scmp.ne.s32.totalorder %s108, %s109
    %p120 = scmp.eq.s32.totalorder %s27, 0
    %p121 = por %p119, %p120
    %p122 = scmp.ne.s32.totalorder %s108, %s109
    %p123 = scmp.eq.s32.totalorder %s28, 1
    %p124 = por %p122, %p123
    %p126 = scmp.ne.s32.totalorder %s109, %s125
    %p127 = scmp.eq.s32.totalorder %s28, 0
    %p128 = por %p126, %p127
    %s129 = ssub.s32 %s22, %s29
    %p130 = scmp.eq.s32.totalorder %s129, 0
    %s132 = sadd.s32 %s131, 1
    %s133 = scalar_select %p130, %s131, %s132
    %p136 = pneg %p130
    %p137 = scmp.eq.s32.totalorder %s22, 1
    %p138 = por %p136, %p137
    %p139 = scmp.ne.s32.totalorder %s131, %s134
    %p140 = scmp.eq.s32.totalorder %s22, 0
    %p141 = por %p139, %p140
    %p142 = scmp.ne.s32.totalorder %s131, %s134
    %p143 = scmp.eq.s32.totalorder %s27, 1
    %p144 = por %p142, %p143
    %p145 = scmp.ne.s32.totalorder %s134, %s135
    %p146 = scmp.eq.s32.totalorder %s27, 0
    %p147 = por %p145, %p146
    %p148 = scmp.ne.s32.totalorder %s134, %s135
    %p149 = scmp.eq.s32.totalorder %s28, 1
    %p150 = por %p148, %p149
    %p152 = scmp.ne.s32.totalorder %s135, %s151
    %p153 = scmp.eq.s32.totalorder %s28, 0
    %p154 = por %p152, %p153
    %s155 = ssub.s32 %s22, %s29
    %p156 = scmp.eq.s32.totalorder %s155, 0
    %s158 = sadd.s32 %s157, 1
    %s159 = scalar_select %p156, %s157, %s158
    %p162 = pneg %p156
    %p163 = scmp.eq.s32.totalorder %s22, 1
    %p164 = por %p162, %p163
    %p165 = scmp.ne.s32.totalorder %s157, %s160
    %p166 = scmp.eq.s32.totalorder %s22, 0
    %p167 = por %p165, %p166
    %p168 = scmp.ne.s32.totalorder %s157, %s160
    %p169 = scmp.eq.s32.totalorder %s27, 1
    %p170 = por %p168, %p169
    %p171 = scmp.ne.s32.totalorder %s160, %s161
    %p172 = scmp.eq.s32.totalorder %s27, 0
    %p173 = por %p171, %p172
    %p174 = scmp.ne.s32.totalorder %s160, %s161
    %p175 = scmp.eq.s32.totalorder %s28, 1
    %p176 = por %p174, %p175
    %p178 = scmp.ne.s32.totalorder %s161, %s177
    %p179 = scmp.eq.s32.totalorder %s28, 0
    %p180 = por %p178, %p179
    %s181 = ssub.s32 %s22, %s29
    %p182 = scmp.eq.s32.totalorder %s181, 0
    %s184 = sadd.s32 %s183, 1
    %s185 = scalar_select %p182, %s183, %s184
    %p188 = pneg %p182
    %p189 = scmp.eq.s32.totalorder %s22, 1
    %p190 = por %p188, %p189
    %p191 = scmp.ne.s32.totalorder %s183, %s186
    %p192 = scmp.eq.s32.totalorder %s22, 0
    %p193 = por %p191, %p192
    %p194 = scmp.ne.s32.totalorder %s183, %s186
    %p195 = scmp.eq.s32.totalorder %s27, 1
    %p196 = por %p194, %p195
    %p197 = scmp.ne.s32.totalorder %s186, %s187
    %p198 = scmp.eq.s32.totalorder %s27, 0
    %p199 = por %p197, %p198
    %p200 = scmp.ne.s32.totalorder %s186, %s187
    %p201 = scmp.eq.s32.totalorder %s28, 1
    %p202 = por %p200, %p201
    %p204 = scmp.ne.s32.totalorder %s187, %s203
    %p205 = scmp.eq.s32.totalorder %s28, 0
    %p206 = por %p204, %p205
    %s207 = ssub.s32 %s22, %s29
    %p208 = scmp.eq.s32.totalorder %s207, 0
    %s210 = sadd.s32 %s209, 1
    %s211 = scalar_select %p208, %s209, %s210
    %p214 = pneg %p208
    %p215 = scmp.eq.s32.totalorder %s22, 1
    %p216 = por %p214, %p215
    %p217 = scmp.ne.s32.totalorder %s209, %s212
    %p218 = scmp.eq.s32.totalorder %s22, 0
    %p219 = por %p217, %p218
    %p220 = scmp.ne.s32.totalorder %s209, %s212
    %p221 = scmp.eq.s32.totalorder %s27, 1
    %p222 = por %p220, %p221
    %p223 = scmp.ne.s32.totalorder %s212, %s213
    %p224 = scmp.eq.s32.totalorder %s27, 0
    %p225 = por %p223, %p224
    %p226 = scmp.ne.s32.totalorder %s212, %s213
    %p227 = scmp.eq.s32.totalorder %s28, 1
    %p228 = por %p226, %p227
    %p230 = scmp.ne.s32.totalorder %s213, %s229
    %p231 = scmp.eq.s32.totalorder %s28, 0
    %p232 = por %p230, %p231
    %s233 = ssub.s32 %s22, %s29
    %p234 = scmp.eq.s32.totalorder %s233, 0
    %s236 = sadd.s32 %s235, 1
    %s237 = scalar_select %p234, %s235, %s236
    %p240 = pneg %p234
    %p241 = scmp.eq.s32.totalorder %s22, 1
    %p242 = por %p240, %p241
    %p243 = scmp.ne.s32.totalorder %s235, %s238
    %p244 = scmp.eq.s32.totalorder %s22, 0
    %p245 = por %p243, %p244
    %p246 = scmp.ne.s32.totalorder %s235, %s238
    %p247 = scmp.eq.s32.totalorder %s27, 1
    %p248 = por %p246, %p247
    %p249 = scmp.ne.s32.totalorder %s238, %s239
    %p250 = scmp.eq.s32.totalorder %s27, 0
    %p251 = por %p249, %p250
    %p252 = scmp.ne.s32.totalorder %s238, %s239
    %p253 = scmp.eq.s32.totalorder %s28, 1
    %p254 = por %p252, %p253
    %p256 = scmp.ne.s32.totalorder %s239, %s255
    %p257 = scmp.eq.s32.totalorder %s28, 0
    %p258 = por %p256, %p257
    %s259 = ssub.s32 %s22, %s29
    %p260 = scmp.eq.s32.totalorder %s259, 0
    %s262 = sadd.s32 %s261, 1
    %s263 = scalar_select %p260, %s261, %s262
    %p266 = pneg %p260
    %p267 = scmp.eq.s32.totalorder %s22, 1
    %p268 = por %p266, %p267
    %p269 = scmp.ne.s32.totalorder %s261, %s264
    %p270 = scmp.eq.s32.totalorder %s22, 0
    %p271 = por %p269, %p270
    %p272 = scmp.ne.s32.totalorder %s261, %s264
    %p273 = scmp.eq.s32.totalorder %s27, 1
    %p274 = por %p272, %p273
    %p275 = scmp.ne.s32.totalorder %s264, %s265
    %p276 = scmp.eq.s32.totalorder %s27, 0
    %p277 = por %p275, %p276
    %p278 = scmp.ne.s32.totalorder %s264, %s265
    %p279 = scmp.eq.s32.totalorder %s28, 1
    %p280 = por %p278, %p279
    %p282 = scmp.ne.s32.totalorder %s265, %s281
    %p283 = scmp.eq.s32.totalorder %s28, 0
    %p284 = por %p282, %p283
    %s285 = ssub.s32 %s22, %s29
    %p286 = scmp.eq.s32.totalorder %s285, 0
    %s288 = sadd.s32 %s287, 1
    %s289 = scalar_select %p286, %s287, %s288
    %p292 = pneg %p286
    %p293 = scmp.eq.s32.totalorder %s22, 1
    %p294 = por %p292, %p293
    %p295 = scmp.ne.s32.totalorder %s287, %s290
    %p296 = scmp.eq.s32.totalorder %s22, 0
    %p297 = por %p295, %p296
    %p298 = scmp.ne.s32.totalorder %s287, %s290
    %p299 = scmp.eq.s32.totalorder %s27, 1
    %p300 = por %p298, %p299
    %p301 = scmp.ne.s32.totalorder %s290, %s291
    %p302 = scmp.eq.s32.totalorder %s27, 0
    %p303 = por %p301, %p302
    %p304 = scmp.ne.s32.totalorder %s290, %s291
    %p305 = scmp.eq.s32.totalorder %s28, 1
    %p306 = por %p304, %p305
    %p308 = scmp.ne.s32.totalorder %s291, %s307
    %p309 = scmp.eq.s32.totalorder %s28, 0
    %p310 = por %p308, %p309
    %s311 = ssub.s32 %s22, %s29
    %p312 = scmp.eq.s32.totalorder %s311, 0
    %s314 = sadd.s32 %s313, 1
    %s315 = scalar_select %p312, %s313, %s314
    %p318 = pneg %p312
    %p319 = scmp.eq.s32.totalorder %s22, 1
    %p320 = por %p318, %p319
    %p321 = scmp.ne.s32.totalorder %s313, %s316
    %p322 = scmp.eq.s32.totalorder %s22, 0
    %p323 = por %p321, %p322
    %p324 = scmp.ne.s32.totalorder %s313, %s316
    %p325 = scmp.eq.s32.totalorder %s27, 1
    %p326 = por %p324, %p325
    %p327 = scmp.ne.s32.totalorder %s316, %s317
    %p328 = scmp.eq.s32.totalorder %s27, 0
    %p329 = por %p327, %p328
    %p330 = scmp.ne.s32.totalorder %s316, %s317
    %p331 = scmp.eq.s32.totalorder %s28, 1
    %p332 = por %p330, %p331
    %p334 = scmp.ne.s32.totalorder %s317, %s333
    %p335 = scmp.eq.s32.totalorder %s28, 0
    %p336 = por %p334, %p335
    %s337 = ssub.s32 %s22, %s29
    %p338 = scmp.eq.s32.totalorder %s337, 0
    %s340 = sadd.s32 %s339, 1
    %s341 = scalar_select %p338, %s339, %s340
    %p344 = pneg %p338
    %p345 = scmp.eq.s32.totalorder %s22, 1
    %p346 = por %p344, %p345
    %p347 = scmp.ne.s32.totalorder %s339, %s342
    %p348 = scmp.eq.s32.totalorder %s22, 0
    %p349 = por %p347, %p348
    %p350 = scmp.ne.s32.totalorder %s339, %s342
    %p351 = scmp.eq.s32.totalorder %s27, 1
    %p352 = por %p350, %p351
    %p353 = scmp.ne.s32.totalorder %s342, %s343
    %p354 = scmp.eq.s32.totalorder %s27, 0
    %p355 = por %p353, %p354
    %p356 = scmp.ne.s32.totalorder %s342, %s343
    %p357 = scmp.eq.s32.totalorder %s28, 1
    %p358 = por %p356, %p357
    %p360 = scmp.ne.s32.totalorder %s343, %s359
    %p361 = scmp.eq.s32.totalorder %s28, 0
    %p362 = por %p360, %p361
    %s364 = sadd.s32 %s363, 1
    %p367 = scmp.eq.s32.totalorder %s22, 1
    %p368 = scmp.ne.s32.totalorder %s363, %s365
    %p369 = scmp.eq.s32.totalorder %s22, 0
    %p370 = por %p368, %p369
    %p371 = scmp.ne.s32.totalorder %s363, %s365
    %p372 = scmp.eq.s32.totalorder %s27, 1
    %p373 = por %p371, %p372
    %p374 = scmp.ne.s32.totalorder %s365, %s366
    %p375 = scmp.eq.s32.totalorder %s27, 0
    %p376 = por %p374, %p375
    %p377 = scmp.ne.s32.totalorder %s365, %s366
    %p378 = scmp.eq.s32.totalorder %s28, 1
    %p379 = por %p377, %p378
    %p381 = scmp.ne.s32.totalorder %s366, %s380
    %p382 = scmp.eq.s32.totalorder %s28, 0
    %p383 = por %p381, %p382
    %s385 = sadd.s32 %s384, 1
    %p388 = scmp.eq.s32.totalorder %s22, 1
    %p389 = scmp.ne.s32.totalorder %s384, %s386
    %p390 = scmp.eq.s32.totalorder %s22, 0
    %p391 = por %p389, %p390
    %p392 = scmp.ne.s32.totalorder %s384, %s386
    %p393 = scmp.eq.s32.totalorder %s27, 1
    %p394 = por %p392, %p393
    %p395 = scmp.ne.s32.totalorder %s386, %s387
    %p396 = scmp.eq.s32.totalorder %s27, 0
    %p397 = por %p395, %p396
    %p398 = scmp.ne.s32.totalorder %s386, %s387
    %p399 = scmp.eq.s32.totalorder %s28, 1
    %p400 = por %p398, %p399
    %p402 = scmp.ne.s32.totalorder %s387, %s401
    %p403 = scmp.eq.s32.totalorder %s28, 0
    %p404 = por %p402, %p403
    %s406 = sadd.s32 %s405, 1
    %p409 = scmp.eq.s32.totalorder %s22, 1
    %p410 = scmp.ne.s32.totalorder %s405, %s407
    %p411 = scmp.eq.s32.totalorder %s22, 0
    %p412 = por %p410, %p411
    %p413 = scmp.ne.s32.totalorder %s405, %s407
    %p414 = scmp.eq.s32.totalorder %s27, 1
    %p415 = por %p413, %p414
    %p416 = scmp.ne.s32.totalorder %s407, %s408
    %p417 = scmp.eq.s32.totalorder %s27, 0
    %p418 = por %p416, %p417
    %p419 = scmp.ne.s32.totalorder %s407, %s408
    %p420 = scmp.eq.s32.totalorder %s28, 1
    %p421 = por %p419, %p420
    %p423 = scmp.ne.s32.totalorder %s408, %s422
    %p424 = scmp.eq.s32.totalorder %s28, 0
    %p425 = por %p423, %p424
    %s427 = sadd.s32 %s426, 1
    %p430 = scmp.eq.s32.totalorder %s22, 1
    %p431 = scmp.ne.s32.totalorder %s426, %s428
    %p432 = scmp.eq.s32.totalorder %s22, 0
    %p433 = por %p431, %p432
    %p434 = scmp.ne.s32.totalorder %s426, %s428
    %p435 = scmp.eq.s32.totalorder %s27, 1
    %p436 = por %p434, %p435
    %p437 = scmp.ne.s32.totalorder %s428, %s429
    %p438 = scmp.eq.s32.totalorder %s27, 0
    %p439 = por %p437, %p438
    %p440 = scmp.ne.s32.totalorder %s428, %s429
    %p441 = scmp.eq.s32.totalorder %s28, 1
    %p442 = por %p440, %p441
    %p444 = scmp.ne.s32.totalorder %s429, %s443
    %p445 = scmp.eq.s32.totalorder %s28, 0
    %p446 = por %p444, %p445
    %p447 = scmp.le.s32.totalorder 1, %s22
    %p448 = scmp.lt.s32.totalorder %s22, 3
    %p449 = pnand %p447, %p448
    %p450 = pneg %p449
    // Predicated region
    $region9: #{baseline_classifier_forward.1} parent=5 // pred_check
      _
    $region10: #{baseline_classifier_forward.1} parent=5 // pred_check_branch
      %452 = sbr.rel (%p449) target = $region12
    $region11: #{baseline_classifier_forward.1} parent=5 // pred_region
      %s453 = ssub.s32 %s22, 1
      // Predicated region
      $region13: #{baseline_classifier_forward.1} parent=11 // pred_check
        %p454 = pneg %p43
      $region14: #{baseline_classifier_forward.1} parent=11 // pred_check_branch
        %456 = sbr.rel (%p454) target = $region16
      $region15: #{baseline_classifier_forward.1} parent=11 // pred_region
        _
      $region16: #{baseline_classifier_forward.1} parent=11 // pred_fallthru
        _
      // Predicated region
      $region17: #{baseline_classifier_forward.1} parent=11 // pred_check
        %p457 = pneg %p376
      $region18: #{baseline_classifier_forward.1} parent=11 // pred_check_branch
        %459 = sbr.rel (%p457) target = $region20
      $region19: #{baseline_classifier_forward.1} parent=11 // pred_region
        _
      $region20: #{baseline_classifier_forward.1} parent=11 // pred_fallthru
        _
      // Predicated region
      $region21: #{baseline_classifier_forward.1} parent=11 // pred_check
        %p460 = pneg %p397
      $region22: #{baseline_classifier_forward.1} parent=11 // pred_check_branch
        %462 = sbr.rel (%p460) target = $region24
      $region23: #{baseline_classifier_forward.1} parent=11 // pred_region
        _
      $region24: #{baseline_classifier_forward.1} parent=11 // pred_fallthru
        _
      // Predicated region
      $region25: #{baseline_classifier_forward.1} parent=11 // pred_check
        %p463 = pneg %p418
      $region26: #{baseline_classifier_forward.1} parent=11 // pred_check_branch
        %465 = sbr.rel (%p463) target = $region28
      $region27: #{baseline_classifier_forward.1} parent=11 // pred_region
        _
      $region28: #{baseline_classifier_forward.1} parent=11 // pred_fallthru
        _
    $region12: #{baseline_classifier_forward.1} parent=5 // pred_fallthru
      _
    %p466 = scmp.lt.s32.totalorder %s22, 2
    // Predicated region
    $region29: #{baseline_classifier_forward.1} parent=5 // pred_check
      %p467 = pneg %p466
    $region30: #{baseline_classifier_forward.1} parent=5 // pred_check_branch
      %469 = sbr.rel (%p467) target = $region32
    $region31: #{baseline_classifier_forward.1} parent=5 // pred_region
      // Predicated region
      $region33: #{baseline_classifier_forward.1} parent=31 // pred_check
        %p470 = pneg %p63
      $region34: #{baseline_classifier_forward.1} parent=31 // pred_check_branch
        %472 = sbr.rel (%p470) target = $region36
      $region35: #{baseline_classifier_forward.1} parent=31 // pred_region
        %p473 = scmp.lt.s32.totalorder %s22, 1
        %s474 = scalar_select %p473, %s22, 1
        %s475 = smul.addr %s474, 4
        %s476 = smul.addr %s475, 4
        %s477 = scalar_lea.vmem %s1, %s476
      $region36: #{baseline_classifier_forward.1} parent=31 // pred_fallthru
        _
      // Predicated region
      $region37: #{baseline_classifier_forward.1} parent=31 // pred_check
        %p478 = pneg %p89
      $region38: #{baseline_classifier_forward.1} parent=31 // pred_check_branch
        %480 = sbr.rel (%p478) target = $region40
      $region39: #{baseline_classifier_forward.1} parent=31 // pred_region
        %p481 = scmp.lt.s32.totalorder %s22, 1
        %s482 = scalar_select %p481, %s22, 1
        %s483 = scalar_lea.vmem %s2, %s482
      $region40: #{baseline_classifier_forward.1} parent=31 // pred_fallthru
        _
      // Predicated region
      $region41: #{baseline_classifier_forward.1} parent=31 // pred_check
        %p484 = pneg %p115
      $region42: #{baseline_classifier_forward.1} parent=31 // pred_check_branch
        %486 = sbr.rel (%p484) target = $region44
      $region43: #{baseline_classifier_forward.1} parent=31 // pred_region
        %p487 = scmp.lt.s32.totalorder %s22, 1
        %s488 = scalar_select %p487, %s22, 1
        %s489 = smul.addr %s488, 4
        %s490 = smul.addr %s489, 4
        %s491 = scalar_lea.vmem %s3, %s490
      $region44: #{baseline_classifier_forward.1} parent=31 // pred_fallthru
        _
      // Predicated region
      $region45: #{baseline_classifier_forward.1} parent=31 // pred_check
        %p492 = pneg %p141
      $region46: #{baseline_classifier_forward.1} parent=31 // pred_check_branch
        %494 = sbr.rel (%p492) target = $region48
      $region47: #{baseline_classifier_forward.1} parent=31 // pred_region
        %p495 = scmp.lt.s32.totalorder %s22, 1
        %s496 = scalar_select %p495, %s22, 1
        %s497 = scalar_lea.vmem %s4, %s496
      $region48: #{baseline_classifier_forward.1} parent=31 // pred_fallthru
        _
      // Predicated region
      $region49: #{baseline_classifier_forward.1} parent=31 // pred_check
        %p498 = pneg %p167
      $region50: #{baseline_classifier_forward.1} parent=31 // pred_check_branch
        %500 = sbr.rel (%p498) target = $region52
      $region51: #{baseline_classifier_forward.1} parent=31 // pred_region
        %p501 = scmp.lt.s32.totalorder %s22, 1
        %s502 = scalar_select %p501, %s22, 1
        %s503 = scalar_lea.vmem %s5, %s502
      $region52: #{baseline_classifier_forward.1} parent=31 // pred_fallthru
        _
      // Predicated region
      $region53: #{baseline_classifier_forward.1} parent=31 // pred_check
        %p504 = pneg %p193
      $region54: #{baseline_classifier_forward.1} parent=31 // pred_check_branch
        %506 = sbr.rel (%p504) target = $region56
      $region55: #{baseline_classifier_forward.1} parent=31 // pred_region
        %p507 = scmp.lt.s32.totalorder %s22, 1
        %s508 = scalar_select %p507, %s22, 1
        %s509 = scalar_lea.vmem %s6, %s508
      $region56: #{baseline_classifier_forward.1} parent=31 // pred_fallthru
        _
      // Predicated region
      $region57: #{baseline_classifier_forward.1} parent=31 // pred_check
        %p510 = pneg %p219
      $region58: #{baseline_classifier_forward.1} parent=31 // pred_check_branch
        %512 = sbr.rel (%p510) target = $region60
      $region59: #{baseline_classifier_forward.1} parent=31 // pred_region
        %p513 = scmp.lt.s32.totalorder %s22, 1
        %s514 = scalar_select %p513, %s22, 1
        %s515 = smul.addr %s514, 64
        %s516 = smul.addr %s515, 4
        %s517 = scalar_lea.vmem %s7, %s516
      $region60: #{baseline_classifier_forward.1} parent=31 // pred_fallthru
        _
      // Predicated region
      $region61: #{baseline_classifier_forward.1} parent=31 // pred_check
        %p518 = pneg %p245
      $region62: #{baseline_classifier_forward.1} parent=31 // pred_check_branch
        %520 = sbr.rel (%p518) target = $region64
      $region63: #{baseline_classifier_forward.1} parent=31 // pred_region
        %p521 = scmp.lt.s32.totalorder %s22, 1
        %s522 = scalar_select %p521, %s22, 1
        %s523 = smul.addr %s522, 16
        %s524 = scalar_lea.vmem %s8, %s523
      $region64: #{baseline_classifier_forward.1} parent=31 // pred_fallthru
        _
      // Predicated region
      $region65: #{baseline_classifier_forward.1} parent=31 // pred_check
        %p525 = pneg %p271
      $region66: #{baseline_classifier_forward.1} parent=31 // pred_check_branch
        %527 = sbr.rel (%p525) target = $region68
      $region67: #{baseline_classifier_forward.1} parent=31 // pred_region
        %p528 = scmp.lt.s32.totalorder %s22, 1
        %s529 = scalar_select %p528, %s22, 1
        %s530 = smul.addr %s529, 256
        %s531 = smul.addr %s530, 4
        %s532 = scalar_lea.vmem %s9, %s531
      $region68: #{baseline_classifier_forward.1} parent=31 // pred_fallthru
        _
      // Predicated region
      $region69: #{baseline_classifier_forward.1} parent=31 // pred_check
        %p533 = pneg %p297
      $region70: #{baseline_classifier_forward.1} parent=31 // pred_check_branch
        %535 = sbr.rel (%p533) target = $region72
      $region71: #{baseline_classifier_forward.1} parent=31 // pred_region
        %p536 = scmp.lt.s32.totalorder %s22, 1
        %s537 = scalar_select %p536, %s22, 1
        %s538 = scalar_lea.vmem %s10, %s537
      $region72: #{baseline_classifier_forward.1} parent=31 // pred_fallthru
        _
      // Predicated region
      $region73: #{baseline_classifier_forward.1} parent=31 // pred_check
        %p539 = pneg %p323
      $region74: #{baseline_classifier_forward.1} parent=31 // pred_check_branch
        %541 = sbr.rel (%p539) target = $region76
      $region75: #{baseline_classifier_forward.1} parent=31 // pred_region
        %p542 = scmp.lt.s32.totalorder %s22, 1
        %s543 = scalar_select %p542, %s22, 1
        %s544 = scalar_lea.vmem %s11, %s543
      $region76: #{baseline_classifier_forward.1} parent=31 // pred_fallthru
        _
      // Predicated region
      $region77: #{baseline_classifier_forward.1} parent=31 // pred_check
        %p545 = pneg %p349
      $region78: #{baseline_classifier_forward.1} parent=31 // pred_check_branch
        %547 = sbr.rel (%p545) target = $region80
      $region79: #{baseline_classifier_forward.1} parent=31 // pred_region
        %p548 = scmp.lt.s32.totalorder %s22, 1
        %s549 = scalar_select %p548, %s22, 1
        %s550 = scalar_lea.vmem %s12, %s549
      $region80: #{baseline_classifier_forward.1} parent=31 // pred_fallthru
        _
    $region32: #{baseline_classifier_forward.1} parent=5 // pred_fallthru
      _
    %p551 = scmp.le.s32.totalorder 1, %s22
    %p552 = scmp.lt.s32.totalorder %s22, 3
    %p553 = pnand %p551, %p552
    %p554 = pneg %p553
    // Predicated region
    $region81: #{baseline_classifier_forward.1} parent=5 // pred_check
      _
    $region82: #{baseline_classifier_forward.1} parent=5 // pred_check_branch
      %556 = sbr.rel (%p553) target = $region84
    $region83: #{baseline_classifier_forward.1} parent=5 // pred_region
      %s557 = ssub.s32 %s22, 1
      %p558 = pneg %p43
      %p559 = pneg %p40
      %p560 = scmp.lt.s32.totalorder %s27, 1
      %s561 = scalar_select %p560, %s27, 1
      %s562 = smul.addr %s561, 4
      %s563 = smul.addr %s562, 4
      %s564 = scalar_lea.vmem %s1, %s563
      %p565 = pneg %p69
      %p566 = pneg %p66
      %p567 = scmp.lt.s32.totalorder %s27, 1
      %s568 = scalar_select %p567, %s27, 1
      %s569 = scalar_lea.vmem %s2, %s568
      %p570 = pneg %p95
      %p571 = pneg %p92
      %p572 = scmp.lt.s32.totalorder %s27, 1
      %s573 = scalar_select %p572, %s27, 1
      %s574 = smul.addr %s573, 4
      %s575 = smul.addr %s574, 4
      %s576 = scalar_lea.vmem %s3, %s575
      %p577 = pneg %p121
      %p578 = pneg %p118
      %p579 = scmp.lt.s32.totalorder %s27, 1
      %s580 = scalar_select %p579, %s27, 1
      %s581 = scalar_lea.vmem %s4, %s580
      %p582 = pneg %p147
      %p583 = pneg %p144
      %p584 = scmp.lt.s32.totalorder %s27, 1
      %s585 = scalar_select %p584, %s27, 1
      %s586 = scalar_lea.vmem %s5, %s585
      %p587 = pneg %p173
      %p588 = pneg %p170
      %p589 = scmp.lt.s32.totalorder %s27, 1
      %s590 = scalar_select %p589, %s27, 1
      %s591 = scalar_lea.vmem %s6, %s590
      %p592 = pneg %p199
      %p593 = pneg %p196
      %p594 = scmp.lt.s32.totalorder %s27, 1
      %s595 = scalar_select %p594, %s27, 1
      %s596 = smul.addr %s595, 64
      %s597 = smul.addr %s596, 4
      %s598 = scalar_lea.vmem %s7, %s597
      %p599 = pneg %p225
      %p600 = pneg %p222
      %p601 = scmp.lt.s32.totalorder %s27, 1
      %s602 = scalar_select %p601, %s27, 1
      %s603 = smul.addr %s602, 16
      %s604 = scalar_lea.vmem %s8, %s603
      %p605 = pneg %p251
      %p606 = pneg %p248
      %p607 = scmp.lt.s32.totalorder %s27, 1
      %s608 = scalar_select %p607, %s27, 1
      %s609 = smul.addr %s608, 256
      %s610 = smul.addr %s609, 4
      %s611 = scalar_lea.vmem %s9, %s610
      %p612 = pneg %p277
      %p613 = pneg %p274
      %p614 = scmp.lt.s32.totalorder %s27, 1
      %s615 = scalar_select %p614, %s27, 1
      %s616 = scalar_lea.vmem %s10, %s615
      %p617 = pneg %p303
      %p618 = pneg %p300
      %p619 = scmp.lt.s32.totalorder %s27, 1
      %s620 = scalar_select %p619, %s27, 1
      %s621 = scalar_lea.vmem %s11, %s620
      %p622 = pneg %p329
      %p623 = pneg %p326
      %p624 = scmp.lt.s32.totalorder %s27, 1
      %s625 = scalar_select %p624, %s27, 1
      %s626 = scalar_lea.vmem %s12, %s625
      %p627 = pneg %p355
      %p628 = pneg %p352
      %p629 = pneg %p376
      %p630 = pneg %p373
      %p631 = pneg %p397
      %p632 = pneg %p394
      %p633 = pneg %p418
      %p634 = pneg %p415
      %p635 = pneg %p439
      %p636 = pneg %p436
      %p637 = scmp.lt.s32.totalorder %s27, 1
      %s638 = scalar_select %p637, %s27, 1
      %s639 = smul.addr %s638, 4
      %s640 = smul.addr %s639, 4
      %s641 = scalar_lea.vmem %s1, %s640
      %p642 = scmp.lt.s32.totalorder %s27, 1
      %s643 = scalar_select %p642, %s27, 1
      %s644 = scalar_lea.vmem %s2, %s643
      %p645 = scmp.lt.s32.totalorder %s27, 1
      %s646 = scalar_select %p645, %s27, 1
      %s647 = smul.addr %s646, 4
      %s648 = smul.addr %s647, 4
      %s649 = scalar_lea.vmem %s3, %s648
      %p650 = scmp.lt.s32.totalorder %s27, 1
      %s651 = scalar_select %p650, %s27, 1
      %s652 = scalar_lea.vmem %s4, %s651
      %p653 = scmp.lt.s32.totalorder %s27, 1
      %s654 = scalar_select %p653, %s27, 1
      %s655 = scalar_lea.vmem %s5, %s654
      %p656 = scmp.lt.s32.totalorder %s27, 1
      %s657 = scalar_select %p656, %s27, 1
      %s658 = scalar_lea.vmem %s6, %s657
      %p659 = scmp.lt.s32.totalorder %s27, 1
      %s660 = scalar_select %p659, %s27, 1
      %s661 = smul.addr %s660, 64
      %s662 = smul.addr %s661, 4
      %s663 = scalar_lea.vmem %s7, %s662
      %p664 = scmp.lt.s32.totalorder %s27, 1
      %s665 = scalar_select %p664, %s27, 1
      %s666 = smul.addr %s665, 16
      %s667 = scalar_lea.vmem %s8, %s666
      %p668 = scmp.lt.s32.totalorder %s27, 1
      %s669 = scalar_select %p668, %s27, 1
      %s670 = smul.addr %s669, 256
      %s671 = smul.addr %s670, 4
      %s672 = scalar_lea.vmem %s9, %s671
      %p673 = scmp.lt.s32.totalorder %s27, 1
      %s674 = scalar_select %p673, %s27, 1
      %s675 = scalar_lea.vmem %s10, %s674
      %p676 = scmp.lt.s32.totalorder %s27, 1
      %s677 = scalar_select %p676, %s27, 1
      %s678 = scalar_lea.vmem %s11, %s677
      %p679 = scmp.lt.s32.totalorder %s27, 1
      %s680 = scalar_select %p679, %s27, 1
      %s681 = scalar_lea.vmem %s12, %s680
      %p683 = scmp.eq.s32.totalorder %s27, 0
      // Predicated region
      $region85: #{baseline_classifier_forward.1} parent=83 // pred_check
        %p684 = pneg %p683
      $region86: #{baseline_classifier_forward.1} parent=83 // pred_check_branch
        %686 = sbr.rel (%p684) target = $region88
      $region87: #{baseline_classifier_forward.1} parent=83 // pred_region
        %v687 = vld [vmem:[%s0] sm:$0xff]
        %v688 = vld [vmem:[%s0 + $0x8] sm:$0xff]
        %vm689 = vcmask 261120
        %690 = vst.msk [vmem:[#allocation2] sm:$0xff] %vm689, %v687
        %691 = vst.msk [vmem:[#allocation2 + $0x8] sm:$0xff] %vm689, %v688
      $region88: #{baseline_classifier_forward.1} parent=83 // pred_fallthru
        _
      %v692 = vld [vmem:[#allocation2] sm:$0xff]
      %v693 = vld [vmem:[#allocation2 + $0x8] sm:$0xff]
      %v694 = vlaneseq
      %v695 = vshrl.u32 %v694, 7
      %v696 = vlaneseq
      %v697 = vand.u32 %v696, 127
      %vm698 = vcmp.gt.s32.totalorder %v697, %v695
      %v699 = vsel %vm698, -1e+30, 0.0
      %v700 = vpack.c.bf16 %v692, %v692
      %v701 = vpack.c.bf16 %v693, %v693
      %v702 = vld [vmem:[%s641] sm:$0xf]
      %v703 = vld [vmem:[%s641 + $0x4] sm:$0xf]
      %v704 = vld [vmem:[%s641 + $0x8] sm:$0xf]
      %v705 = vld [vmem:[%s641 + $0xc] sm:$0xf]
      %v706 = vld [vmem:[%s644] sm:$0x1]
      %v708 = vlaneseq
      %v709 = vshrl.u32 %v708, 7
      %v710 = vsub.s32 0, %v709
      %v711 = vrot.slane %v706, %v710
      %v715 = vunpack.c.l.b16 %v700
      %v716 = vunpack.c.l.b16 %v701
      %v717 = vpack.c.b16 %v716, %v715
      %v722 = vunpack.c.l.b16 %v702
      %v723 = vunpack.c.l.b16 %v703
      %v724 = vunpack.c.l.b16 %v704
      %v725 = vunpack.c.l.b16 %v705
      %v726 = vpack.c.b16 %v723, %v722
      %v727 = vpack.c.b16 %v725, %v724
      %vm730 = vcmask 261120
      %v732 = vsel %vm730, %v717, 0
      %734 = vmatprep.subr.bf16.mxu0 0
      %735 = vmatpush1.bf16.msra.mxu0 0
      %736 = vmatprep.subr.bf16.mxu0 0
      %737 = vmatpush1.bf16.msra.mxu0 0
      %738 = vmatprep.subr.bf16.mxu0 0
      %739 = vmatpush1.bf16.msra.mxu0 0
      %740 = vmatprep.subr.bf16.mxu0 0
      %741 = vmatpush1.bf16.msra.mxu0 0
      %742 = vmatprep.subr.bf16.mxu0 0
      %743 = vmatpush1.bf16.msra.mxu0 0
      %744 = vmatprep.subr.bf16.mxu0 0
      %745 = vmatpush1.bf16.msra.mxu0 0
      %746 = vmatprep.subr.bf16.mxu0 0
      %747 = vmatpush1.bf16.msra.mxu0 %v727
      %748 = vmatprep.subr.bf16.mxu0 0
      %749 = vmatpush1.bf16.msra.mxu0 %v726
      %750 = vmatprep.subr.bf16.mxu0 0
      %751 = vmatpush2.bf16.msra.mxu0 0
      %752 = vmatprep.subr.bf16.mxu0 0
      %753 = vmatpush2.bf16.msra.mxu0 0
      %754 = vmatprep.subr.bf16.mxu0 0
      %755 = vmatpush2.bf16.msra.mxu0 0
      %756 = vmatprep.subr.bf16.mxu0 0
      %757 = vmatpush2.bf16.msra.mxu0 0
      %758 = vmatprep.subr.bf16.mxu0 0
      %759 = vmatpush2.bf16.msra.mxu0 0
      %760 = vmatprep.subr.bf16.mxu0 0
      %761 = vmatpush2.bf16.msra.mxu0 0
      %762 = vmatprep.subr.bf16.mxu0 0
      %763 = vmatpush2.bf16.msra.mxu0 0
      %764 = vmatprep.subr.bf16.mxu0 0
      %765 = vmatpush2.bf16.msra.mxu0 0
      %766 = vmatprep.mubr.bf16.mxu0 0
      %767 = vmatmul.mubr.bf16.gmra.mxu0 %v732
      %v768 = vpop.f32.mrf.mxu0
      %v769 = vadd.f32 %v711, %v768
      %v770 = vpop.f32.mrf.mxu0
      %v771 = vpop.f32.mrf.mxu0
      %v772 = vadd.f32 %v711, %v771
      %v773 = vpop.f32.mrf.mxu0
      %774 = vdwg.mxu0
      %v775 = vpack.c.bf16 %v769, %v769
      %v776 = vpack.c.bf16 %v772, %v772
      %778 = vrot.lane.b32.xlu0 %v775, 96
      %v779 = vpop.permute.xlu0 %778
      %vm780 = vcmask 64512
      %v782 = vsel %vm780, %v775, 0
      %v785 = vsel %vm780, %v779, 0
      %787 = vmatprep.subr.bf16.mxu0 0
      %788 = vmatpush1.bf16.xpose.msra.mxu0 0
      %789 = vmatprep.subr.bf16.mxu0 0
      %790 = vmatpush1.bf16.xpose.msra.mxu0 0
      %791 = vmatprep.subr.bf16.mxu0 0
      %792 = vmatpush1.bf16.xpose.msra.mxu0 0
      %793 = vmatprep.subr.bf16.mxu0 0
      %794 = vmatpush1.bf16.xpose.msra.mxu0 0
      %795 = vmatprep.subr.bf16.mxu0 0
      %796 = vmatpush1.bf16.xpose.msra.mxu0 0
      %797 = vmatprep.subr.bf16.mxu0 0
      %798 = vmatpush1.bf16.xpose.msra.mxu0 0
      %799 = vmatprep.subr.bf16.mxu0 0
      %800 = vmatpush1.bf16.xpose.msra.mxu0 0
      %801 = vmatprep.subr.bf16.mxu0 0
      %802 = vmatpush1.bf16.xpose.msra.mxu0 %v785
      %803 = vmatprep.subr.bf16.mxu0 0
      %804 = vmatpush2.bf16.xpose.msra.mxu0 0
      %805 = vmatprep.subr.bf16.mxu0 0
      %806 = vmatpush2.bf16.xpose.msra.mxu0 0
      %807 = vmatprep.subr.bf16.mxu0 0
      %808 = vmatpush2.bf16.xpose.msra.mxu0 0
      %809 = vmatprep.subr.bf16.mxu0 0
      %810 = vmatpush2.bf16.xpose.msra.mxu0 0
      %811 = vmatprep.subr.bf16.mxu0 0
      %812 = vmatpush2.bf16.xpose.msra.mxu0 0
      %813 = vmatprep.subr.bf16.mxu0 0
      %814 = vmatpush2.bf16.xpose.msra.mxu0 0
      %815 = vmatprep.subr.bf16.mxu0 0
      %816 = vmatpush2.bf16.xpose.msra.mxu0 0
      %817 = vmatprep.subr.bf16.mxu0 0
      %818 = vmatpush2.bf16.xpose.msra.mxu0 0
      %819 = vmatprep.mubr.bf16.mxu0 0
      %820 = vmatmul.mubr.bf16.gmra.mxu0 %v782
      %v821 = vpop.f32.mrf.mxu0
      %v822 = vadd.f32 0.0, %v821
      %v823 = vpop.f32.mrf.mxu0
      %v824 = vpop.f32.mrf.mxu0
      %v825 = vpop.f32.mrf.mxu0
      %826 = vdwg.mxu0
      %828 = vrot.lane.b32.xlu0 %v776, 96
      %v829 = vpop.permute.xlu0 %828
      %v831 = vsel %vm780, %v776, 0
      %v834 = vsel %vm780, %v829, 0
      %836 = vmatprep.subr.bf16.mxu0 0
      %837 = vmatpush1.bf16.xpose.msra.mxu0 0
      %838 = vmatprep.subr.bf16.mxu0 0
      %839 = vmatpush1.bf16.xpose.msra.mxu0 0
      %840 = vmatprep.subr.bf16.mxu0 0
      %841 = vmatpush1.bf16.xpose.msra.mxu0 0
      %842 = vmatprep.subr.bf16.mxu0 0
      %843 = vmatpush1.bf16.xpose.msra.mxu0 0
      %844 = vmatprep.subr.bf16.mxu0 0
      %845 = vmatpush1.bf16.xpose.msra.mxu0 0
      %846 = vmatprep.subr.bf16.mxu0 0
      %847 = vmatpush1.bf16.xpose.msra.mxu0 0
      %848 = vmatprep.subr.bf16.mxu0 0
      %849 = vmatpush1.bf16.xpose.msra.mxu0 0
      %850 = vmatprep.subr.bf16.mxu0 0
      %851 = vmatpush1.bf16.xpose.msra.mxu0 %v834
      %852 = vmatprep.subr.bf16.mxu0 0
      %853 = vmatpush2.bf16.xpose.msra.mxu0 0
      %854 = vmatprep.subr.bf16.mxu0 0
      %855 = vmatpush2.bf16.xpose.msra.mxu0 0
      %856 = vmatprep.subr.bf16.mxu0 0
      %857 = vmatpush2.bf16.xpose.msra.mxu0 0
      %858 = vmatprep.subr.bf16.mxu0 0
      %859 = vmatpush2.bf16.xpose.msra.mxu0 0
      %860 = vmatprep.subr.bf16.mxu0 0
      %861 = vmatpush2.bf16.xpose.msra.mxu0 0
      %862 = vmatprep.subr.bf16.mxu0 0
      %863 = vmatpush2.bf16.xpose.msra.mxu0 0
      %864 = vmatprep.subr.bf16.mxu0 0
      %865 = vmatpush2.bf16.xpose.msra.mxu0 0
      %866 = vmatprep.subr.bf16.mxu0 0
      %867 = vmatpush2.bf16.xpose.msra.mxu0 0
      %868 = vmatprep.mubr.bf16.mxu0 0
      %869 = vmatmul.mubr.bf16.gmra.mxu0 %v831
      %v870 = vpop.f32.mrf.mxu0
      %v871 = vadd.f32 0.0, %v870
      %v872 = vpop.f32.mrf.mxu0
      %v873 = vpop.f32.mrf.mxu0
      %v874 = vpop.f32.mrf.mxu0
      %875 = vdwg.mxu0
      %v876 = vmul.f32 %v822, 0.35355338
      %v877 = vmul.f32 %v871, 0.35355338
      %v878 = vadd.f32 %v876, %v699
      %v879 = vadd.f32 %v877, %v699
      %v880 = vsel %vm780, %v878, -inf
      %881 = vmax.xlane.f32.xlu0 %v880
      %v882 = vpop.xlane.xlu0 %881
      %v883 = vsel %vm780, %v879, -inf
      %884 = vmax.xlane.f32.xlu0 %v883
      %v885 = vpop.xlane.xlu0 %884
      %v886 = vsub.f32 %v878, %v882
      %v887 = vsub.f32 %v879, %v885
      %v888 = vmul.f32 %v886, 1.442695
      %v889 = vpow.pop %v888
      %v890 = vmul.f32 %v887, 1.442695
      %v891 = vpow.pop %v890
      %v892 = vsel %vm780, %v889, 0.0
      %893 = vadd.xlane.f32.xlu0 %v892
      %v894 = vpop.xlane.xlu0 %893
      %v895 = vsel %vm780, %v891, 0.0
      %896 = vadd.xlane.f32.xlu0 %v895
      %v897 = vpop.xlane.xlu0 %896
      %v898 = vrcp.pop %v894
      %v899 = vrcp.pop %v897
      %v900 = vmul.f32 %v889, %v898
      %v901 = vmul.f32 %v891, %v899
      %v902 = vpack.c.bf16 %v900, %v900
      %v903 = vpack.c.bf16 %v901, %v901
      %904 = vrot.lane.b32.xlu0 %v775, 64
      %v905 = vpop.permute.xlu0 %904
      %v907 = vsel %vm780, %v902, 0
      %vm909 = vcmask 1043456
      %v911 = vsel %vm909, %v905, 0
      %913 = vmatprep.subr.bf16.mxu0 0
      %914 = vmatpush1.bf16.msra.mxu0 0
      %915 = vmatprep.subr.bf16.mxu0 0
      %916 = vmatpush1.bf16.msra.mxu0 0
      %917 = vmatprep.subr.bf16.mxu0 0
      %918 = vmatpush1.bf16.msra.mxu0 0
      %919 = vmatprep.subr.bf16.mxu0 0
      %920 = vmatpush1.bf16.msra.mxu0 0
      %921 = vmatprep.subr.bf16.mxu0 0
      %922 = vmatpush1.bf16.msra.mxu0 0
      %923 = vmatprep.subr.bf16.mxu0 0
      %924 = vmatpush1.bf16.msra.mxu0 0
      %925 = vmatprep.subr.bf16.mxu0 0
      %926 = vmatpush1.bf16.msra.mxu0 0
      %927 = vmatprep.subr.bf16.mxu0 0
      %928 = vmatpush1.bf16.msra.mxu0 %v911
      %929 = vmatprep.subr.bf16.mxu0 0
      %930 = vmatpush2.bf16.msra.mxu0 0
      %931 = vmatprep.subr.bf16.mxu0 0
      %932 = vmatpush2.bf16.msra.mxu0 0
      %933 = vmatprep.subr.bf16.mxu0 0
      %934 = vmatpush2.bf16.msra.mxu0 0
      %935 = vmatprep.subr.bf16.mxu0 0
      %936 = vmatpush2.bf16.msra.mxu0 0
      %937 = vmatprep.subr.bf16.mxu0 0
      %938 = vmatpush2.bf16.msra.mxu0 0
      %939 = vmatprep.subr.bf16.mxu0 0
      %940 = vmatpush2.bf16.msra.mxu0 0
      %941 = vmatprep.subr.bf16.mxu0 0
      %942 = vmatpush2.bf16.msra.mxu0 0
      %943 = vmatprep.subr.bf16.mxu0 0
      %944 = vmatpush2.bf16.msra.mxu0 0
      %945 = vmatprep.mubr.bf16.mxu0 0
      %946 = vmatmul.mubr.bf16.gmra.mxu0 %v907
      %v947 = vpop.f32.mrf.mxu0
      %v948 = vadd.f32 0.0, %v947
      %v949 = vpop.f32.mrf.mxu0
      %v950 = vpop.f32.mrf.mxu0
      %v951 = vpop.f32.mrf.mxu0
      %952 = vdwg.mxu0
      %953 = vrot.lane.b32.xlu0 %v776, 64
      %v954 = vpop.permute.xlu0 %953
      %v956 = vsel %vm780, %v903, 0
      %v959 = vsel %vm909, %v954, 0
      %961 = vmatprep.subr.bf16.mxu0 0
      %962 = vmatpush1.bf16.msra.mxu0 0
      %963 = vmatprep.subr.bf16.mxu0 0
      %964 = vmatpush1.bf16.msra.mxu0 0
      %965 = vmatprep.subr.bf16.mxu0 0
      %966 = vmatpush1.bf16.msra.mxu0 0
      %967 = vmatprep.subr.bf16.mxu0 0
      %968 = vmatpush1.bf16.msra.mxu0 0
      %969 = vmatprep.subr.bf16.mxu0 0
      %970 = vmatpush1.bf16.msra.mxu0 0
      %971 = vmatprep.subr.bf16.mxu0 0
      %972 = vmatpush1.bf16.msra.mxu0 0
      %973 = vmatprep.subr.bf16.mxu0 0
      %974 = vmatpush1.bf16.msra.mxu0 0
      %975 = vmatprep.subr.bf16.mxu0 0
      %976 = vmatpush1.bf16.msra.mxu0 %v959
      %977 = vmatprep.subr.bf16.mxu0 0
      %978 = vmatpush2.bf16.msra.mxu0 0
      %979 = vmatprep.subr.bf16.mxu0 0
      %980 = vmatpush2.bf16.msra.mxu0 0
      %981 = vmatprep.subr.bf16.mxu0 0
      %982 = vmatpush2.bf16.msra.mxu0 0
      %983 = vmatprep.subr.bf16.mxu0 0
      %984 = vmatpush2.bf16.msra.mxu0 0
      %985 = vmatprep.subr.bf16.mxu0 0
      %986 = vmatpush2.bf16.msra.mxu0 0
      %987 = vmatprep.subr.bf16.mxu0 0
      %988 = vmatpush2.bf16.msra.mxu0 0
      %989 = vmatprep.subr.bf16.mxu0 0
      %990 = vmatpush2.bf16.msra.mxu0 0
      %991 = vmatprep.subr.bf16.mxu0 0
      %992 = vmatpush2.bf16.msra.mxu0 0
      %993 = vmatprep.mubr.bf16.mxu0 0
      %994 = vmatmul.mubr.bf16.gmra.mxu0 %v956
      %v995 = vpop.f32.mrf.mxu0
      %v996 = vadd.f32 0.0, %v995
      %v997 = vpop.f32.mrf.mxu0
      %v998 = vpop.f32.mrf.mxu0
      %v999 = vpop.f32.mrf.mxu0
      %1000 = vdwg.mxu0
      %1001 = vrot.lane.b32.xlu0 %v775, 120
      %v1002 = vpop.permute.xlu0 %1001
      %1003 = vrot.lane.b32.xlu0 %v775, 88
      %v1004 = vpop.permute.xlu0 %1003
      %v1006 = vsel %vm780, %v1002, 0
      %v1009 = vsel %vm780, %v1004, 0
      %1011 = vmatprep.subr.bf16.mxu0 0
      %1012 = vmatpush1.bf16.xpose.msra.mxu0 0
      %1013 = vmatprep.subr.bf16.mxu0 0
      %1014 = vmatpush1.bf16.xpose.msra.mxu0 0
      %1015 = vmatprep.subr.bf16.mxu0 0
      %1016 = vmatpush1.bf16.xpose.msra.mxu0 0
      %1017 = vmatprep.subr.bf16.mxu0 0
      %1018 = vmatpush1.bf16.xpose.msra.mxu0 0
      %1019 = vmatprep.subr.bf16.mxu0 0
      %1020 = vmatpush1.bf16.xpose.msra.mxu0 0
      %1021 = vmatprep.subr.bf16.mxu0 0
      %1022 = vmatpush1.bf16.xpose.msra.mxu0 0
      %1023 = vmatprep.subr.bf16.mxu0 0
      %1024 = vmatpush1.bf16.xpose.msra.mxu0 0
      %1025 = vmatprep.subr.bf16.mxu0 0
      %1026 = vmatpush1.bf16.xpose.msra.mxu0 %v1009
      %1027 = vmatprep.subr.bf16.mxu0 0
      %1028 = vmatpush2.bf16.xpose.msra.mxu0 0
      %1029 = vmatprep.subr.bf16.mxu0 0
      %1030 = vmatpush2.bf16.xpose.msra.mxu0 0
      %1031 = vmatprep.subr.bf16.mxu0 0
      %1032 = vmatpush2.bf16.xpose.msra.mxu0 0
      %1033 = vmatprep.subr.bf16.mxu0 0
      %1034 = vmatpush2.bf16.xpose.msra.mxu0 0
      %1035 = vmatprep.subr.bf16.mxu0 0
      %1036 = vmatpush2.bf16.xpose.msra.mxu0 0
      %1037 = vmatprep.subr.bf16.mxu0 0
      %1038 = vmatpush2.bf16.xpose.msra.mxu0 0
      %1039 = vmatprep.subr.bf16.mxu0 0
      %1040 = vmatpush2.bf16.xpose.msra.mxu0 0
      %1041 = vmatprep.subr.bf16.mxu0 0
      %1042 = vmatpush2.bf16.xpose.msra.mxu0 0
      %1043 = vmatprep.mubr.bf16.mxu0 0
      %1044 = vmatmul.mubr.bf16.gmra.mxu0 %v1006
      %v1045 = vpop.f32.mrf.mxu0
      %v1046 = vadd.f32 0.0, %v1045
      %v1047 = vpop.f32.mrf.mxu0
      %v1048 = vpop.f32.mrf.mxu0
      %v1049 = vpop.f32.mrf.mxu0
      %1050 = vdwg.mxu0
      %1051 = vrot.lane.b32.xlu0 %v776, 120
      %v1052 = vpop.permute.xlu0 %1051
      %1053 = vrot.lane.b32.xlu0 %v776, 88
      %v1054 = vpop.permute.xlu0 %1053
      %v1056 = vsel %vm780, %v1052, 0
      %v1059 = vsel %vm780, %v1054, 0
      %1061 = vmatprep.subr.bf16.mxu0 0
      %1062 = vmatpush1.bf16.xpose.msra.mxu0 0
      %1063 = vmatprep.subr.bf16.mxu0 0
      %1064 = vmatpush1.bf16.xpose.msra.mxu0 0
      %1065 = vmatprep.subr.bf16.mxu0 0
      %1066 = vmatpush1.bf16.xpose.msra.mxu0 0
      %1067 = vmatprep.subr.bf16.mxu0 0
      %1068 = vmatpush1.bf16.xpose.msra.mxu0 0
      %1069 = vmatprep.subr.bf16.mxu0 0
      %1070 = vmatpush1.bf16.xpose.msra.mxu0 0
      %1071 = vmatprep.subr.bf16.mxu0 0
      %1072 = vmatpush1.bf16.xpose.msra.mxu0 0
      %1073 = vmatprep.subr.bf16.mxu0 0
      %1074 = vmatpush1.bf16.xpose.msra.mxu0 0
      %1075 = vmatprep.subr.bf16.mxu0 0
      %1076 = vmatpush1.bf16.xpose.msra.mxu0 %v1059
      %1077 = vmatprep.subr.bf16.mxu0 0
      %1078 = vmatpush2.bf16.xpose.msra.mxu0 0
      %1079 = vmatprep.subr.bf16.mxu0 0
      %1080 = vmatpush2.bf16.xpose.msra.mxu0 0
      %1081 = vmatprep.subr.bf16.mxu0 0
      %1082 = vmatpush2.bf16.xpose.msra.mxu0 0
      %1083 = vmatprep.subr.bf16.mxu0 0
      %1084 = vmatpush2.bf16.xpose.msra.mxu0 0
      %1085 = vmatprep.subr.bf16.mxu0 0
      %1086 = vmatpush2.bf16.xpose.msra.mxu0 0
      %1087 = vmatprep.subr.bf16.mxu0 0
      %1088 = vmatpush2.bf16.xpose.msra.mxu0 0
      %1089 = vmatprep.subr.bf16.mxu0 0
      %1090 = vmatpush2.bf16.xpose.msra.mxu0 0
      %1091 = vmatprep.subr.bf16.mxu0 0
      %1092 = vmatpush2.bf16.xpose.msra.mxu0 0
      %1093 = vmatprep.mubr.bf16.mxu0 0
      %1094 = vmatmul.mubr.bf16.gmra.mxu0 %v1056
      %v1095 = vpop.f32.mrf.mxu0
      %v1096 = vadd.f32 0.0, %v1095
      %v1097 = vpop.f32.mrf.mxu0
      %v1098 = vpop.f32.mrf.mxu0
      %v1099 = vpop.f32.mrf.mxu0
      %1100 = vdwg.mxu0
      %v1101 = vmul.f32 %v1046, 0.35355338
      %v1102 = vmul.f32 %v1096, 0.35355338
      %v1103 = vadd.f32 %v1101, %v699
      %v1104 = vadd.f32 %v1102, %v699
      %v1105 = vsel %vm780, %v1103, -inf
      %1106 = vmax.xlane.f32.xlu0 %v1105
      %v1107 = vpop.xlane.xlu0 %1106
      %v1108 = vsel %vm780, %v1104, -inf
      %1109 = vmax.xlane.f32.xlu0 %v1108
      %v1110 = vpop.xlane.xlu0 %1109
      %v1111 = vsub.f32 %v1103, %v1107
      %v1112 = vsub.f32 %v1104, %v1110
      %v1113 = vmul.f32 %v1111, 1.442695
      %v1114 = vpow.pop %v1113
      %v1115 = vmul.f32 %v1112, 1.442695
      %v1116 = vpow.pop %v1115
      %v1117 = vsel %vm780, %v1114, 0.0
      %1118 = vadd.xlane.f32.xlu0 %v1117
      %v1119 = vpop.xlane.xlu0 %1118
      %v1120 = vsel %vm780, %v1116, 0.0
      %1121 = vadd.xlane.f32.xlu0 %v1120
      %v1122 = vpop.xlane.xlu0 %1121
      %v1123 = vrcp.pop %v1119
      %v1124 = vrcp.pop %v1122
      %v1125 = vmul.f32 %v1114, %v1123
      %v1126 = vmul.f32 %v1116, %v1124
      %v1127 = vpack.c.bf16 %v1125, %v1125
      %v1128 = vpack.c.bf16 %v1126, %v1126
      %1129 = vrot.lane.b32.xlu0 %v775, 56
      %v1130 = vpop.permute.xlu0 %1129
      %v1132 = vsel %vm780, %v1127, 0
      %v1135 = vsel %vm909, %v1130, 0
      %1137 = vmatprep.subr.bf16.mxu0 0
      %1138 = vmatpush1.bf16.msra.mxu0 0
      %1139 = vmatprep.subr.bf16.mxu0 0
      %1140 = vmatpush1.bf16.msra.mxu0 0
      %1141 = vmatprep.subr.bf16.mxu0 0
      %1142 = vmatpush1.bf16.msra.mxu0 0
      %1143 = vmatprep.subr.bf16.mxu0 0
      %1144 = vmatpush1.bf16.msra.mxu0 0
      %1145 = vmatprep.subr.bf16.mxu0 0
      %1146 = vmatpush1.bf16.msra.mxu0 0
      %1147 = vmatprep.subr.bf16.mxu0 0
      %1148 = vmatpush1.bf16.msra.mxu0 0
      %1149 = vmatprep.subr.bf16.mxu0 0
      %1150 = vmatpush1.bf16.msra.mxu0 0
      %1151 = vmatprep.subr.bf16.mxu0 0
      %1152 = vmatpush1.bf16.msra.mxu0 %v1135
      %1153 = vmatprep.subr.bf16.mxu0 0
      %1154 = vmatpush2.bf16.msra.mxu0 0
      %1155 = vmatprep.subr.bf16.mxu0 0
      %1156 = vmatpush2.bf16.msra.mxu0 0
      %1157 = vmatprep.subr.bf16.mxu0 0
      %1158 = vmatpush2.bf16.msra.mxu0 0
      %1159 = vmatprep.subr.bf16.mxu0 0
      %1160 = vmatpush2.bf16.msra.mxu0 0
      %1161 = vmatprep.subr.bf16.mxu0 0
      %1162 = vmatpush2.bf16.msra.mxu0 0
      %1163 = vmatprep.subr.bf16.mxu0 0
      %1164 = vmatpush2.bf16.msra.mxu0 0
      %1165 = vmatprep.subr.bf16.mxu0 0
      %1166 = vmatpush2.bf16.msra.mxu0 0
      %1167 = vmatprep.subr.bf16.mxu0 0
      %1168 = vmatpush2.bf16.msra.mxu0 0
      %1169 = vmatprep.mubr.bf16.mxu0 0
      %1170 = vmatmul.mubr.bf16.gmra.mxu0 %v1132
      %v1171 = vpop.f32.mrf.mxu0
      %v1172 = vadd.f32 0.0, %v1171
      %v1173 = vpop.f32.mrf.mxu0
      %v1174 = vpop.f32.mrf.mxu0
      %v1175 = vpop.f32.mrf.mxu0
      %1176 = vdwg.mxu0
      %1177 = vrot.lane.b32.xlu0 %v776, 56
      %v1178 = vpop.permute.xlu0 %1177
      %v1180 = vsel %vm780, %v1128, 0
      %v1183 = vsel %vm909, %v1178, 0
      %1185 = vmatprep.subr.bf16.mxu0 0
      %1186 = vmatpush1.bf16.msra.mxu0 0
      %1187 = vmatprep.subr.bf16.mxu0 0
      %1188 = vmatpush1.bf16.msra.mxu0 0
      %1189 = vmatprep.subr.bf16.mxu0 0
      %1190 = vmatpush1.bf16.msra.mxu0 0
      %1191 = vmatprep.subr.bf16.mxu0 0
      %1192 = vmatpush1.bf16.msra.mxu0 0
      %1193 = vmatprep.subr.bf16.mxu0 0
      %1194 = vmatpush1.bf16.msra.mxu0 0
      %1195 = vmatprep.subr.bf16.mxu0 0
      %1196 = vmatpush1.bf16.msra.mxu0 0
      %1197 = vmatprep.subr.bf16.mxu0 0
      %1198 = vmatpush1.bf16.msra.mxu0 0
      %1199 = vmatprep.subr.bf16.mxu0 0
      %1200 = vmatpush1.bf16.msra.mxu0 %v1183
      %1201 = vmatprep.subr.bf16.mxu0 0
      %1202 = vmatpush2.bf16.msra.mxu0 0
      %1203 = vmatprep.subr.bf16.mxu0 0
      %1204 = vmatpush2.bf16.msra.mxu0 0
      %1205 = vmatprep.subr.bf16.mxu0 0
      %1206 = vmatpush2.bf16.msra.mxu0 0
      %1207 = vmatprep.subr.bf16.mxu0 0
      %1208 = vmatpush2.bf16.msra.mxu0 0
      %1209 = vmatprep.subr.bf16.mxu0 0
      %1210 = vmatpush2.bf16.msra.mxu0 0
      %1211 = vmatprep.subr.bf16.mxu0 0
      %1212 = vmatpush2.bf16.msra.mxu0 0
      %1213 = vmatprep.subr.bf16.mxu0 0
      %1214 = vmatpush2.bf16.msra.mxu0 0
      %1215 = vmatprep.subr.bf16.mxu0 0
      %1216 = vmatpush2.bf16.msra.mxu0 0
      %1217 = vmatprep.mubr.bf16.mxu0 0
      %1218 = vmatmul.mubr.bf16.gmra.mxu0 %v1180
      %v1219 = vpop.f32.mrf.mxu0
      %v1220 = vadd.f32 0.0, %v1219
      %v1221 = vpop.f32.mrf.mxu0
      %v1222 = vpop.f32.mrf.mxu0
      %v1223 = vpop.f32.mrf.mxu0
      %1224 = vdwg.mxu0
      %1225 = vrot.lane.b32.xlu0 %v775, 112
      %v1226 = vpop.permute.xlu0 %1225
      %1227 = vrot.lane.b32.xlu0 %v775, 80
      %v1228 = vpop.permute.xlu0 %1227
      %v1230 = vsel %vm780, %v1226, 0
      %v1233 = vsel %vm780, %v1228, 0
      %1235 = vmatprep.subr.bf16.mxu0 0
      %1236 = vmatpush1.bf16.xpose.msra.mxu0 0
      %1237 = vmatprep.subr.bf16.mxu0 0
      %1238 = vmatpush1.bf16.xpose.msra.mxu0 0
      %1239 = vmatprep.subr.bf16.mxu0 0
      %1240 = vmatpush1.bf16.xpose.msra.mxu0 0
      %1241 = vmatprep.subr.bf16.mxu0 0
      %1242 = vmatpush1.bf16.xpose.msra.mxu0 0
      %1243 = vmatprep.subr.bf16.mxu0 0
      %1244 = vmatpush1.bf16.xpose.msra.mxu0 0
      %1245 = vmatprep.subr.bf16.mxu0 0
      %1246 = vmatpush1.bf16.xpose.msra.mxu0 0
      %1247 = vmatprep.subr.bf16.mxu0 0
      %1248 = vmatpush1.bf16.xpose.msra.mxu0 0
      %1249 = vmatprep.subr.bf16.mxu0 0
      %1250 = vmatpush1.bf16.xpose.msra.mxu0 %v1233
      %1251 = vmatprep.subr.bf16.mxu0 0
      %1252 = vmatpush2.bf16.xpose.msra.mxu0 0
      %1253 = vmatprep.subr.bf16.mxu0 0
      %1254 = vmatpush2.bf16.xpose.msra.mxu0 0
      %1255 = vmatprep.subr.bf16.mxu0 0
      %1256 = vmatpush2.bf16.xpose.msra.mxu0 0
      %1257 = vmatprep.subr.bf16.mxu0 0
      %1258 = vmatpush2.bf16.xpose.msra.mxu0 0
      %1259 = vmatprep.subr.bf16.mxu0 0
      %1260 = vmatpush2.bf16.xpose.msra.mxu0 0
      %1261 = vmatprep.subr.bf16.mxu0 0
      %1262 = vmatpush2.bf16.xpose.msra.mxu0 0
      %1263 = vmatprep.subr.bf16.mxu0 0
      %1264 = vmatpush2.bf16.xpose.msra.mxu0 0
      %1265 = vmatprep.subr.bf16.mxu0 0
      %1266 = vmatpush2.bf16.xpose.msra.mxu0 0
      %1267 = vmatprep.mubr.bf16.mxu0 0
      %1268 = vmatmul.mubr.bf16.gmra.mxu0 %v1230
      %v1269 = vpop.f32.mrf.mxu0
      %v1270 = vadd.f32 0.0, %v1269
      %v1271 = vpop.f32.mrf.mxu0
      %v1272 = vpop.f32.mrf.mxu0
      %v1273 = vpop.f32.mrf.mxu0
      %1274 = vdwg.mxu0
      %1275 = vrot.lane.b32.xlu0 %v776, 112
      %v1276 = vpop.permute.xlu0 %1275
      %1277 = vrot.lane.b32.xlu0 %v776, 80
      %v1278 = vpop.permute.xlu0 %1277
      %v1280 = vsel %vm780, %v1276, 0
      %v1283 = vsel %vm780, %v1278, 0
      %1285 = vmatprep.subr.bf16.mxu0 0
      %1286 = vmatpush1.bf16.xpose.msra.mxu0 0
      %1287 = vmatprep.subr.bf16.mxu0 0
      %1288 = vmatpush1.bf16.xpose.msra.mxu0 0
      %1289 = vmatprep.subr.bf16.mxu0 0
      %1290 = vmatpush1.bf16.xpose.msra.mxu0 0
      %1291 = vmatprep.subr.bf16.mxu0 0
      %1292 = vmatpush1.bf16.xpose.msra.mxu0 0
      %1293 = vmatprep.subr.bf16.mxu0 0
      %1294 = vmatpush1.bf16.xpose.msra.mxu0 0
      %1295 = vmatprep.subr.bf16.mxu0 0
      %1296 = vmatpush1.bf16.xpose.msra.mxu0 0
      %1297 = vmatprep.subr.bf16.mxu0 0
      %1298 = vmatpush1.bf16.xpose.msra.mxu0 0
      %1299 = vmatprep.subr.bf16.mxu0 0
      %1300 = vmatpush1.bf16.xpose.msra.mxu0 %v1283
      %1301 = vmatprep.subr.bf16.mxu0 0
      %1302 = vmatpush2.bf16.xpose.msra.mxu0 0
      %1303 = vmatprep.subr.bf16.mxu0 0
      %1304 = vmatpush2.bf16.xpose.msra.mxu0 0
      %1305 = vmatprep.subr.bf16.mxu0 0
      %1306 = vmatpush2.bf16.xpose.msra.mxu0 0
      %1307 = vmatprep.subr.bf16.mxu0 0
      %1308 = vmatpush2.bf16.xpose.msra.mxu0 0
      %1309 = vmatprep.subr.bf16.mxu0 0
      %1310 = vmatpush2.bf16.xpose.msra.mxu0 0
      %1311 = vmatprep.subr.bf16.mxu0 0
      %1312 = vmatpush2.bf16.xpose.msra.mxu0 0
      %1313 = vmatprep.subr.bf16.mxu0 0
      %1314 = vmatpush2.bf16.xpose.msra.mxu0 0
      %1315 = vmatprep.subr.bf16.mxu0 0
      %1316 = vmatpush2.bf16.xpose.msra.mxu0 0
      %1317 = vmatprep.mubr.bf16.mxu0 0
      %1318 = vmatmul.mubr.bf16.gmra.mxu0 %v1280
      %v1319 = vpop.f32.mrf.mxu0
      %v1320 = vadd.f32 0.0, %v1319
      %v1321 = vpop.f32.mrf.mxu0
      %v1322 = vpop.f32.mrf.mxu0
      %v1323 = vpop.f32.mrf.mxu0
      %1324 = vdwg.mxu0
      %v1325 = vmul.f32 %v1270, 0.35355338
      %v1326 = vmul.f32 %v1320, 0.35355338
      %v1327 = vadd.f32 %v1325, %v699
      %v1328 = vadd.f32 %v1326, %v699
      %v1329 = vsel %vm780, %v1327, -inf
      %1330 = vmax.xlane.f32.xlu0 %v1329
      %v1331 = vpop.xlane.xlu0 %1330
      %v1332 = vsel %vm780, %v1328, -inf
      %1333 = vmax.xlane.f32.xlu0 %v1332
      %v1334 = vpop.xlane.xlu0 %1333
      %v1335 = vsub.f32 %v1327, %v1331
      %v1336 = vsub.f32 %v1328, %v1334
      %v1337 = vmul.f32 %v1335, 1.442695
      %v1338 = vpow.pop %v1337
      %v1339 = vmul.f32 %v1336, 1.442695
      %v1340 = vpow.pop %v1339
      %v1341 = vsel %vm780, %v1338, 0.0
      %1342 = vadd.xlane.f32.xlu0 %v1341
      %v1343 = vpop.xlane.xlu0 %1342
      %v1344 = vsel %vm780, %v1340, 0.0
      %1345 = vadd.xlane.f32.xlu0 %v1344
      %v1346 = vpop.xlane.xlu0 %1345
      %v1347 = vrcp.pop %v1343
      %v1348 = vrcp.pop %v1346
      %v1349 = vmul.f32 %v1338, %v1347
      %v1350 = vmul.f32 %v1340, %v1348
      %v1351 = vpack.c.bf16 %v1349, %v1349
      %v1352 = vpack.c.bf16 %v1350, %v1350
      %1353 = vrot.lane.b32.xlu0 %v775, 48
      %v1354 = vpop.permute.xlu0 %1353
      %v1356 = vsel %vm780, %v1351, 0
      %v1359 = vsel %vm909, %v1354, 0
      %1361 = vmatprep.subr.bf16.mxu0 0
      %1362 = vmatpush1.bf16.msra.mxu0 0
      %1363 = vmatprep.subr.bf16.mxu0 0
      %1364 = vmatpush1.bf16.msra.mxu0 0
      %1365 = vmatprep.subr.bf16.mxu0 0
      %1366 = vmatpush1.bf16.msra.mxu0 0
      %1367 = vmatprep.subr.bf16.mxu0 0
      %1368 = vmatpush1.bf16.msra.mxu0 0
      %1369 = vmatprep.subr.bf16.mxu0 0
      %1370 = vmatpush1.bf16.msra.mxu0 0
      %1371 = vmatprep.subr.bf16.mxu0 0
      %1372 = vmatpush1.bf16.msra.mxu0 0
      %1373 = vmatprep.subr.bf16.mxu0 0
      %1374 = vmatpush1.bf16.msra.mxu0 0
      %1375 = vmatprep.subr.bf16.mxu0 0
      %1376 = vmatpush1.bf16.msra.mxu0 %v1359
      %1377 = vmatprep.subr.bf16.mxu0 0
      %1378 = vmatpush2.bf16.msra.mxu0 0
      %1379 = vmatprep.subr.bf16.mxu0 0
      %1380 = vmatpush2.bf16.msra.mxu0 0
      %1381 = vmatprep.subr.bf16.mxu0 0
      %1382 = vmatpush2.bf16.msra.mxu0 0
      %1383 = vmatprep.subr.bf16.mxu0 0
      %1384 = vmatpush2.bf16.msra.mxu0 0
      %1385 = vmatprep.subr.bf16.mxu0 0
      %1386 = vmatpush2.bf16.msra.mxu0 0
      %1387 = vmatprep.subr.bf16.mxu0 0
      %1388 = vmatpush2.bf16.msra.mxu0 0
      %1389 = vmatprep.subr.bf16.mxu0 0
      %1390 = vmatpush2.bf16.msra.mxu0 0
      %1391 = vmatprep.subr.bf16.mxu0 0
      %1392 = vmatpush2.bf16.msra.mxu0 0
      %1393 = vmatprep.mubr.bf16.mxu0 0
      %1394 = vmatmul.mubr.bf16.gmra.mxu0 %v1356
      %v1395 = vpop.f32.mrf.mxu0
      %v1396 = vadd.f32 0.0, %v1395
      %v1397 = vpop.f32.mrf.mxu0
      %v1398 = vpop.f32.mrf.mxu0
      %v1399 = vpop.f32.mrf.mxu0
      %1400 = vdwg.mxu0
      %1401 = vrot.lane.b32.xlu0 %v776, 48
      %v1402 = vpop.permute.xlu0 %1401
      %v1404 = vsel %vm780, %v1352, 0
      %v1407 = vsel %vm909, %v1402, 0
      %1409 = vmatprep.subr.bf16.mxu0 0
      %1410 = vmatpush1.bf16.msra.mxu0 0
      %1411 = vmatprep.subr.bf16.mxu0 0
      %1412 = vmatpush1.bf16.msra.mxu0 0
      %1413 = vmatprep.subr.bf16.mxu0 0
      %1414 = vmatpush1.bf16.msra.mxu0 0
      %1415 = vmatprep.subr.bf16.mxu0 0
      %1416 = vmatpush1.bf16.msra.mxu0 0
      %1417 = vmatprep.subr.bf16.mxu0 0
      %1418 = vmatpush1.bf16.msra.mxu0 0
      %1419 = vmatprep.subr.bf16.mxu0 0
      %1420 = vmatpush1.bf16.msra.mxu0 0
      %1421 = vmatprep.subr.bf16.mxu0 0
      %1422 = vmatpush1.bf16.msra.mxu0 0
      %1423 = vmatprep.subr.bf16.mxu0 0
      %1424 = vmatpush1.bf16.msra.mxu0 %v1407
      %1425 = vmatprep.subr.bf16.mxu0 0
      %1426 = vmatpush2.bf16.msra.mxu0 0
      %1427 = vmatprep.subr.bf16.mxu0 0
      %1428 = vmatpush2.bf16.msra.mxu0 0
      %1429 = vmatprep.subr.bf16.mxu0 0
      %1430 = vmatpush2.bf16.msra.mxu0 0
      %1431 = vmatprep.subr.bf16.mxu0 0
      %1432 = vmatpush2.bf16.msra.mxu0 0
      %1433 = vmatprep.subr.bf16.mxu0 0
      %1434 = vmatpush2.bf16.msra.mxu0 0
      %1435 = vmatprep.subr.bf16.mxu0 0
      %1436 = vmatpush2.bf16.msra.mxu0 0
      %1437 = vmatprep.subr.bf16.mxu0 0
      %1438 = vmatpush2.bf16.msra.mxu0 0
      %1439 = vmatprep.subr.bf16.mxu0 0
      %1440 = vmatpush2.bf16.msra.mxu0 0
      %1441 = vmatprep.mubr.bf16.mxu0 0
      %1442 = vmatmul.mubr.bf16.gmra.mxu0 %v1404
      %v1443 = vpop.f32.mrf.mxu0
      %v1444 = vadd.f32 0.0, %v1443
      %v1445 = vpop.f32.mrf.mxu0
      %v1446 = vpop.f32.mrf.mxu0
      %v1447 = vpop.f32.mrf.mxu0
      %1448 = vdwg.mxu0
      %1449 = vrot.lane.b32.xlu0 %v775, 104
      %v1450 = vpop.permute.xlu0 %1449
      %1451 = vrot.lane.b32.xlu0 %v775, 72
      %v1452 = vpop.permute.xlu0 %1451
      %v1454 = vsel %vm780, %v1450, 0
      %v1457 = vsel %vm780, %v1452, 0
      %1459 = vmatprep.subr.bf16.mxu0 0
      %1460 = vmatpush1.bf16.xpose.msra.mxu0 0
      %1461 = vmatprep.subr.bf16.mxu0 0
      %1462 = vmatpush1.bf16.xpose.msra.mxu0 0
      %1463 = vmatprep.subr.bf16.mxu0 0
      %1464 = vmatpush1.bf16.xpose.msra.mxu0 0
      %1465 = vmatprep.subr.bf16.mxu0 0
      %1466 = vmatpush1.bf16.xpose.msra.mxu0 0
      %1467 = vmatprep.subr.bf16.mxu0 0
      %1468 = vmatpush1.bf16.xpose.msra.mxu0 0
      %1469 = vmatprep.subr.bf16.mxu0 0
      %1470 = vmatpush1.bf16.xpose.msra.mxu0 0
      %1471 = vmatprep.subr.bf16.mxu0 0
      %1472 = vmatpush1.bf16.xpose.msra.mxu0 0
      %1473 = vmatprep.subr.bf16.mxu0 0
      %1474 = vmatpush1.bf16.xpose.msra.mxu0 %v1457
      %1475 = vmatprep.subr.bf16.mxu0 0
      %1476 = vmatpush2.bf16.xpose.msra.mxu0 0
      %1477 = vmatprep.subr.bf16.mxu0 0
      %1478 = vmatpush2.bf16.xpose.msra.mxu0 0
      %1479 = vmatprep.subr.bf16.mxu0 0
      %1480 = vmatpush2.bf16.xpose.msra.mxu0 0
      %1481 = vmatprep.subr.bf16.mxu0 0
      %1482 = vmatpush2.bf16.xpose.msra.mxu0 0
      %1483 = vmatprep.subr.bf16.mxu0 0
      %1484 = vmatpush2.bf16.xpose.msra.mxu0 0
      %1485 = vmatprep.subr.bf16.mxu0 0
      %1486 = vmatpush2.bf16.xpose.msra.mxu0 0
      %1487 = vmatprep.subr.bf16.mxu0 0
      %1488 = vmatpush2.bf16.xpose.msra.mxu0 0
      %1489 = vmatprep.subr.bf16.mxu0 0
      %1490 = vmatpush2.bf16.xpose.msra.mxu0 0
      %1491 = vmatprep.mubr.bf16.mxu0 0
      %1492 = vmatmul.mubr.bf16.gmra.mxu0 %v1454
      %v1493 = vpop.f32.mrf.mxu0
      %v1494 = vadd.f32 0.0, %v1493
      %v1495 = vpop.f32.mrf.mxu0
      %v1496 = vpop.f32.mrf.mxu0
      %v1497 = vpop.f32.mrf.mxu0
      %1498 = vdwg.mxu0
      %1499 = vrot.lane.b32.xlu0 %v776, 104
      %v1500 = vpop.permute.xlu0 %1499
      %1501 = vrot.lane.b32.xlu0 %v776, 72
      %v1502 = vpop.permute.xlu0 %1501
      %v1504 = vsel %vm780, %v1500, 0
      %v1507 = vsel %vm780, %v1502, 0
      %1509 = vmatprep.subr.bf16.mxu0 0
      %1510 = vmatpush1.bf16.xpose.msra.mxu0 0
      %1511 = vmatprep.subr.bf16.mxu0 0
      %1512 = vmatpush1.bf16.xpose.msra.mxu0 0
      %1513 = vmatprep.subr.bf16.mxu0 0
      %1514 = vmatpush1.bf16.xpose.msra.mxu0 0
      %1515 = vmatprep.subr.bf16.mxu0 0
      %1516 = vmatpush1.bf16.xpose.msra.mxu0 0
      %1517 = vmatprep.subr.bf16.mxu0 0
      %1518 = vmatpush1.bf16.xpose.msra.mxu0 0
      %1519 = vmatprep.subr.bf16.mxu0 0
      %1520 = vmatpush1.bf16.xpose.msra.mxu0 0
      %1521 = vmatprep.subr.bf16.mxu0 0
      %1522 = vmatpush1.bf16.xpose.msra.mxu0 0
      %1523 = vmatprep.subr.bf16.mxu0 0
      %1524 = vmatpush1.bf16.xpose.msra.mxu0 %v1507
      %1525 = vmatprep.subr.bf16.mxu0 0
      %1526 = vmatpush2.bf16.xpose.msra.mxu0 0
      %1527 = vmatprep.subr.bf16.mxu0 0
      %1528 = vmatpush2.bf16.xpose.msra.mxu0 0
      %1529 = vmatprep.subr.bf16.mxu0 0
      %1530 = vmatpush2.bf16.xpose.msra.mxu0 0
      %1531 = vmatprep.subr.bf16.mxu0 0
      %1532 = vmatpush2.bf16.xpose.msra.mxu0 0
      %1533 = vmatprep.subr.bf16.mxu0 0
      %1534 = vmatpush2.bf16.xpose.msra.mxu0 0
      %1535 = vmatprep.subr.bf16.mxu0 0
      %1536 = vmatpush2.bf16.xpose.msra.mxu0 0
      %1537 = vmatprep.subr.bf16.mxu0 0
      %1538 = vmatpush2.bf16.xpose.msra.mxu0 0
      %1539 = vmatprep.subr.bf16.mxu0 0
      %1540 = vmatpush2.bf16.xpose.msra.mxu0 0
      %1541 = vmatprep.mubr.bf16.mxu0 0
      %1542 = vmatmul.mubr.bf16.gmra.mxu0 %v1504
      %v1543 = vpop.f32.mrf.mxu0
      %v1544 = vadd.f32 0.0, %v1543
      %v1545 = vpop.f32.mrf.mxu0
      %v1546 = vpop.f32.mrf.mxu0
      %v1547 = vpop.f32.mrf.mxu0
      %1548 = vdwg.mxu0
      %v1549 = vmul.f32 %v1494, 0.35355338
      %v1550 = vmul.f32 %v1544, 0.35355338
      %v1551 = vadd.f32 %v1549, %v699
      %v1552 = vadd.f32 %v1550, %v699
      %v1553 = vsel %vm780, %v1551, -inf
      %1554 = vmax.xlane.f32.xlu0 %v1553
      %v1555 = vpop.xlane.xlu0 %1554
      %v1556 = vsel %vm780, %v1552, -inf
      %1557 = vmax.xlane.f32.xlu0 %v1556
      %v1558 = vpop.xlane.xlu0 %1557
      %v1559 = vsub.f32 %v1551, %v1555
      %v1560 = vsub.f32 %v1552, %v1558
      %v1561 = vmul.f32 %v1559, 1.442695
      %v1562 = vpow.pop %v1561
      %v1563 = vmul.f32 %v1560, 1.442695
      %v1564 = vpow.pop %v1563
      %v1565 = vsel %vm780, %v1562, 0.0
      %1566 = vadd.xlane.f32.xlu0 %v1565
      %v1567 = vpop.xlane.xlu0 %1566
      %v1568 = vsel %vm780, %v1564, 0.0
      %1569 = vadd.xlane.f32.xlu0 %v1568
      %v1570 = vpop.xlane.xlu0 %1569
      %v1571 = vrcp.pop %v1567
      %v1572 = vrcp.pop %v1570
      %v1573 = vmul.f32 %v1562, %v1571
      %v1574 = vmul.f32 %v1564, %v1572
      %v1575 = vpack.c.bf16 %v1573, %v1573
      %v1576 = vpack.c.bf16 %v1574, %v1574
      %1577 = vrot.lane.b32.xlu0 %v775, 40
      %v1578 = vpop.permute.xlu0 %1577
      %v1580 = vsel %vm780, %v1575, 0
      %v1583 = vsel %vm909, %v1578, 0
      %1585 = vmatprep.subr.bf16.mxu0 0
      %1586 = vmatpush1.bf16.msra.mxu0 0
      %1587 = vmatprep.subr.bf16.mxu0 0
      %1588 = vmatpush1.bf16.msra.mxu0 0
      %1589 = vmatprep.subr.bf16.mxu0 0
      %1590 = vmatpush1.bf16.msra.mxu0 0
      %1591 = vmatprep.subr.bf16.mxu0 0
      %1592 = vmatpush1.bf16.msra.mxu0 0
      %1593 = vmatprep.subr.bf16.mxu0 0
      %1594 = vmatpush1.bf16.msra.mxu0 0
      %1595 = vmatprep.subr.bf16.mxu0 0
      %1596 = vmatpush1.bf16.msra.mxu0 0
      %1597 = vmatprep.subr.bf16.mxu0 0
      %1598 = vmatpush1.bf16.msra.mxu0 0
      %1599 = vmatprep.subr.bf16.mxu0 0
      %1600 = vmatpush1.bf16.msra.mxu0 %v1583
      %1601 = vmatprep.subr.bf16.mxu0 0
      %1602 = vmatpush2.bf16.msra.mxu0 0
      %1603 = vmatprep.subr.bf16.mxu0 0
      %1604 = vmatpush2.bf16.msra.mxu0 0
      %1605 = vmatprep.subr.bf16.mxu0 0
      %1606 = vmatpush2.bf16.msra.mxu0 0
      %1607 = vmatprep.subr.bf16.mxu0 0
      %1608 = vmatpush2.bf16.msra.mxu0 0
      %1609 = vmatprep.subr.bf16.mxu0 0
      %1610 = vmatpush2.bf16.msra.mxu0 0
      %1611 = vmatprep.subr.bf16.mxu0 0
      %1612 = vmatpush2.bf16.msra.mxu0 0
      %1613 = vmatprep.subr.bf16.mxu0 0
      %1614 = vmatpush2.bf16.msra.mxu0 0
      %1615 = vmatprep.subr.bf16.mxu0 0
      %1616 = vmatpush2.bf16.msra.mxu0 0
      %1617 = vmatprep.mubr.bf16.mxu0 0
      %1618 = vmatmul.mubr.bf16.gmra.mxu0 %v1580
      %v1619 = vpop.f32.mrf.mxu0
      %v1620 = vadd.f32 0.0, %v1619
      %v1621 = vpop.f32.mrf.mxu0
      %v1622 = vpop.f32.mrf.mxu0
      %v1623 = vpop.f32.mrf.mxu0
      %1624 = vdwg.mxu0
      %1625 = vrot.lane.b32.xlu0 %v776, 40
      %v1626 = vpop.permute.xlu0 %1625
      %v1628 = vsel %vm780, %v1576, 0
      %v1631 = vsel %vm909, %v1626, 0
      %1633 = vmatprep.subr.bf16.mxu0 0
      %1634 = vmatpush1.bf16.msra.mxu0 0
      %1635 = vmatprep.subr.bf16.mxu0 0
      %1636 = vmatpush1.bf16.msra.mxu0 0
      %1637 = vmatprep.subr.bf16.mxu0 0
      %1638 = vmatpush1.bf16.msra.mxu0 0
      %1639 = vmatprep.subr.bf16.mxu0 0
      %1640 = vmatpush1.bf16.msra.mxu0 0
      %1641 = vmatprep.subr.bf16.mxu0 0
      %1642 = vmatpush1.bf16.msra.mxu0 0
      %1643 = vmatprep.subr.bf16.mxu0 0
      %1644 = vmatpush1.bf16.msra.mxu0 0
      %1645 = vmatprep.subr.bf16.mxu0 0
      %1646 = vmatpush1.bf16.msra.mxu0 0
      %1647 = vmatprep.subr.bf16.mxu0 0
      %1648 = vmatpush1.bf16.msra.mxu0 %v1631
      %1649 = vmatprep.subr.bf16.mxu0 0
      %1650 = vmatpush2.bf16.msra.mxu0 0
      %1651 = vmatprep.subr.bf16.mxu0 0
      %1652 = vmatpush2.bf16.msra.mxu0 0
      %1653 = vmatprep.subr.bf16.mxu0 0
      %1654 = vmatpush2.bf16.msra.mxu0 0
      %1655 = vmatprep.subr.bf16.mxu0 0
      %1656 = vmatpush2.bf16.msra.mxu0 0
      %1657 = vmatprep.subr.bf16.mxu0 0
      %1658 = vmatpush2.bf16.msra.mxu0 0
      %1659 = vmatprep.subr.bf16.mxu0 0
      %1660 = vmatpush2.bf16.msra.mxu0 0
      %1661 = vmatprep.subr.bf16.mxu0 0
      %1662 = vmatpush2.bf16.msra.mxu0 0
      %1663 = vmatprep.subr.bf16.mxu0 0
      %1664 = vmatpush2.bf16.msra.mxu0 0
      %1665 = vmatprep.mubr.bf16.mxu0 0
      %1666 = vmatmul.mubr.bf16.gmra.mxu0 %v1628
      %v1667 = vpop.f32.mrf.mxu0
      %v1668 = vadd.f32 0.0, %v1667
      %v1669 = vpop.f32.mrf.mxu0
      %v1670 = vpop.f32.mrf.mxu0
      %v1671 = vpop.f32.mrf.mxu0
      %1672 = vdwg.mxu0
      %1675 = vrot.lane.b32.xlu0 %v1172, 8
      %v1676 = vpop.permute.xlu0 %1675
      %1677 = vrot.lane.b32.xlu0 %v1220, 8
      %v1678 = vpop.permute.xlu0 %1677
      %1683 = vrot.lane.b32.xlu0 %v1396, 16
      %v1684 = vpop.permute.xlu0 %1683
      %1685 = vrot.lane.b32.xlu0 %v1444, 16
      %v1686 = vpop.permute.xlu0 %1685
      %1691 = vrot.lane.b32.xlu0 %v1620, 24
      %v1692 = vpop.permute.xlu0 %1691
      %1693 = vrot.lane.b32.xlu0 %v1668, 24
      %v1694 = vpop.permute.xlu0 %1693
      %v1697 = vsel %vm780, %v948, %v1676
      %v1698 = vsel %vm780, %v996, %v1678
      %vm1699 = vcmask 130048
      %v1700 = vsel %vm1699, %v1697, %v1684
      %v1701 = vsel %vm1699, %v1698, %v1686
      %vm1702 = vcmask 195584
      %v1703 = vsel %vm1702, %v1700, %v1692
      %v1704 = vsel %vm1702, %v1701, %v1694
      %v1705 = vpack.c.bf16 %v1703, %v1703
      %v1706 = vpack.c.bf16 %v1704, %v1704
      %v1707 = vld [vmem:[%s649] sm:$0xf]
      %v1708 = vld [vmem:[%s649 + $0x4] sm:$0xf]
      %v1709 = vld [vmem:[%s649 + $0x8] sm:$0xf]
      %v1710 = vld [vmem:[%s649 + $0xc] sm:$0xf]
      %v1711 = vld [vmem:[%s652] sm:$0x1]
      %v1713 = vlaneseq
      %v1714 = vshrl.u32 %v1713, 7
      %v1715 = vsub.s32 0, %v1714
      %v1716 = vrot.slane %v1711, %v1715
      %v1720 = vunpack.c.l.b16 %v1705
      %v1721 = vunpack.c.l.b16 %v1706
      %v1722 = vpack.c.b16 %v1721, %v1720
      %v1727 = vunpack.c.l.b16 %v1707
      %v1728 = vunpack.c.l.b16 %v1708
      %v1729 = vunpack.c.l.b16 %v1709
      %v1730 = vunpack.c.l.b16 %v1710
      %v1731 = vpack.c.b16 %v1728, %v1727
      %v1732 = vpack.c.b16 %v1730, %v1729
      %v1736 = vsel %vm730, %v1722, 0
      %1738 = vmatprep.subr.bf16.mxu0 0
      %1739 = vmatpush1.bf16.msra.mxu0 0
      %1740 = vmatprep.subr.bf16.mxu0 0
      %1741 = vmatpush1.bf16.msra.mxu0 0
      %1742 = vmatprep.subr.bf16.mxu0 0
      %1743 = vmatpush1.bf16.msra.mxu0 0
      %1744 = vmatprep.subr.bf16.mxu0 0
      %1745 = vmatpush1.bf16.msra.mxu0 0
      %1746 = vmatprep.subr.bf16.mxu0 0
      %1747 = vmatpush1.bf16.msra.mxu0 0
      %1748 = vmatprep.subr.bf16.mxu0 0
      %1749 = vmatpush1.bf16.msra.mxu0 0
      %1750 = vmatprep.subr.bf16.mxu0 0
      %1751 = vmatpush1.bf16.msra.mxu0 %v1732
      %1752 = vmatprep.subr.bf16.mxu0 0
      %1753 = vmatpush1.bf16.msra.mxu0 %v1731
      %1754 = vmatprep.subr.bf16.mxu0 0
      %1755 = vmatpush2.bf16.msra.mxu0 0
      %1756 = vmatprep.subr.bf16.mxu0 0
      %1757 = vmatpush2.bf16.msra.mxu0 0
      %1758 = vmatprep.subr.bf16.mxu0 0
      %1759 = vmatpush2.bf16.msra.mxu0 0
      %1760 = vmatprep.subr.bf16.mxu0 0
      %1761 = vmatpush2.bf16.msra.mxu0 0
      %1762 = vmatprep.subr.bf16.mxu0 0
      %1763 = vmatpush2.bf16.msra.mxu0 0
      %1764 = vmatprep.subr.bf16.mxu0 0
      %1765 = vmatpush2.bf16.msra.mxu0 0
      %1766 = vmatprep.subr.bf16.mxu0 0
      %1767 = vmatpush2.bf16.msra.mxu0 0
      %1768 = vmatprep.subr.bf16.mxu0 0
      %1769 = vmatpush2.bf16.msra.mxu0 0
      %1770 = vmatprep.mubr.bf16.mxu0 0
      %1771 = vmatmul.mubr.bf16.gmra.mxu0 %v1736
      %v1772 = vpop.f32.mrf.mxu0
      %v1773 = vadd.f32 %v1716, %v1772
      %v1774 = vpop.f32.mrf.mxu0
      %v1775 = vpop.f32.mrf.mxu0
      %v1776 = vadd.f32 %v1716, %v1775
      %v1777 = vpop.f32.mrf.mxu0
      %1778 = vdwg.mxu0
      %v1779 = vadd.f32 %v692, %v1773
      %v1780 = vadd.f32 %v693, %v1776
      %v1781 = vsel %vm730, %v1779, 0.0
      %1782 = vadd.xlane.f32.xlu0 %v1781
      %v1783 = vpop.xlane.xlu0 %1782
      %v1784 = vsel %vm730, %v1780, 0.0
      %1785 = vadd.xlane.f32.xlu0 %v1784
      %v1786 = vpop.xlane.xlu0 %1785
      %v1787 = vrcp.pop 32.0
      %v1788 = vmul.f32 %v1783, %v1787
      %v1789 = vmul.f32 %v1786, %v1787
      %v1790 = vsub.f32 %v1779, %v1788
      %v1791 = vsub.f32 %v1780, %v1789
      %v1792 = vmul.f32 %v1790, %v1790
      %v1793 = vmul.f32 %v1791, %v1791
      %v1794 = vsel %vm730, %v1792, 0.0
      %1795 = vadd.xlane.f32.xlu0 %v1794
      %v1796 = vpop.xlane.xlu0 %1795
      %v1797 = vsel %vm730, %v1793, 0.0
      %1798 = vadd.xlane.f32.xlu0 %v1797
      %v1799 = vpop.xlane.xlu0 %1798
      %v1800 = vmul.f32 %v1796, %v1787
      %v1801 = vmul.f32 %v1799, %v1787
      %v1802 = vadd.f32 %v1800, 1e-05
      %v1803 = vadd.f32 %v1801, 1e-05
      %v1804 = vrsqrt.pop %v1802
      %v1805 = vrsqrt.pop %v1803
      %v1806 = vmul.f32 %v1790, %v1804
      %v1807 = vmul.f32 %v1791, %v1805
      %v1808 = vld [vmem:[%s655] sm:$0x1]
      %v1810 = vlaneseq
      %v1811 = vshrl.u32 %v1810, 7
      %v1812 = vsub.s32 0, %v1811
      %v1813 = vrot.slane %v1808, %v1812
      %v1815 = vmul.f32 %v1806, %v1813
      %v1816 = vmul.f32 %v1807, %v1813
      %v1817 = vld [vmem:[%s658] sm:$0x1]
      %v1819 = vlaneseq
      %v1820 = vshrl.u32 %v1819, 7
      %v1821 = vsub.s32 0, %v1820
      %v1822 = vrot.slane %v1817, %v1821
      %v1824 = vadd.f32 %v1815, %v1822
      %v1825 = vadd.f32 %v1816, %v1822
      %v1826 = vpack.c.bf16 %v1824, %v1824
      %v1827 = vpack.c.bf16 %v1825, %v1825
      %v1828 = vld [vmem:[%s663] sm:$0xff]
      %v1829 = vld [vmem:[%s663 + $0x8] sm:$0xff]
      %v1830 = vld [vmem:[%s663 + $0x10] sm:$0xff]
      %v1831 = vld [vmem:[%s663 + $0x18] sm:$0xff]
      %v1832 = vld [vmem:[%s663 + $0x20] sm:$0xff]
      %v1833 = vld [vmem:[%s663 + $0x28] sm:$0xff]
      %v1834 = vld [vmem:[%s663 + $0x30] sm:$0xff]
      %v1835 = vld [vmem:[%s663 + $0x38] sm:$0xff]
      %v1836 = vld [vmem:[%s663 + $0x40] sm:$0xff]
      %v1837 = vld [vmem:[%s663 + $0x48] sm:$0xff]
      %v1838 = vld [vmem:[%s663 + $0x50] sm:$0xff]
      %v1839 = vld [vmem:[%s663 + $0x58] sm:$0xff]
      %v1840 = vld [vmem:[%s663 + $0x60] sm:$0xff]
      %v1841 = vld [vmem:[%s663 + $0x68] sm:$0xff]
      %v1842 = vld [vmem:[%s663 + $0x70] sm:$0xff]
      %v1843 = vld [vmem:[%s663 + $0x78] sm:$0xff]
      %v1844 = vld [vmem:[%s663 + $0x80] sm:$0xff]
      %v1845 = vld [vmem:[%s663 + $0x88] sm:$0xff]
      %v1846 = vld [vmem:[%s663 + $0x90] sm:$0xff]
      %v1847 = vld [vmem:[%s663 + $0x98] sm:$0xff]
      %v1848 = vld [vmem:[%s663 + $0xa0] sm:$0xff]
      %v1849 = vld [vmem:[%s663 + $0xa8] sm:$0xff]
      %v1850 = vld [vmem:[%s663 + $0xb0] sm:$0xff]
      %v1851 = vld [vmem:[%s663 + $0xb8] sm:$0xff]
      %v1852 = vld [vmem:[%s663 + $0xc0] sm:$0xff]
      %v1853 = vld [vmem:[%s663 + $0xc8] sm:$0xff]
      %v1854 = vld [vmem:[%s663 + $0xd0] sm:$0xff]
      %v1855 = vld [vmem:[%s663 + $0xd8] sm:$0xff]
      %v1856 = vld [vmem:[%s663 + $0xe0] sm:$0xff]
      %v1857 = vld [vmem:[%s663 + $0xe8] sm:$0xff]
      %v1858 = vld [vmem:[%s663 + $0xf0] sm:$0xff]
      %v1859 = vld [vmem:[%s663 + $0xf8] sm:$0xff]
      %v1860 = vld [vmem:[%s667] sm:$0xff]
      %v1861 = vld [vmem:[%s667 + $0x8] sm:$0xff]
      %v1864 = vlaneseq
      %v1865 = vshrl.u32 %v1864, 7
      %v1866 = vsub.s32 0, %v1865
      %v1867 = vrot.slane %v1860, %v1866
      %v1868 = vlaneseq
      %v1869 = vshrl.u32 %v1868, 7
      %v1870 = vsub.s32 1, %v1869
      %v1871 = vrot.slane %v1860, %v1870
      %v1872 = vlaneseq
      %v1873 = vshrl.u32 %v1872, 7
      %v1874 = vsub.s32 2, %v1873
      %v1875 = vrot.slane %v1860, %v1874
      %v1876 = vlaneseq
      %v1877 = vshrl.u32 %v1876, 7
      %v1878 = vsub.s32 3, %v1877
      %v1879 = vrot.slane %v1860, %v1878
      %v1880 = vlaneseq
      %v1881 = vshrl.u32 %v1880, 7
      %v1882 = vsub.s32 4, %v1881
      %v1883 = vrot.slane %v1860, %v1882
      %v1884 = vlaneseq
      %v1885 = vshrl.u32 %v1884, 7
      %v1886 = vsub.s32 5, %v1885
      %v1887 = vrot.slane %v1860, %v1886
      %v1888 = vlaneseq
      %v1889 = vshrl.u32 %v1888, 7
      %v1890 = vsub.s32 6, %v1889
      %v1891 = vrot.slane %v1860, %v1890
      %v1892 = vlaneseq
      %v1893 = vshrl.u32 %v1892, 7
      %v1894 = vsub.s32 7, %v1893
      %v1895 = vrot.slane %v1860, %v1894
      %v1896 = vlaneseq
      %v1897 = vshrl.u32 %v1896, 7
      %v1898 = vsub.s32 0, %v1897
      %v1899 = vrot.slane %v1861, %v1898
      %v1900 = vlaneseq
      %v1901 = vshrl.u32 %v1900, 7
      %v1902 = vsub.s32 1, %v1901
      %v1903 = vrot.slane %v1861, %v1902
      %v1904 = vlaneseq
      %v1905 = vshrl.u32 %v1904, 7
      %v1906 = vsub.s32 2, %v1905
      %v1907 = vrot.slane %v1861, %v1906
      %v1908 = vlaneseq
      %v1909 = vshrl.u32 %v1908, 7
      %v1910 = vsub.s32 3, %v1909
      %v1911 = vrot.slane %v1861, %v1910
      %v1912 = vlaneseq
      %v1913 = vshrl.u32 %v1912, 7
      %v1914 = vsub.s32 4, %v1913
      %v1915 = vrot.slane %v1861, %v1914
      %v1916 = vlaneseq
      %v1917 = vshrl.u32 %v1916, 7
      %v1918 = vsub.s32 5, %v1917
      %v1919 = vrot.slane %v1861, %v1918
      %v1920 = vlaneseq
      %v1921 = vshrl.u32 %v1920, 7
      %v1922 = vsub.s32 6, %v1921
      %v1923 = vrot.slane %v1861, %v1922
      %v1924 = vlaneseq
      %v1925 = vshrl.u32 %v1924, 7
      %v1926 = vsub.s32 7, %v1925
      %v1927 = vrot.slane %v1861, %v1926
      %v1946 = vunpack.c.l.b16 %v1826
      %v1947 = vunpack.c.l.b16 %v1827
      %v1948 = vpack.c.b16 %v1947, %v1946
      %v1981 = vunpack.c.l.b16 %v1828
      %v1982 = vunpack.c.h.b16 %v1828
      %v1983 = vunpack.c.l.b16 %v1829
      %v1984 = vunpack.c.h.b16 %v1829
      %v1985 = vunpack.c.l.b16 %v1830
      %v1986 = vunpack.c.h.b16 %v1830
      %v1987 = vunpack.c.l.b16 %v1831
      %v1988 = vunpack.c.h.b16 %v1831
      %v1989 = vunpack.c.l.b16 %v1832
      %v1990 = vunpack.c.h.b16 %v1832
      %v1991 = vunpack.c.l.b16 %v1833
      %v1992 = vunpack.c.h.b16 %v1833
      %v1993 = vunpack.c.l.b16 %v1834
      %v1994 = vunpack.c.h.b16 %v1834
      %v1995 = vunpack.c.l.b16 %v1835
      %v1996 = vunpack.c.h.b16 %v1835
      %v1997 = vunpack.c.l.b16 %v1836
      %v1998 = vunpack.c.h.b16 %v1836
      %v1999 = vunpack.c.l.b16 %v1837
      %v2000 = vunpack.c.h.b16 %v1837
      %v2001 = vunpack.c.l.b16 %v1838
      %v2002 = vunpack.c.h.b16 %v1838
      %v2003 = vunpack.c.l.b16 %v1839
      %v2004 = vunpack.c.h.b16 %v1839
      %v2005 = vunpack.c.l.b16 %v1840
      %v2006 = vunpack.c.h.b16 %v1840
      %v2007 = vunpack.c.l.b16 %v1841
      %v2008 = vunpack.c.h.b16 %v1841
      %v2009 = vunpack.c.l.b16 %v1842
      %v2010 = vunpack.c.h.b16 %v1842
      %v2011 = vunpack.c.l.b16 %v1843
      %v2012 = vunpack.c.h.b16 %v1843
      %v2013 = vunpack.c.l.b16 %v1844
      %v2014 = vunpack.c.h.b16 %v1844
      %v2015 = vunpack.c.l.b16 %v1845
      %v2016 = vunpack.c.h.b16 %v1845
      %v2017 = vunpack.c.l.b16 %v1846
      %v2018 = vunpack.c.h.b16 %v1846
      %v2019 = vunpack.c.l.b16 %v1847
      %v2020 = vunpack.c.h.b16 %v1847
      %v2021 = vunpack.c.l.b16 %v1848
      %v2022 = vunpack.c.h.b16 %v1848
      %v2023 = vunpack.c.l.b16 %v1849
      %v2024 = vunpack.c.h.b16 %v1849
      %v2025 = vunpack.c.l.b16 %v1850
      %v2026 = vunpack.c.h.b16 %v1850
      %v2027 = vunpack.c.l.b16 %v1851
      %v2028 = vunpack.c.h.b16 %v1851
      %v2029 = vunpack.c.l.b16 %v1852
      %v2030 = vunpack.c.h.b16 %v1852
      %v2031 = vunpack.c.l.b16 %v1853
      %v2032 = vunpack.c.h.b16 %v1853
      %v2033 = vunpack.c.l.b16 %v1854
      %v2034 = vunpack.c.h.b16 %v1854
      %v2035 = vunpack.c.l.b16 %v1855
      %v2036 = vunpack.c.h.b16 %v1855
      %v2037 = vunpack.c.l.b16 %v1856
      %v2038 = vunpack.c.h.b16 %v1856
      %v2039 = vunpack.c.l.b16 %v1857
      %v2040 = vunpack.c.h.b16 %v1857
      %v2041 = vunpack.c.l.b16 %v1858
      %v2042 = vunpack.c.h.b16 %v1858
      %v2043 = vunpack.c.l.b16 %v1859
      %v2044 = vunpack.c.h.b16 %v1859
      %v2045 = vpack.c.b16 %v1997, %v1981
      %v2046 = vpack.c.b16 %v1998, %v1982
      %v2047 = vpack.c.b16 %v1999, %v1983
      %v2048 = vpack.c.b16 %v2000, %v1984
      %v2049 = vpack.c.b16 %v2001, %v1985
      %v2050 = vpack.c.b16 %v2002, %v1986
      %v2051 = vpack.c.b16 %v2003, %v1987
      %v2052 = vpack.c.b16 %v2004, %v1988
      %v2053 = vpack.c.b16 %v2005, %v1989
      %v2054 = vpack.c.b16 %v2006, %v1990
      %v2055 = vpack.c.b16 %v2007, %v1991
      %v2056 = vpack.c.b16 %v2008, %v1992
      %v2057 = vpack.c.b16 %v2009, %v1993
      %v2058 = vpack.c.b16 %v2010, %v1994
      %v2059 = vpack.c.b16 %v2011, %v1995
      %v2060 = vpack.c.b16 %v2012, %v1996
      %v2061 = vpack.c.b16 %v2029, %v2013
      %v2062 = vpack.c.b16 %v2030, %v2014
      %v2063 = vpack.c.b16 %v2031, %v2015
      %v2064 = vpack.c.b16 %v2032, %v2016
      %v2065 = vpack.c.b16 %v2033, %v2017
      %v2066 = vpack.c.b16 %v2034, %v2018
      %v2067 = vpack.c.b16 %v2035, %v2019
      %v2068 = vpack.c.b16 %v2036, %v2020
      %v2069 = vpack.c.b16 %v2037, %v2021
      %v2070 = vpack.c.b16 %v2038, %v2022
      %v2071 = vpack.c.b16 %v2039, %v2023
      %v2072 = vpack.c.b16 %v2040, %v2024
      %v2073 = vpack.c.b16 %v2041, %v2025
      %v2074 = vpack.c.b16 %v2042, %v2026
      %v2075 = vpack.c.b16 %v2043, %v2027
      %v2076 = vpack.c.b16 %v2044, %v2028
      %v2110 = vsel %vm730, %v1948, 0
      %2112 = vmatprep.subr.bf16.mxu0 0
      %2113 = vmatpush1.bf16.msra.mxu0 0
      %2114 = vmatprep.subr.bf16.mxu0 0
      %2115 = vmatpush1.bf16.msra.mxu0 0
      %2116 = vmatprep.subr.bf16.mxu0 0
      %2117 = vmatpush1.bf16.msra.mxu0 0
      %2118 = vmatprep.subr.bf16.mxu0 0
      %2119 = vmatpush1.bf16.msra.mxu0 0
      %2120 = vmatprep.subr.bf16.mxu0 0
      %2121 = vmatpush1.bf16.msra.mxu0 0
      %2122 = vmatprep.subr.bf16.mxu0 0
      %2123 = vmatpush1.bf16.msra.mxu0 0
      %2124 = vmatprep.subr.bf16.mxu0 %v2062
      %2125 = vmatpush1.bf16.msra.mxu0 %v2061
      %2126 = vmatprep.subr.bf16.mxu0 %v2046
      %2127 = vmatpush1.bf16.msra.mxu0 %v2045
      %2128 = vmatprep.subr.bf16.mxu0 0
      %2129 = vmatpush2.bf16.msra.mxu0 0
      %2130 = vmatprep.subr.bf16.mxu0 0
      %2131 = vmatpush2.bf16.msra.mxu0 0
      %2132 = vmatprep.subr.bf16.mxu0 0
      %2133 = vmatpush2.bf16.msra.mxu0 0
      %2134 = vmatprep.subr.bf16.mxu0 0
      %2135 = vmatpush2.bf16.msra.mxu0 0
      %2136 = vmatprep.subr.bf16.mxu0 0
      %2137 = vmatpush2.bf16.msra.mxu0 0
      %2138 = vmatprep.subr.bf16.mxu0 0
      %2139 = vmatpush2.bf16.msra.mxu0 0
      %2140 = vmatprep.subr.bf16.mxu0 0
      %2141 = vmatpush2.bf16.msra.mxu0 0
      %2142 = vmatprep.subr.bf16.mxu0 0
      %2143 = vmatpush2.bf16.msra.mxu0 0
      %2144 = vmatprep.mubr.bf16.mxu0 0
      %2145 = vmatmul.mubr.bf16.gmra.mxu0 %v2110
      %v2146 = vpop.f32.mrf.mxu0
      %v2147 = vadd.f32 %v1867, %v2146
      %v2148 = vpop.f32.mrf.mxu0
      %v2149 = vadd.f32 %v1871, %v2148
      %v2150 = vpop.f32.mrf.mxu0
      %v2151 = vadd.f32 %v1867, %v2150
      %v2152 = vpop.f32.mrf.mxu0
      %v2153 = vadd.f32 %v1871, %v2152
      %2154 = vdwg.mxu0
      %2155 = vmatprep.subr.bf16.mxu0 0
      %2156 = vmatpush1.bf16.msra.mxu0 0
      %2157 = vmatprep.subr.bf16.mxu0 0
      %2158 = vmatpush1.bf16.msra.mxu0 0
      %2159 = vmatprep.subr.bf16.mxu0 0
      %2160 = vmatpush1.bf16.msra.mxu0 0
      %2161 = vmatprep.subr.bf16.mxu0 0
      %2162 = vmatpush1.bf16.msra.mxu0 0
      %2163 = vmatprep.subr.bf16.mxu0 0
      %2164 = vmatpush1.bf16.msra.mxu0 0
      %2165 = vmatprep.subr.bf16.mxu0 0
      %2166 = vmatpush1.bf16.msra.mxu0 0
      %2167 = vmatprep.subr.bf16.mxu0 %v2064
      %2168 = vmatpush1.bf16.msra.mxu0 %v2063
      %2169 = vmatprep.subr.bf16.mxu0 %v2048
      %2170 = vmatpush1.bf16.msra.mxu0 %v2047
      %2171 = vmatprep.subr.bf16.mxu0 0
      %2172 = vmatpush2.bf16.msra.mxu0 0
      %2173 = vmatprep.subr.bf16.mxu0 0
      %2174 = vmatpush2.bf16.msra.mxu0 0
      %2175 = vmatprep.subr.bf16.mxu0 0
      %2176 = vmatpush2.bf16.msra.mxu0 0
      %2177 = vmatprep.subr.bf16.mxu0 0
      %2178 = vmatpush2.bf16.msra.mxu0 0
      %2179 = vmatprep.subr.bf16.mxu0 0
      %2180 = vmatpush2.bf16.msra.mxu0 0
      %2181 = vmatprep.subr.bf16.mxu0 0
      %2182 = vmatpush2.bf16.msra.mxu0 0
      %2183 = vmatprep.subr.bf16.mxu0 0
      %2184 = vmatpush2.bf16.msra.mxu0 0
      %2185 = vmatprep.subr.bf16.mxu0 0
      %2186 = vmatpush2.bf16.msra.mxu0 0
      %2187 = vmatprep.mubr.bf16.mxu0 0
      %2188 = vmatmul.mubr.bf16.gmra.mxu0 %v2110
      %v2189 = vpop.f32.mrf.mxu0
      %v2190 = vadd.f32 %v1875, %v2189
      %v2191 = vpop.f32.mrf.mxu0
      %v2192 = vadd.f32 %v1879, %v2191
      %v2193 = vpop.f32.mrf.mxu0
      %v2194 = vadd.f32 %v1875, %v2193
      %v2195 = vpop.f32.mrf.mxu0
      %v2196 = vadd.f32 %v1879, %v2195
      %2197 = vdwg.mxu0
      %2198 = vmatprep.subr.bf16.mxu0 0
      %2199 = vmatpush1.bf16.msra.mxu0 0
      %2200 = vmatprep.subr.bf16.mxu0 0
      %2201 = vmatpush1.bf16.msra.mxu0 0
      %2202 = vmatprep.subr.bf16.mxu0 0
      %2203 = vmatpush1.bf16.msra.mxu0 0
      %2204 = vmatprep.subr.bf16.mxu0 0
      %2205 = vmatpush1.bf16.msra.mxu0 0
      %2206 = vmatprep.subr.bf16.mxu0 0
      %2207 = vmatpush1.bf16.msra.mxu0 0
      %2208 = vmatprep.subr.bf16.mxu0 0
      %2209 = vmatpush1.bf16.msra.mxu0 0
      %2210 = vmatprep.subr.bf16.mxu0 %v2066
      %2211 = vmatpush1.bf16.msra.mxu0 %v2065
      %2212 = vmatprep.subr.bf16.mxu0 %v2050
      %2213 = vmatpush1.bf16.msra.mxu0 %v2049
      %2214 = vmatprep.subr.bf16.mxu0 0
      %2215 = vmatpush2.bf16.msra.mxu0 0
      %2216 = vmatprep.subr.bf16.mxu0 0
      %2217 = vmatpush2.bf16.msra.mxu0 0
      %2218 = vmatprep.subr.bf16.mxu0 0
      %2219 = vmatpush2.bf16.msra.mxu0 0
      %2220 = vmatprep.subr.bf16.mxu0 0
      %2221 = vmatpush2.bf16.msra.mxu0 0
      %2222 = vmatprep.subr.bf16.mxu0 0
      %2223 = vmatpush2.bf16.msra.mxu0 0
      %2224 = vmatprep.subr.bf16.mxu0 0
      %2225 = vmatpush2.bf16.msra.mxu0 0
      %2226 = vmatprep.subr.bf16.mxu0 0
      %2227 = vmatpush2.bf16.msra.mxu0 0
      %2228 = vmatprep.subr.bf16.mxu0 0
      %2229 = vmatpush2.bf16.msra.mxu0 0
      %2230 = vmatprep.mubr.bf16.mxu0 0
      %2231 = vmatmul.mubr.bf16.gmra.mxu0 %v2110
      %v2232 = vpop.f32.mrf.mxu0
      %v2233 = vadd.f32 %v1883, %v2232
      %v2234 = vpop.f32.mrf.mxu0
      %v2235 = vadd.f32 %v1887, %v2234
      %v2236 = vpop.f32.mrf.mxu0
      %v2237 = vadd.f32 %v1883, %v2236
      %v2238 = vpop.f32.mrf.mxu0
      %v2239 = vadd.f32 %v1887, %v2238
      %2240 = vdwg.mxu0
      %2241 = vmatprep.subr.bf16.mxu0 0
      %2242 = vmatpush1.bf16.msra.mxu0 0
      %2243 = vmatprep.subr.bf16.mxu0 0
      %2244 = vmatpush1.bf16.msra.mxu0 0
      %2245 = vmatprep.subr.bf16.mxu0 0
      %2246 = vmatpush1.bf16.msra.mxu0 0
      %2247 = vmatprep.subr.bf16.mxu0 0
      %2248 = vmatpush1.bf16.msra.mxu0 0
      %2249 = vmatprep.subr.bf16.mxu0 0
      %2250 = vmatpush1.bf16.msra.mxu0 0
      %2251 = vmatprep.subr.bf16.mxu0 0
      %2252 = vmatpush1.bf16.msra.mxu0 0
      %2253 = vmatprep.subr.bf16.mxu0 %v2068
      %2254 = vmatpush1.bf16.msra.mxu0 %v2067
      %2255 = vmatprep.subr.bf16.mxu0 %v2052
      %2256 = vmatpush1.bf16.msra.mxu0 %v2051
      %2257 = vmatprep.subr.bf16.mxu0 0
      %2258 = vmatpush2.bf16.msra.mxu0 0
      %2259 = vmatprep.subr.bf16.mxu0 0
      %2260 = vmatpush2.bf16.msra.mxu0 0
      %2261 = vmatprep.subr.bf16.mxu0 0
      %2262 = vmatpush2.bf16.msra.mxu0 0
      %2263 = vmatprep.subr.bf16.mxu0 0
      %2264 = vmatpush2.bf16.msra.mxu0 0
      %2265 = vmatprep.subr.bf16.mxu0 0
      %2266 = vmatpush2.bf16.msra.mxu0 0
      %2267 = vmatprep.subr.bf16.mxu0 0
      %2268 = vmatpush2.bf16.msra.mxu0 0
      %2269 = vmatprep.subr.bf16.mxu0 0
      %2270 = vmatpush2.bf16.msra.mxu0 0
      %2271 = vmatprep.subr.bf16.mxu0 0
      %2272 = vmatpush2.bf16.msra.mxu0 0
      %2273 = vmatprep.mubr.bf16.mxu0 0
      %2274 = vmatmul.mubr.bf16.gmra.mxu0 %v2110
      %v2275 = vpop.f32.mrf.mxu0
      %v2276 = vadd.f32 %v1891, %v2275
      %v2277 = vpop.f32.mrf.mxu0
      %v2278 = vadd.f32 %v1895, %v2277
      %v2279 = vpop.f32.mrf.mxu0
      %v2280 = vadd.f32 %v1891, %v2279
      %v2281 = vpop.f32.mrf.mxu0
      %v2282 = vadd.f32 %v1895, %v2281
      %2283 = vdwg.mxu0
      %2284 = vmatprep.subr.bf16.mxu0 0
      %2285 = vmatpush1.bf16.msra.mxu0 0
      %2286 = vmatprep.subr.bf16.mxu0 0
      %2287 = vmatpush1.bf16.msra.mxu0 0
      %2288 = vmatprep.subr.bf16.mxu0 0
      %2289 = vmatpush1.bf16.msra.mxu0 0
      %2290 = vmatprep.subr.bf16.mxu0 0
      %2291 = vmatpush1.bf16.msra.mxu0 0
      %2292 = vmatprep.subr.bf16.mxu0 0
      %2293 = vmatpush1.bf16.msra.mxu0 0
      %2294 = vmatprep.subr.bf16.mxu0 0
      %2295 = vmatpush1.bf16.msra.mxu0 0
      %2296 = vmatprep.subr.bf16.mxu0 %v2070
      %2297 = vmatpush1.bf16.msra.mxu0 %v2069
      %2298 = vmatprep.subr.bf16.mxu0 %v2054
      %2299 = vmatpush1.bf16.msra.mxu0 %v2053
      %2300 = vmatprep.subr.bf16.mxu0 0
      %2301 = vmatpush2.bf16.msra.mxu0 0
      %2302 = vmatprep.subr.bf16.mxu0 0
      %2303 = vmatpush2.bf16.msra.mxu0 0
      %2304 = vmatprep.subr.bf16.mxu0 0
      %2305 = vmatpush2.bf16.msra.mxu0 0
      %2306 = vmatprep.subr.bf16.mxu0 0
      %2307 = vmatpush2.bf16.msra.mxu0 0
      %2308 = vmatprep.subr.bf16.mxu0 0
      %2309 = vmatpush2.bf16.msra.mxu0 0
      %2310 = vmatprep.subr.bf16.mxu0 0
      %2311 = vmatpush2.bf16.msra.mxu0 0
      %2312 = vmatprep.subr.bf16.mxu0 0
      %2313 = vmatpush2.bf16.msra.mxu0 0
      %2314 = vmatprep.subr.bf16.mxu0 0
      %2315 = vmatpush2.bf16.msra.mxu0 0
      %2316 = vmatprep.mubr.bf16.mxu0 0
      %2317 = vmatmul.mubr.bf16.gmra.mxu0 %v2110
      %v2318 = vpop.f32.mrf.mxu0
      %v2319 = vadd.f32 %v1899, %v2318
      %v2320 = vpop.f32.mrf.mxu0
      %v2321 = vadd.f32 %v1903, %v2320
      %v2322 = vpop.f32.mrf.mxu0
      %v2323 = vadd.f32 %v1899, %v2322
      %v2324 = vpop.f32.mrf.mxu0
      %v2325 = vadd.f32 %v1903, %v2324
      %2326 = vdwg.mxu0
      %2327 = vmatprep.subr.bf16.mxu0 0
      %2328 = vmatpush1.bf16.msra.mxu0 0
      %2329 = vmatprep.subr.bf16.mxu0 0
      %2330 = vmatpush1.bf16.msra.mxu0 0
      %2331 = vmatprep.subr.bf16.mxu0 0
      %2332 = vmatpush1.bf16.msra.mxu0 0
      %2333 = vmatprep.subr.bf16.mxu0 0
      %2334 = vmatpush1.bf16.msra.mxu0 0
      %2335 = vmatprep.subr.bf16.mxu0 0
      %2336 = vmatpush1.bf16.msra.mxu0 0
      %2337 = vmatprep.subr.bf16.mxu0 0
      %2338 = vmatpush1.bf16.msra.mxu0 0
      %2339 = vmatprep.subr.bf16.mxu0 %v2072
      %2340 = vmatpush1.bf16.msra.mxu0 %v2071
      %2341 = vmatprep.subr.bf16.mxu0 %v2056
      %2342 = vmatpush1.bf16.msra.mxu0 %v2055
      %2343 = vmatprep.subr.bf16.mxu0 0
      %2344 = vmatpush2.bf16.msra.mxu0 0
      %2345 = vmatprep.subr.bf16.mxu0 0
      %2346 = vmatpush2.bf16.msra.mxu0 0
      %2347 = vmatprep.subr.bf16.mxu0 0
      %2348 = vmatpush2.bf16.msra.mxu0 0
      %2349 = vmatprep.subr.bf16.mxu0 0
      %2350 = vmatpush2.bf16.msra.mxu0 0
      %2351 = vmatprep.subr.bf16.mxu0 0
      %2352 = vmatpush2.bf16.msra.mxu0 0
      %2353 = vmatprep.subr.bf16.mxu0 0
      %2354 = vmatpush2.bf16.msra.mxu0 0
      %2355 = vmatprep.subr.bf16.mxu0 0
      %2356 = vmatpush2.bf16.msra.mxu0 0
      %2357 = vmatprep.subr.bf16.mxu0 0
      %2358 = vmatpush2.bf16.msra.mxu0 0
      %2359 = vmatprep.mubr.bf16.mxu0 0
      %2360 = vmatmul.mubr.bf16.gmra.mxu0 %v2110
      %v2361 = vpop.f32.mrf.mxu0
      %v2362 = vadd.f32 %v1907, %v2361
      %v2363 = vpop.f32.mrf.mxu0
      %v2364 = vadd.f32 %v1911, %v2363
      %v2365 = vpop.f32.mrf.mxu0
      %v2366 = vadd.f32 %v1907, %v2365
      %v2367 = vpop.f32.mrf.mxu0
      %v2368 = vadd.f32 %v1911, %v2367
      %2369 = vdwg.mxu0
      %2370 = vmatprep.subr.bf16.mxu0 0
      %2371 = vmatpush1.bf16.msra.mxu0 0
      %2372 = vmatprep.subr.bf16.mxu0 0
      %2373 = vmatpush1.bf16.msra.mxu0 0
      %2374 = vmatprep.subr.bf16.mxu0 0
      %2375 = vmatpush1.bf16.msra.mxu0 0
      %2376 = vmatprep.subr.bf16.mxu0 0
      %2377 = vmatpush1.bf16.msra.mxu0 0
      %2378 = vmatprep.subr.bf16.mxu0 0
      %2379 = vmatpush1.bf16.msra.mxu0 0
      %2380 = vmatprep.subr.bf16.mxu0 0
      %2381 = vmatpush1.bf16.msra.mxu0 0
      %2382 = vmatprep.subr.bf16.mxu0 %v2074
      %2383 = vmatpush1.bf16.msra.mxu0 %v2073
      %2384 = vmatprep.subr.bf16.mxu0 %v2058
      %2385 = vmatpush1.bf16.msra.mxu0 %v2057
      %2386 = vmatprep.subr.bf16.mxu0 0
      %2387 = vmatpush2.bf16.msra.mxu0 0
      %2388 = vmatprep.subr.bf16.mxu0 0
      %2389 = vmatpush2.bf16.msra.mxu0 0
      %2390 = vmatprep.subr.bf16.mxu0 0
      %2391 = vmatpush2.bf16.msra.mxu0 0
      %2392 = vmatprep.subr.bf16.mxu0 0
      %2393 = vmatpush2.bf16.msra.mxu0 0
      %2394 = vmatprep.subr.bf16.mxu0 0
      %2395 = vmatpush2.bf16.msra.mxu0 0
      %2396 = vmatprep.subr.bf16.mxu0 0
      %2397 = vmatpush2.bf16.msra.mxu0 0
      %2398 = vmatprep.subr.bf16.mxu0 0
      %2399 = vmatpush2.bf16.msra.mxu0 0
      %2400 = vmatprep.subr.bf16.mxu0 0
      %2401 = vmatpush2.bf16.msra.mxu0 0
      %2402 = vmatprep.mubr.bf16.mxu0 0
      %2403 = vmatmul.mubr.bf16.gmra.mxu0 %v2110
      %v2404 = vpop.f32.mrf.mxu0
      %v2405 = vadd.f32 %v1915, %v2404
      %v2406 = vpop.f32.mrf.mxu0
      %v2407 = vadd.f32 %v1919, %v2406
      %v2408 = vpop.f32.mrf.mxu0
      %v2409 = vadd.f32 %v1915, %v2408
      %v2410 = vpop.f32.mrf.mxu0
      %v2411 = vadd.f32 %v1919, %v2410
      %2412 = vdwg.mxu0
      %2413 = vmatprep.subr.bf16.mxu0 0
      %2414 = vmatpush1.bf16.msra.mxu0 0
      %2415 = vmatprep.subr.bf16.mxu0 0
      %2416 = vmatpush1.bf16.msra.mxu0 0
      %2417 = vmatprep.subr.bf16.mxu0 0
      %2418 = vmatpush1.bf16.msra.mxu0 0
      %2419 = vmatprep.subr.bf16.mxu0 0
      %2420 = vmatpush1.bf16.msra.mxu0 0
      %2421 = vmatprep.subr.bf16.mxu0 0
      %2422 = vmatpush1.bf16.msra.mxu0 0
      %2423 = vmatprep.subr.bf16.mxu0 0
      %2424 = vmatpush1.bf16.msra.mxu0 0
      %2425 = vmatprep.subr.bf16.mxu0 %v2076
      %2426 = vmatpush1.bf16.msra.mxu0 %v2075
      %2427 = vmatprep.subr.bf16.mxu0 %v2060
      %2428 = vmatpush1.bf16.msra.mxu0 %v2059
      %2429 = vmatprep.subr.bf16.mxu0 0
      %2430 = vmatpush2.bf16.msra.mxu0 0
      %2431 = vmatprep.subr.bf16.mxu0 0
      %2432 = vmatpush2.bf16.msra.mxu0 0
      %2433 = vmatprep.subr.bf16.mxu0 0
      %2434 = vmatpush2.bf16.msra.mxu0 0
      %2435 = vmatprep.subr.bf16.mxu0 0
      %2436 = vmatpush2.bf16.msra.mxu0 0
      %2437 = vmatprep.subr.bf16.mxu0 0
      %2438 = vmatpush2.bf16.msra.mxu0 0
      %2439 = vmatprep.subr.bf16.mxu0 0
      %2440 = vmatpush2.bf16.msra.mxu0 0
      %2441 = vmatprep.subr.bf16.mxu0 0
      %2442 = vmatpush2.bf16.msra.mxu0 0
      %2443 = vmatprep.subr.bf16.mxu0 0
      %2444 = vmatpush2.bf16.msra.mxu0 0
      %2445 = vmatprep.mubr.bf16.mxu0 0
      %2446 = vmatmul.mubr.bf16.gmra.mxu0 %v2110
      %v2447 = vpop.f32.mrf.mxu0
      %v2448 = vadd.f32 %v1923, %v2447
      %v2449 = vpop.f32.mrf.mxu0
      %v2450 = vadd.f32 %v1927, %v2449
      %v2451 = vpop.f32.mrf.mxu0
      %v2452 = vadd.f32 %v1923, %v2451
      %v2453 = vpop.f32.mrf.mxu0
      %v2454 = vadd.f32 %v1927, %v2453
      %2455 = vdwg.mxu0
      %v2456 = vmax.f32 %v2147, 0.0
      %v2457 = vmax.f32 %v2149, 0.0
      %v2458 = vmax.f32 %v2190, 0.0
      %v2459 = vmax.f32 %v2192, 0.0
      %v2460 = vmax.f32 %v2233, 0.0
      %v2461 = vmax.f32 %v2235, 0.0
      %v2462 = vmax.f32 %v2276, 0.0
      %v2463 = vmax.f32 %v2278, 0.0
      %v2464 = vmax.f32 %v2319, 0.0
      %v2465 = vmax.f32 %v2321, 0.0
      %v2466 = vmax.f32 %v2362, 0.0
      %v2467 = vmax.f32 %v2364, 0.0
      %v2468 = vmax.f32 %v2405, 0.0
      %v2469 = vmax.f32 %v2407, 0.0
      %v2470 = vmax.f32 %v2448, 0.0
      %v2471 = vmax.f32 %v2450, 0.0
      %v2472 = vmax.f32 %v2151, 0.0
      %v2473 = vmax.f32 %v2153, 0.0
      %v2474 = vmax.f32 %v2194, 0.0
      %v2475 = vmax.f32 %v2196, 0.0
      %v2476 = vmax.f32 %v2237, 0.0
      %v2477 = vmax.f32 %v2239, 0.0
      %v2478 = vmax.f32 %v2280, 0.0
      %v2479 = vmax.f32 %v2282, 0.0
      %v2480 = vmax.f32 %v2323, 0.0
      %v2481 = vmax.f32 %v2325, 0.0
      %v2482 = vmax.f32 %v2366, 0.0
      %v2483 = vmax.f32 %v2368, 0.0
      %v2484 = vmax.f32 %v2409, 0.0
      %v2485 = vmax.f32 %v2411, 0.0
      %v2486 = vmax.f32 %v2452, 0.0
      %v2487 = vmax.f32 %v2454, 0.0
      %v2488 = vpack.c.bf16 %v2456, %v2456
      %v2489 = vpack.c.bf16 %v2457, %v2457
      %v2490 = vpack.c.bf16 %v2458, %v2458
      %v2491 = vpack.c.bf16 %v2459, %v2459
      %v2492 = vpack.c.bf16 %v2460, %v2460
      %v2493 = vpack.c.bf16 %v2461, %v2461
      %v2494 = vpack.c.bf16 %v2462, %v2462
      %v2495 = vpack.c.bf16 %v2463, %v2463
      %v2496 = vpack.c.bf16 %v2464, %v2464
      %v2497 = vpack.c.bf16 %v2465, %v2465
      %v2498 = vpack.c.bf16 %v2466, %v2466
      %v2499 = vpack.c.bf16 %v2467, %v2467
      %v2500 = vpack.c.bf16 %v2468, %v2468
      %v2501 = vpack.c.bf16 %v2469, %v2469
      %v2502 = vpack.c.bf16 %v2470, %v2470
      %v2503 = vpack.c.bf16 %v2471, %v2471
      %v2504 = vpack.c.bf16 %v2472, %v2472
      %v2505 = vpack.c.bf16 %v2473, %v2473
      %v2506 = vpack.c.bf16 %v2474, %v2474
      %v2507 = vpack.c.bf16 %v2475, %v2475
      %v2508 = vpack.c.bf16 %v2476, %v2476
      %v2509 = vpack.c.bf16 %v2477, %v2477
      %v2510 = vpack.c.bf16 %v2478, %v2478
      %v2511 = vpack.c.bf16 %v2479, %v2479
      %v2512 = vpack.c.bf16 %v2480, %v2480
      %v2513 = vpack.c.bf16 %v2481, %v2481
      %v2514 = vpack.c.bf16 %v2482, %v2482
      %v2515 = vpack.c.bf16 %v2483, %v2483
      %v2516 = vpack.c.bf16 %v2484, %v2484
      %v2517 = vpack.c.bf16 %v2485, %v2485
      %v2518 = vpack.c.bf16 %v2486, %v2486
      %v2519 = vpack.c.bf16 %v2487, %v2487
      %v2520 = vld [vmem:[%s672] sm:$0xf]
      %v2521 = vld [vmem:[%s672 + $0x4] sm:$0xf]
      %v2522 = vld [vmem:[%s672 + $0x8] sm:$0xf]
      %v2523 = vld [vmem:[%s672 + $0xc] sm:$0xf]
      %v2524 = vld [vmem:[%s672 + $0x10] sm:$0xf]
      %v2525 = vld [vmem:[%s672 + $0x14] sm:$0xf]
      %v2526 = vld [vmem:[%s672 + $0x18] sm:$0xf]
      %v2527 = vld [vmem:[%s672 + $0x1c] sm:$0xf]
      %v2528 = vld [vmem:[%s672 + $0x20] sm:$0xf]
      %v2529 = vld [vmem:[%s672 + $0x24] sm:$0xf]
      %v2530 = vld [vmem:[%s672 + $0x28] sm:$0xf]
      %v2531 = vld [vmem:[%s672 + $0x2c] sm:$0xf]
      %v2532 = vld [vmem:[%s672 + $0x30] sm:$0xf]
      %v2533 = vld [vmem:[%s672 + $0x34] sm:$0xf]
      %v2534 = vld [vmem:[%s672 + $0x38] sm:$0xf]
      %v2535 = vld [vmem:[%s672 + $0x3c] sm:$0xf]
      %v2536 = vld [vmem:[%s672 + $0x40] sm:$0xf]
      %v2537 = vld [vmem:[%s672 + $0x44] sm:$0xf]
      %v2538 = vld [vmem:[%s672 + $0x48] sm:$0xf]
      %v2539 = vld [vmem:[%s672 + $0x4c] sm:$0xf]
      %v2540 = vld [vmem:[%s672 + $0x50] sm:$0xf]
      %v2541 = vld [vmem:[%s672 + $0x54] sm:$0xf]
      %v2542 = vld [vmem:[%s672 + $0x58] sm:$0xf]
      %v2543 = vld [vmem:[%s672 + $0x5c] sm:$0xf]
      %v2544 = vld [vmem:[%s672 + $0x60] sm:$0xf]
      %v2545 = vld [vmem:[%s672 + $0x64] sm:$0xf]
      %v2546 = vld [vmem:[%s672 + $0x68] sm:$0xf]
      %v2547 = vld [vmem:[%s672 + $0x6c] sm:$0xf]
      %v2548 = vld [vmem:[%s672 + $0x70] sm:$0xf]
      %v2549 = vld [vmem:[%s672 + $0x74] sm:$0xf]
      %v2550 = vld [vmem:[%s672 + $0x78] sm:$0xf]
      %v2551 = vld [vmem:[%s672 + $0x7c] sm:$0xf]
      %v2552 = vld [vmem:[%s672 + $0x80] sm:$0xf]
      %v2553 = vld [vmem:[%s672 + $0x84] sm:$0xf]
      %v2554 = vld [vmem:[%s672 + $0x88] sm:$0xf]
      %v2555 = vld [vmem:[%s672 + $0x8c] sm:$0xf]
      %v2556 = vld [vmem:[%s672 + $0x90] sm:$0xf]
      %v2557 = vld [vmem:[%s672 + $0x94] sm:$0xf]
      %v2558 = vld [vmem:[%s672 + $0x98] sm:$0xf]
      %v2559 = vld [vmem:[%s672 + $0x9c] sm:$0xf]
      %v2560 = vld [vmem:[%s672 + $0xa0] sm:$0xf]
      %v2561 = vld [vmem:[%s672 + $0xa4] sm:$0xf]
      %v2562 = vld [vmem:[%s672 + $0xa8] sm:$0xf]
      %v2563 = vld [vmem:[%s672 + $0xac] sm:$0xf]
      %v2564 = vld [vmem:[%s672 + $0xb0] sm:$0xf]
      %v2565 = vld [vmem:[%s672 + $0xb4] sm:$0xf]
      %v2566 = vld [vmem:[%s672 + $0xb8] sm:$0xf]
      %v2567 = vld [vmem:[%s672 + $0xbc] sm:$0xf]
      %v2568 = vld [vmem:[%s672 + $0xc0] sm:$0xf]
      %v2569 = vld [vmem:[%s672 + $0xc4] sm:$0xf]
      %v2570 = vld [vmem:[%s672 + $0xc8] sm:$0xf]
      %v2571 = vld [vmem:[%s672 + $0xcc] sm:$0xf]
      %v2572 = vld [vmem:[%s672 + $0xd0] sm:$0xf]
      %v2573 = vld [vmem:[%s672 + $0xd4] sm:$0xf]
      %v2574 = vld [vmem:[%s672 + $0xd8] sm:$0xf]
      %v2575 = vld [vmem:[%s672 + $0xdc] sm:$0xf]
      %v2576 = vld [vmem:[%s672 + $0xe0] sm:$0xf]
      %v2577 = vld [vmem:[%s672 + $0xe4] sm:$0xf]
      %v2578 = vld [vmem:[%s672 + $0xe8] sm:$0xf]
      %v2579 = vld [vmem:[%s672 + $0xec] sm:$0xf]
      %v2580 = vld [vmem:[%s672 + $0xf0] sm:$0xf]
      %v2581 = vld [vmem:[%s672 + $0xf4] sm:$0xf]
      %v2582 = vld [vmem:[%s672 + $0xf8] sm:$0xf]
      %v2583 = vld [vmem:[%s672 + $0xfc] sm:$0xf]
      %v2584 = vld [vmem:[%s672 + $0x100] sm:$0xf]
      %v2585 = vld [vmem:[%s672 + $0x104] sm:$0xf]
      %v2586 = vld [vmem:[%s672 + $0x108] sm:$0xf]
      %v2587 = vld [vmem:[%s672 + $0x10c] sm:$0xf]
      %v2588 = vld [vmem:[%s672 + $0x110] sm:$0xf]
      %v2589 = vld [vmem:[%s672 + $0x114] sm:$0xf]
      %v2590 = vld [vmem:[%s672 + $0x118] sm:$0xf]
      %v2591 = vld [vmem:[%s672 + $0x11c] sm:$0xf]
      %v2592 = vld [vmem:[%s672 + $0x120] sm:$0xf]
      %v2593 = vld [vmem:[%s672 + $0x124] sm:$0xf]
      %v2594 = vld [vmem:[%s672 + $0x128] sm:$0xf]
      %v2595 = vld [vmem:[%s672 + $0x12c] sm:$0xf]
      %v2596 = vld [vmem:[%s672 + $0x130] sm:$0xf]
      %v2597 = vld [vmem:[%s672 + $0x134] sm:$0xf]
      %v2598 = vld [vmem:[%s672 + $0x138] sm:$0xf]
      %v2599 = vld [vmem:[%s672 + $0x13c] sm:$0xf]
      %v2600 = vld [vmem:[%s672 + $0x140] sm:$0xf]
      %v2601 = vld [vmem:[%s672 + $0x144] sm:$0xf]
      %v2602 = vld [vmem:[%s672 + $0x148] sm:$0xf]
      %v2603 = vld [vmem:[%s672 + $0x14c] sm:$0xf]
      %v2604 = vld [vmem:[%s672 + $0x150] sm:$0xf]
      %v2605 = vld [vmem:[%s672 + $0x154] sm:$0xf]
      %v2606 = vld [vmem:[%s672 + $0x158] sm:$0xf]
      %v2607 = vld [vmem:[%s672 + $0x15c] sm:$0xf]
      %v2608 = vld [vmem:[%s672 + $0x160] sm:$0xf]
      %v2609 = vld [vmem:[%s672 + $0x164] sm:$0xf]
      %v2610 = vld [vmem:[%s672 + $0x168] sm:$0xf]
      %v2611 = vld [vmem:[%s672 + $0x16c] sm:$0xf]
      %v2612 = vld [vmem:[%s672 + $0x170] sm:$0xf]
      %v2613 = vld [vmem:[%s672 + $0x174] sm:$0xf]
      %v2614 = vld [vmem:[%s672 + $0x178] sm:$0xf]
      %v2615 = vld [vmem:[%s672 + $0x17c] sm:$0xf]
      %v2616 = vld [vmem:[%s672 + $0x180] sm:$0xf]
      %v2617 = vld [vmem:[%s672 + $0x184] sm:$0xf]
      %v2618 = vld [vmem:[%s672 + $0x188] sm:$0xf]
      %v2619 = vld [vmem:[%s672 + $0x18c] sm:$0xf]
      %v2620 = vld [vmem:[%s672 + $0x190] sm:$0xf]
      %v2621 = vld [vmem:[%s672 + $0x194] sm:$0xf]
      %v2622 = vld [vmem:[%s672 + $0x198] sm:$0xf]
      %v2623 = vld [vmem:[%s672 + $0x19c] sm:$0xf]
      %v2624 = vld [vmem:[%s672 + $0x1a0] sm:$0xf]
      %v2625 = vld [vmem:[%s672 + $0x1a4] sm:$0xf]
      %v2626 = vld [vmem:[%s672 + $0x1a8] sm:$0xf]
      %v2627 = vld [vmem:[%s672 + $0x1ac] sm:$0xf]
      %v2628 = vld [vmem:[%s672 + $0x1b0] sm:$0xf]
      %v2629 = vld [vmem:[%s672 + $0x1b4] sm:$0xf]
      %v2630 = vld [vmem:[%s672 + $0x1b8] sm:$0xf]
      %v2631 = vld [vmem:[%s672 + $0x1bc] sm:$0xf]
      %v2632 = vld [vmem:[%s672 + $0x1c0] sm:$0xf]
      %v2633 = vld [vmem:[%s672 + $0x1c4] sm:$0xf]
      %v2634 = vld [vmem:[%s672 + $0x1c8] sm:$0xf]
      %v2635 = vld [vmem:[%s672 + $0x1cc] sm:$0xf]
      %v2636 = vld [vmem:[%s672 + $0x1d0] sm:$0xf]
      %v2637 = vld [vmem:[%s672 + $0x1d4] sm:$0xf]
      %v2638 = vld [vmem:[%s672 + $0x1d8] sm:$0xf]
      %v2639 = vld [vmem:[%s672 + $0x1dc] sm:$0xf]
      %v2640 = vld [vmem:[%s672 + $0x1e0] sm:$0xf]
      %v2641 = vld [vmem:[%s672 + $0x1e4] sm:$0xf]
      %v2642 = vld [vmem:[%s672 + $0x1e8] sm:$0xf]
      %v2643 = vld [vmem:[%s672 + $0x1ec] sm:$0xf]
      %v2644 = vld [vmem:[%s672 + $0x1f0] sm:$0xf]
      %v2645 = vld [vmem:[%s672 + $0x1f4] sm:$0xf]
      %v2646 = vld [vmem:[%s672 + $0x1f8] sm:$0xf]
      %v2647 = vld [vmem:[%s672 + $0x1fc] sm:$0xf]
      %v2648 = vld [vmem:[%s672 + $0x200] sm:$0xf]
      %v2649 = vld [vmem:[%s672 + $0x204] sm:$0xf]
      %v2650 = vld [vmem:[%s672 + $0x208] sm:$0xf]
      %v2651 = vld [vmem:[%s672 + $0x20c] sm:$0xf]
      %v2652 = vld [vmem:[%s672 + $0x210] sm:$0xf]
      %v2653 = vld [vmem:[%s672 + $0x214] sm:$0xf]
      %v2654 = vld [vmem:[%s672 + $0x218] sm:$0xf]
      %v2655 = vld [vmem:[%s672 + $0x21c] sm:$0xf]
      %v2656 = vld [vmem:[%s672 + $0x220] sm:$0xf]
      %v2657 = vld [vmem:[%s672 + $0x224] sm:$0xf]
      %v2658 = vld [vmem:[%s672 + $0x228] sm:$0xf]
      %v2659 = vld [vmem:[%s672 + $0x22c] sm:$0xf]
      %v2660 = vld [vmem:[%s672 + $0x230] sm:$0xf]
      %v2661 = vld [vmem:[%s672 + $0x234] sm:$0xf]
      %v2662 = vld [vmem:[%s672 + $0x238] sm:$0xf]
      %v2663 = vld [vmem:[%s672 + $0x23c] sm:$0xf]
      %v2664 = vld [vmem:[%s672 + $0x240] sm:$0xf]
      %v2665 = vld [vmem:[%s672 + $0x244] sm:$0xf]
      %v2666 = vld [vmem:[%s672 + $0x248] sm:$0xf]
      %v2667 = vld [vmem:[%s672 + $0x24c] sm:$0xf]
      %v2668 = vld [vmem:[%s672 + $0x250] sm:$0xf]
      %v2669 = vld [vmem:[%s672 + $0x254] sm:$0xf]
      %v2670 = vld [vmem:[%s672 + $0x258] sm:$0xf]
      %v2671 = vld [vmem:[%s672 + $0x25c] sm:$0xf]
      %v2672 = vld [vmem:[%s672 + $0x260] sm:$0xf]
      %v2673 = vld [vmem:[%s672 + $0x264] sm:$0xf]
      %v2674 = vld [vmem:[%s672 + $0x268] sm:$0xf]
      %v2675 = vld [vmem:[%s672 + $0x26c] sm:$0xf]
      %v2676 = vld [vmem:[%s672 + $0x270] sm:$0xf]
      %v2677 = vld [vmem:[%s672 + $0x274] sm:$0xf]
      %v2678 = vld [vmem:[%s672 + $0x278] sm:$0xf]
      %v2679 = vld [vmem:[%s672 + $0x27c] sm:$0xf]
      %v2680 = vld [vmem:[%s672 + $0x280] sm:$0xf]
      %v2681 = vld [vmem:[%s672 + $0x284] sm:$0xf]
      %v2682 = vld [vmem:[%s672 + $0x288] sm:$0xf]
      %v2683 = vld [vmem:[%s672 + $0x28c] sm:$0xf]
      %v2684 = vld [vmem:[%s672 + $0x290] sm:$0xf]
      %v2685 = vld [vmem:[%s672 + $0x294] sm:$0xf]
      %v2686 = vld [vmem:[%s672 + $0x298] sm:$0xf]
      %v2687 = vld [vmem:[%s672 + $0x29c] sm:$0xf]
      %v2688 = vld [vmem:[%s672 + $0x2a0] sm:$0xf]
      %v2689 = vld [vmem:[%s672 + $0x2a4] sm:$0xf]
      %v2690 = vld [vmem:[%s672 + $0x2a8] sm:$0xf]
      %v2691 = vld [vmem:[%s672 + $0x2ac] sm:$0xf]
      %v2692 = vld [vmem:[%s672 + $0x2b0] sm:$0xf]
      %v2693 = vld [vmem:[%s672 + $0x2b4] sm:$0xf]
      %v2694 = vld [vmem:[%s672 + $0x2b8] sm:$0xf]
      %v2695 = vld [vmem:[%s672 + $0x2bc] sm:$0xf]
      %v2696 = vld [vmem:[%s672 + $0x2c0] sm:$0xf]
      %v2697 = vld [vmem:[%s672 + $0x2c4] sm:$0xf]
      %v2698 = vld [vmem:[%s672 + $0x2c8] sm:$0xf]
      %v2699 = vld [vmem:[%s672 + $0x2cc] sm:$0xf]
      %v2700 = vld [vmem:[%s672 + $0x2d0] sm:$0xf]
      %v2701 = vld [vmem:[%s672 + $0x2d4] sm:$0xf]
      %v2702 = vld [vmem:[%s672 + $0x2d8] sm:$0xf]
      %v2703 = vld [vmem:[%s672 + $0x2dc] sm:$0xf]
      %v2704 = vld [vmem:[%s672 + $0x2e0] sm:$0xf]
      %v2705 = vld [vmem:[%s672 + $0x2e4] sm:$0xf]
      %v2706 = vld [vmem:[%s672 + $0x2e8] sm:$0xf]
      %v2707 = vld [vmem:[%s672 + $0x2ec] sm:$0xf]
      %v2708 = vld [vmem:[%s672 + $0x2f0] sm:$0xf]
      %v2709 = vld [vmem:[%s672 + $0x2f4] sm:$0xf]
      %v2710 = vld [vmem:[%s672 + $0x2f8] sm:$0xf]
      %v2711 = vld [vmem:[%s672 + $0x2fc] sm:$0xf]
      %v2712 = vld [vmem:[%s672 + $0x300] sm:$0xf]
      %v2713 = vld [vmem:[%s672 + $0x304] sm:$0xf]
      %v2714 = vld [vmem:[%s672 + $0x308] sm:$0xf]
      %v2715 = vld [vmem:[%s672 + $0x30c] sm:$0xf]
      %v2716 = vld [vmem:[%s672 + $0x310] sm:$0xf]
      %v2717 = vld [vmem:[%s672 + $0x314] sm:$0xf]
      %v2718 = vld [vmem:[%s672 + $0x318] sm:$0xf]
      %v2719 = vld [vmem:[%s672 + $0x31c] sm:$0xf]
      %v2720 = vld [vmem:[%s672 + $0x320] sm:$0xf]
      %v2721 = vld [vmem:[%s672 + $0x324] sm:$0xf]
      %v2722 = vld [vmem:[%s672 + $0x328] sm:$0xf]
      %v2723 = vld [vmem:[%s672 + $0x32c] sm:$0xf]
      %v2724 = vld [vmem:[%s672 + $0x330] sm:$0xf]
      %v2725 = vld [vmem:[%s672 + $0x334] sm:$0xf]
      %v2726 = vld [vmem:[%s672 + $0x338] sm:$0xf]
      %v2727 = vld [vmem:[%s672 + $0x33c] sm:$0xf]
      %v2728 = vld [vmem:[%s672 + $0x340] sm:$0xf]
      %v2729 = vld [vmem:[%s672 + $0x344] sm:$0xf]
      %v2730 = vld [vmem:[%s672 + $0x348] sm:$0xf]
      %v2731 = vld [vmem:[%s672 + $0x34c] sm:$0xf]
      %v2732 = vld [vmem:[%s672 + $0x350] sm:$0xf]
      %v2733 = vld [vmem:[%s672 + $0x354] sm:$0xf]
      %v2734 = vld [vmem:[%s672 + $0x358] sm:$0xf]
      %v2735 = vld [vmem:[%s672 + $0x35c] sm:$0xf]
      %v2736 = vld [vmem:[%s672 + $0x360] sm:$0xf]
      %v2737 = vld [vmem:[%s672 + $0x364] sm:$0xf]
      %v2738 = vld [vmem:[%s672 + $0x368] sm:$0xf]
      %v2739 = vld [vmem:[%s672 + $0x36c] sm:$0xf]
      %v2740 = vld [vmem:[%s672 + $0x370] sm:$0xf]
      %v2741 = vld [vmem:[%s672 + $0x374] sm:$0xf]
      %v2742 = vld [vmem:[%s672 + $0x378] sm:$0xf]
      %v2743 = vld [vmem:[%s672 + $0x37c] sm:$0xf]
      %v2744 = vld [vmem:[%s672 + $0x380] sm:$0xf]
      %v2745 = vld [vmem:[%s672 + $0x384] sm:$0xf]
      %v2746 = vld [vmem:[%s672 + $0x388] sm:$0xf]
      %v2747 = vld [vmem:[%s672 + $0x38c] sm:$0xf]
      %v2748 = vld [vmem:[%s672 + $0x390] sm:$0xf]
      %v2749 = vld [vmem:[%s672 + $0x394] sm:$0xf]
      %v2750 = vld [vmem:[%s672 + $0x398] sm:$0xf]
      %v2751 = vld [vmem:[%s672 + $0x39c] sm:$0xf]
      %v2752 = vld [vmem:[%s672 + $0x3a0] sm:$0xf]
      %v2753 = vld [vmem:[%s672 + $0x3a4] sm:$0xf]
      %v2754 = vld [vmem:[%s672 + $0x3a8] sm:$0xf]
      %v2755 = vld [vmem:[%s672 + $0x3ac] sm:$0xf]
      %v2756 = vld [vmem:[%s672 + $0x3b0] sm:$0xf]
      %v2757 = vld [vmem:[%s672 + $0x3b4] sm:$0xf]
      %v2758 = vld [vmem:[%s672 + $0x3b8] sm:$0xf]
      %v2759 = vld [vmem:[%s672 + $0x3bc] sm:$0xf]
      %v2760 = vld [vmem:[%s672 + $0x3c0] sm:$0xf]
      %v2761 = vld [vmem:[%s672 + $0x3c4] sm:$0xf]
      %v2762 = vld [vmem:[%s672 + $0x3c8] sm:$0xf]
      %v2763 = vld [vmem:[%s672 + $0x3cc] sm:$0xf]
      %v2764 = vld [vmem:[%s672 + $0x3d0] sm:$0xf]
      %v2765 = vld [vmem:[%s672 + $0x3d4] sm:$0xf]
      %v2766 = vld [vmem:[%s672 + $0x3d8] sm:$0xf]
      %v2767 = vld [vmem:[%s672 + $0x3dc] sm:$0xf]
      %v2768 = vld [vmem:[%s672 + $0x3e0] sm:$0xf]
      %v2769 = vld [vmem:[%s672 + $0x3e4] sm:$0xf]
      %v2770 = vld [vmem:[%s672 + $0x3e8] sm:$0xf]
      %v2771 = vld [vmem:[%s672 + $0x3ec] sm:$0xf]
      %v2772 = vld [vmem:[%s672 + $0x3f0] sm:$0xf]
      %v2773 = vld [vmem:[%s672 + $0x3f4] sm:$0xf]
      %v2774 = vld [vmem:[%s672 + $0x3f8] sm:$0xf]
      %v2775 = vld [vmem:[%s672 + $0x3fc] sm:$0xf]
      %v2776 = vld [vmem:[%s675] sm:$0x1]
      %v2778 = vlaneseq
      %v2779 = vshrl.u32 %v2778, 7
      %v2780 = vsub.s32 0, %v2779
      %v2781 = vrot.slane %v2776, %v2780
      %v2815 = vunpack.c.l.b16 %v2488
      %v2816 = vunpack.c.l.b16 %v2489
      %v2817 = vunpack.c.l.b16 %v2490
      %v2818 = vunpack.c.l.b16 %v2491
      %v2819 = vunpack.c.l.b16 %v2492
      %v2820 = vunpack.c.l.b16 %v2493
      %v2821 = vunpack.c.l.b16 %v2494
      %v2822 = vunpack.c.l.b16 %v2495
      %v2823 = vunpack.c.l.b16 %v2496
      %v2824 = vunpack.c.l.b16 %v2497
      %v2825 = vunpack.c.l.b16 %v2498
      %v2826 = vunpack.c.l.b16 %v2499
      %v2827 = vunpack.c.l.b16 %v2500
      %v2828 = vunpack.c.l.b16 %v2501
      %v2829 = vunpack.c.l.b16 %v2502
      %v2830 = vunpack.c.l.b16 %v2503
      %v2831 = vunpack.c.l.b16 %v2504
      %v2832 = vunpack.c.l.b16 %v2505
      %v2833 = vunpack.c.l.b16 %v2506
      %v2834 = vunpack.c.l.b16 %v2507
      %v2835 = vunpack.c.l.b16 %v2508
      %v2836 = vunpack.c.l.b16 %v2509
      %v2837 = vunpack.c.l.b16 %v2510
      %v2838 = vunpack.c.l.b16 %v2511
      %v2839 = vunpack.c.l.b16 %v2512
      %v2840 = vunpack.c.l.b16 %v2513
      %v2841 = vunpack.c.l.b16 %v2514
      %v2842 = vunpack.c.l.b16 %v2515
      %v2843 = vunpack.c.l.b16 %v2516
      %v2844 = vunpack.c.l.b16 %v2517
      %v2845 = vunpack.c.l.b16 %v2518
      %v2846 = vunpack.c.l.b16 %v2519
      %v2847 = vpack.c.b16 %v2831, %v2815
      %v2848 = vpack.c.b16 %v2832, %v2816
      %v2849 = vpack.c.b16 %v2833, %v2817
      %v2850 = vpack.c.b16 %v2834, %v2818
      %v2851 = vpack.c.b16 %v2835, %v2819
      %v2852 = vpack.c.b16 %v2836, %v2820
      %v2853 = vpack.c.b16 %v2837, %v2821
      %v2854 = vpack.c.b16 %v2838, %v2822
      %v2855 = vpack.c.b16 %v2839, %v2823
      %v2856 = vpack.c.b16 %v2840, %v2824
      %v2857 = vpack.c.b16 %v2841, %v2825
      %v2858 = vpack.c.b16 %v2842, %v2826
      %v2859 = vpack.c.b16 %v2843, %v2827
      %v2860 = vpack.c.b16 %v2844, %v2828
      %v2861 = vpack.c.b16 %v2845, %v2829
      %v2862 = vpack.c.b16 %v2846, %v2830
      %v3135 = vunpack.c.l.b16 %v2520
      %v3136 = vunpack.c.l.b16 %v2521
      %v3137 = vunpack.c.l.b16 %v2522
      %v3138 = vunpack.c.l.b16 %v2523
      %v3139 = vunpack.c.l.b16 %v2524
      %v3140 = vunpack.c.l.b16 %v2525
      %v3141 = vunpack.c.l.b16 %v2526
      %v3142 = vunpack.c.l.b16 %v2527
      %v3143 = vunpack.c.l.b16 %v2528
      %v3144 = vunpack.c.l.b16 %v2529
      %v3145 = vunpack.c.l.b16 %v2530
      %v3146 = vunpack.c.l.b16 %v2531
      %v3147 = vunpack.c.l.b16 %v2532
      %v3148 = vunpack.c.l.b16 %v2533
      %v3149 = vunpack.c.l.b16 %v2534
      %v3150 = vunpack.c.l.b16 %v2535
      %v3151 = vunpack.c.l.b16 %v2536
      %v3152 = vunpack.c.l.b16 %v2537
      %v3153 = vunpack.c.l.b16 %v2538
      %v3154 = vunpack.c.l.b16 %v2539
      %v3155 = vunpack.c.l.b16 %v2540
      %v3156 = vunpack.c.l.b16 %v2541
      %v3157 = vunpack.c.l.b16 %v2542
      %v3158 = vunpack.c.l.b16 %v2543
      %v3159 = vunpack.c.l.b16 %v2544
      %v3160 = vunpack.c.l.b16 %v2545
      %v3161 = vunpack.c.l.b16 %v2546
      %v3162 = vunpack.c.l.b16 %v2547
      %v3163 = vunpack.c.l.b16 %v2548
      %v3164 = vunpack.c.l.b16 %v2549
      %v3165 = vunpack.c.l.b16 %v2550
      %v3166 = vunpack.c.l.b16 %v2551
      %v3167 = vunpack.c.l.b16 %v2552
      %v3168 = vunpack.c.l.b16 %v2553
      %v3169 = vunpack.c.l.b16 %v2554
      %v3170 = vunpack.c.l.b16 %v2555
      %v3171 = vunpack.c.l.b16 %v2556
      %v3172 = vunpack.c.l.b16 %v2557
      %v3173 = vunpack.c.l.b16 %v2558
      %v3174 = vunpack.c.l.b16 %v2559
      %v3175 = vunpack.c.l.b16 %v2560
      %v3176 = vunpack.c.l.b16 %v2561
      %v3177 = vunpack.c.l.b16 %v2562
      %v3178 = vunpack.c.l.b16 %v2563
      %v3179 = vunpack.c.l.b16 %v2564
      %v3180 = vunpack.c.l.b16 %v2565
      %v3181 = vunpack.c.l.b16 %v2566
      %v3182 = vunpack.c.l.b16 %v2567
      %v3183 = vunpack.c.l.b16 %v2568
      %v3184 = vunpack.c.l.b16 %v2569
      %v3185 = vunpack.c.l.b16 %v2570
      %v3186 = vunpack.c.l.b16 %v2571
      %v3187 = vunpack.c.l.b16 %v2572
      %v3188 = vunpack.c.l.b16 %v2573
      %v3189 = vunpack.c.l.b16 %v2574
      %v3190 = vunpack.c.l.b16 %v2575
      %v3191 = vunpack.c.l.b16 %v2576
      %v3192 = vunpack.c.l.b16 %v2577
      %v3193 = vunpack.c.l.b16 %v2578
      %v3194 = vunpack.c.l.b16 %v2579
      %v3195 = vunpack.c.l.b16 %v2580
      %v3196 = vunpack.c.l.b16 %v2581
      %v3197 = vunpack.c.l.b16 %v2582
      %v3198 = vunpack.c.l.b16 %v2583
      %v3199 = vunpack.c.l.b16 %v2584
      %v3200 = vunpack.c.l.b16 %v2585
      %v3201 = vunpack.c.l.b16 %v2586
      %v3202 = vunpack.c.l.b16 %v2587
      %v3203 = vunpack.c.l.b16 %v2588
      %v3204 = vunpack.c.l.b16 %v2589
      %v3205 = vunpack.c.l.b16 %v2590
      %v3206 = vunpack.c.l.b16 %v2591
      %v3207 = vunpack.c.l.b16 %v2592
      %v3208 = vunpack.c.l.b16 %v2593
      %v3209 = vunpack.c.l.b16 %v2594
      %v3210 = vunpack.c.l.b16 %v2595
      %v3211 = vunpack.c.l.b16 %v2596
      %v3212 = vunpack.c.l.b16 %v2597
      %v3213 = vunpack.c.l.b16 %v2598
      %v3214 = vunpack.c.l.b16 %v2599
      %v3215 = vunpack.c.l.b16 %v2600
      %v3216 = vunpack.c.l.b16 %v2601
      %v3217 = vunpack.c.l.b16 %v2602
      %v3218 = vunpack.c.l.b16 %v2603
      %v3219 = vunpack.c.l.b16 %v2604
      %v3220 = vunpack.c.l.b16 %v2605
      %v3221 = vunpack.c.l.b16 %v2606
      %v3222 = vunpack.c.l.b16 %v2607
      %v3223 = vunpack.c.l.b16 %v2608
      %v3224 = vunpack.c.l.b16 %v2609
      %v3225 = vunpack.c.l.b16 %v2610
      %v3226 = vunpack.c.l.b16 %v2611
      %v3227 = vunpack.c.l.b16 %v2612
      %v3228 = vunpack.c.l.b16 %v2613
      %v3229 = vunpack.c.l.b16 %v2614
      %v3230 = vunpack.c.l.b16 %v2615
      %v3231 = vunpack.c.l.b16 %v2616
      %v3232 = vunpack.c.l.b16 %v2617
      %v3233 = vunpack.c.l.b16 %v2618
      %v3234 = vunpack.c.l.b16 %v2619
      %v3235 = vunpack.c.l.b16 %v2620
      %v3236 = vunpack.c.l.b16 %v2621
      %v3237 = vunpack.c.l.b16 %v2622
      %v3238 = vunpack.c.l.b16 %v2623
      %v3239 = vunpack.c.l.b16 %v2624
      %v3240 = vunpack.c.l.b16 %v2625
      %v3241 = vunpack.c.l.b16 %v2626
      %v3242 = vunpack.c.l.b16 %v2627
      %v3243 = vunpack.c.l.b16 %v2628
      %v3244 = vunpack.c.l.b16 %v2629
      %v3245 = vunpack.c.l.b16 %v2630
      %v3246 = vunpack.c.l.b16 %v2631
      %v3247 = vunpack.c.l.b16 %v2632
      %v3248 = vunpack.c.l.b16 %v2633
      %v3249 = vunpack.c.l.b16 %v2634
      %v3250 = vunpack.c.l.b16 %v2635
      %v3251 = vunpack.c.l.b16 %v2636
      %v3252 = vunpack.c.l.b16 %v2637
      %v3253 = vunpack.c.l.b16 %v2638
      %v3254 = vunpack.c.l.b16 %v2639
      %v3255 = vunpack.c.l.b16 %v2640
      %v3256 = vunpack.c.l.b16 %v2641
      %v3257 = vunpack.c.l.b16 %v2642
      %v3258 = vunpack.c.l.b16 %v2643
      %v3259 = vunpack.c.l.b16 %v2644
      %v3260 = vunpack.c.l.b16 %v2645
      %v3261 = vunpack.c.l.b16 %v2646
      %v3262 = vunpack.c.l.b16 %v2647
      %v3263 = vunpack.c.l.b16 %v2648
      %v3264 = vunpack.c.l.b16 %v2649
      %v3265 = vunpack.c.l.b16 %v2650
      %v3266 = vunpack.c.l.b16 %v2651
      %v3267 = vunpack.c.l.b16 %v2652
      %v3268 = vunpack.c.l.b16 %v2653
      %v3269 = vunpack.c.l.b16 %v2654
      %v3270 = vunpack.c.l.b16 %v2655
      %v3271 = vunpack.c.l.b16 %v2656
      %v3272 = vunpack.c.l.b16 %v2657
      %v3273 = vunpack.c.l.b16 %v2658
      %v3274 = vunpack.c.l.b16 %v2659
      %v3275 = vunpack.c.l.b16 %v2660
      %v3276 = vunpack.c.l.b16 %v2661
      %v3277 = vunpack.c.l.b16 %v2662
      %v3278 = vunpack.c.l.b16 %v2663
      %v3279 = vunpack.c.l.b16 %v2664
      %v3280 = vunpack.c.l.b16 %v2665
      %v3281 = vunpack.c.l.b16 %v2666
      %v3282 = vunpack.c.l.b16 %v2667
      %v3283 = vunpack.c.l.b16 %v2668
      %v3284 = vunpack.c.l.b16 %v2669
      %v3285 = vunpack.c.l.b16 %v2670
      %v3286 = vunpack.c.l.b16 %v2671
      %v3287 = vunpack.c.l.b16 %v2672
      %v3288 = vunpack.c.l.b16 %v2673
      %v3289 = vunpack.c.l.b16 %v2674
      %v3290 = vunpack.c.l.b16 %v2675
      %v3291 = vunpack.c.l.b16 %v2676
      %v3292 = vunpack.c.l.b16 %v2677
      %v3293 = vunpack.c.l.b16 %v2678
      %v3294 = vunpack.c.l.b16 %v2679
      %v3295 = vunpack.c.l.b16 %v2680
      %v3296 = vunpack.c.l.b16 %v2681
      %v3297 = vunpack.c.l.b16 %v2682
      %v3298 = vunpack.c.l.b16 %v2683
      %v3299 = vunpack.c.l.b16 %v2684
      %v3300 = vunpack.c.l.b16 %v2685
      %v3301 = vunpack.c.l.b16 %v2686
      %v3302 = vunpack.c.l.b16 %v2687
      %v3303 = vunpack.c.l.b16 %v2688
      %v3304 = vunpack.c.l.b16 %v2689
      %v3305 = vunpack.c.l.b16 %v2690
      %v3306 = vunpack.c.l.b16 %v2691
      %v3307 = vunpack.c.l.b16 %v2692
      %v3308 = vunpack.c.l.b16 %v2693
      %v3309 = vunpack.c.l.b16 %v2694
      %v3310 = vunpack.c.l.b16 %v2695
      %v3311 = vunpack.c.l.b16 %v2696
      %v3312 = vunpack.c.l.b16 %v2697
      %v3313 = vunpack.c.l.b16 %v2698
      %v3314 = vunpack.c.l.b16 %v2699
      %v3315 = vunpack.c.l.b16 %v2700
      %v3316 = vunpack.c.l.b16 %v2701
      %v3317 = vunpack.c.l.b16 %v2702
      %v3318 = vunpack.c.l.b16 %v2703
      %v3319 = vunpack.c.l.b16 %v2704
      %v3320 = vunpack.c.l.b16 %v2705
      %v3321 = vunpack.c.l.b16 %v2706
      %v3322 = vunpack.c.l.b16 %v2707
      %v3323 = vunpack.c.l.b16 %v2708
      %v3324 = vunpack.c.l.b16 %v2709
      %v3325 = vunpack.c.l.b16 %v2710
      %v3326 = vunpack.c.l.b16 %v2711
      %v3327 = vunpack.c.l.b16 %v2712
      %v3328 = vunpack.c.l.b16 %v2713
      %v3329 = vunpack.c.l.b16 %v2714
      %v3330 = vunpack.c.l.b16 %v2715
      %v3331 = vunpack.c.l.b16 %v2716
      %v3332 = vunpack.c.l.b16 %v2717
      %v3333 = vunpack.c.l.b16 %v2718
      %v3334 = vunpack.c.l.b16 %v2719
      %v3335 = vunpack.c.l.b16 %v2720
      %v3336 = vunpack.c.l.b16 %v2721
      %v3337 = vunpack.c.l.b16 %v2722
      %v3338 = vunpack.c.l.b16 %v2723
      %v3339 = vunpack.c.l.b16 %v2724
      %v3340 = vunpack.c.l.b16 %v2725
      %v3341 = vunpack.c.l.b16 %v2726
      %v3342 = vunpack.c.l.b16 %v2727
      %v3343 = vunpack.c.l.b16 %v2728
      %v3344 = vunpack.c.l.b16 %v2729
      %v3345 = vunpack.c.l.b16 %v2730
      %v3346 = vunpack.c.l.b16 %v2731
      %v3347 = vunpack.c.l.b16 %v2732
      %v3348 = vunpack.c.l.b16 %v2733
      %v3349 = vunpack.c.l.b16 %v2734
      %v3350 = vunpack.c.l.b16 %v2735
      %v3351 = vunpack.c.l.b16 %v2736
      %v3352 = vunpack.c.l.b16 %v2737
      %v3353 = vunpack.c.l.b16 %v2738
      %v3354 = vunpack.c.l.b16 %v2739
      %v3355 = vunpack.c.l.b16 %v2740
      %v3356 = vunpack.c.l.b16 %v2741
      %v3357 = vunpack.c.l.b16 %v2742
      %v3358 = vunpack.c.l.b16 %v2743
      %v3359 = vunpack.c.l.b16 %v2744
      %v3360 = vunpack.c.l.b16 %v2745
      %v3361 = vunpack.c.l.b16 %v2746
      %v3362 = vunpack.c.l.b16 %v2747
      %v3363 = vunpack.c.l.b16 %v2748
      %v3364 = vunpack.c.l.b16 %v2749
      %v3365 = vunpack.c.l.b16 %v2750
      %v3366 = vunpack.c.l.b16 %v2751
      %v3367 = vunpack.c.l.b16 %v2752
      %v3368 = vunpack.c.l.b16 %v2753
      %v3369 = vunpack.c.l.b16 %v2754
      %v3370 = vunpack.c.l.b16 %v2755
      %v3371 = vunpack.c.l.b16 %v2756
      %v3372 = vunpack.c.l.b16 %v2757
      %v3373 = vunpack.c.l.b16 %v2758
      %v3374 = vunpack.c.l.b16 %v2759
      %v3375 = vunpack.c.l.b16 %v2760
      %v3376 = vunpack.c.l.b16 %v2761
      %v3377 = vunpack.c.l.b16 %v2762
      %v3378 = vunpack.c.l.b16 %v2763
      %v3379 = vunpack.c.l.b16 %v2764
      %v3380 = vunpack.c.l.b16 %v2765
      %v3381 = vunpack.c.l.b16 %v2766
      %v3382 = vunpack.c.l.b16 %v2767
      %v3383 = vunpack.c.l.b16 %v2768
      %v3384 = vunpack.c.l.b16 %v2769
      %v3385 = vunpack.c.l.b16 %v2770
      %v3386 = vunpack.c.l.b16 %v2771
      %v3387 = vunpack.c.l.b16 %v2772
      %v3388 = vunpack.c.l.b16 %v2773
      %v3389 = vunpack.c.l.b16 %v2774
      %v3390 = vunpack.c.l.b16 %v2775
      %v3391 = vpack.c.b16 %v3136, %v3135
      %v3392 = vpack.c.b16 %v3138, %v3137
      %v3393 = vpack.c.b16 %v3140, %v3139
      %v3394 = vpack.c.b16 %v3142, %v3141
      %v3395 = vpack.c.b16 %v3144, %v3143
      %v3396 = vpack.c.b16 %v3146, %v3145
      %v3397 = vpack.c.b16 %v3148, %v3147
      %v3398 = vpack.c.b16 %v3150, %v3149
      %v3399 = vpack.c.b16 %v3152, %v3151
      %v3400 = vpack.c.b16 %v3154, %v3153
      %v3401 = vpack.c.b16 %v3156, %v3155
      %v3402 = vpack.c.b16 %v3158, %v3157
      %v3403 = vpack.c.b16 %v3160, %v3159
      %v3404 = vpack.c.b16 %v3162, %v3161
      %v3405 = vpack.c.b16 %v3164, %v3163
      %v3406 = vpack.c.b16 %v3166, %v3165
      %v3407 = vpack.c.b16 %v3168, %v3167
      %v3408 = vpack.c.b16 %v3170, %v3169
      %v3409 = vpack.c.b16 %v3172, %v3171
      %v3410 = vpack.c.b16 %v3174, %v3173
      %v3411 = vpack.c.b16 %v3176, %v3175
      %v3412 = vpack.c.b16 %v3178, %v3177
      %v3413 = vpack.c.b16 %v3180, %v3179
      %v3414 = vpack.c.b16 %v3182, %v3181
      %v3415 = vpack.c.b16 %v3184, %v3183
      %v3416 = vpack.c.b16 %v3186, %v3185
      %v3417 = vpack.c.b16 %v3188, %v3187
      %v3418 = vpack.c.b16 %v3190, %v3189
      %v3419 = vpack.c.b16 %v3192, %v3191
      %v3420 = vpack.c.b16 %v3194, %v3193
      %v3421 = vpack.c.b16 %v3196, %v3195
      %v3422 = vpack.c.b16 %v3198, %v3197
      %v3423 = vpack.c.b16 %v3200, %v3199
      %v3424 = vpack.c.b16 %v3202, %v3201
      %v3425 = vpack.c.b16 %v3204, %v3203
      %v3426 = vpack.c.b16 %v3206, %v3205
      %v3427 = vpack.c.b16 %v3208, %v3207
      %v3428 = vpack.c.b16 %v3210, %v3209
      %v3429 = vpack.c.b16 %v3212, %v3211
      %v3430 = vpack.c.b16 %v3214, %v3213
      %v3431 = vpack.c.b16 %v3216, %v3215
      %v3432 = vpack.c.b16 %v3218, %v3217
      %v3433 = vpack.c.b16 %v3220, %v3219
      %v3434 = vpack.c.b16 %v3222, %v3221
      %v3435 = vpack.c.b16 %v3224, %v3223
      %v3436 = vpack.c.b16 %v3226, %v3225
      %v3437 = vpack.c.b16 %v3228, %v3227
      %v3438 = vpack.c.b16 %v3230, %v3229
      %v3439 = vpack.c.b16 %v3232, %v3231
      %v3440 = vpack.c.b16 %v3234, %v3233
      %v3441 = vpack.c.b16 %v3236, %v3235
      %v3442 = vpack.c.b16 %v3238, %v3237
      %v3443 = vpack.c.b16 %v3240, %v3239
      %v3444 = vpack.c.b16 %v3242, %v3241
      %v3445 = vpack.c.b16 %v3244, %v3243
      %v3446 = vpack.c.b16 %v3246, %v3245
      %v3447 = vpack.c.b16 %v3248, %v3247
      %v3448 = vpack.c.b16 %v3250, %v3249
      %v3449 = vpack.c.b16 %v3252, %v3251
      %v3450 = vpack.c.b16 %v3254, %v3253
      %v3451 = vpack.c.b16 %v3256, %v3255
      %v3452 = vpack.c.b16 %v3258, %v3257
      %v3453 = vpack.c.b16 %v3260, %v3259
      %v3454 = vpack.c.b16 %v3262, %v3261
      %v3455 = vpack.c.b16 %v3264, %v3263
      %v3456 = vpack.c.b16 %v3266, %v3265
      %v3457 = vpack.c.b16 %v3268, %v3267
      %v3458 = vpack.c.b16 %v3270, %v3269
      %v3459 = vpack.c.b16 %v3272, %v3271
      %v3460 = vpack.c.b16 %v3274, %v3273
      %v3461 = vpack.c.b16 %v3276, %v3275
      %v3462 = vpack.c.b16 %v3278, %v3277
      %v3463 = vpack.c.b16 %v3280, %v3279
      %v3464 = vpack.c.b16 %v3282, %v3281
      %v3465 = vpack.c.b16 %v3284, %v3283
      %v3466 = vpack.c.b16 %v3286, %v3285
      %v3467 = vpack.c.b16 %v3288, %v3287
      %v3468 = vpack.c.b16 %v3290, %v3289
      %v3469 = vpack.c.b16 %v3292, %v3291
      %v3470 = vpack.c.b16 %v3294, %v3293
      %v3471 = vpack.c.b16 %v3296, %v3295
      %v3472 = vpack.c.b16 %v3298, %v3297
      %v3473 = vpack.c.b16 %v3300, %v3299
      %v3474 = vpack.c.b16 %v3302, %v3301
      %v3475 = vpack.c.b16 %v3304, %v3303
      %v3476 = vpack.c.b16 %v3306, %v3305
      %v3477 = vpack.c.b16 %v3308, %v3307
      %v3478 = vpack.c.b16 %v3310, %v3309
      %v3479 = vpack.c.b16 %v3312, %v3311
      %v3480 = vpack.c.b16 %v3314, %v3313
      %v3481 = vpack.c.b16 %v3316, %v3315
      %v3482 = vpack.c.b16 %v3318, %v3317
      %v3483 = vpack.c.b16 %v3320, %v3319
      %v3484 = vpack.c.b16 %v3322, %v3321
      %v3485 = vpack.c.b16 %v3324, %v3323
      %v3486 = vpack.c.b16 %v3326, %v3325
      %v3487 = vpack.c.b16 %v3328, %v3327
      %v3488 = vpack.c.b16 %v3330, %v3329
      %v3489 = vpack.c.b16 %v3332, %v3331
      %v3490 = vpack.c.b16 %v3334, %v3333
      %v3491 = vpack.c.b16 %v3336, %v3335
      %v3492 = vpack.c.b16 %v3338, %v3337
      %v3493 = vpack.c.b16 %v3340, %v3339
      %v3494 = vpack.c.b16 %v3342, %v3341
      %v3495 = vpack.c.b16 %v3344, %v3343
      %v3496 = vpack.c.b16 %v3346, %v3345
      %v3497 = vpack.c.b16 %v3348, %v3347
      %v3498 = vpack.c.b16 %v3350, %v3349
      %v3499 = vpack.c.b16 %v3352, %v3351
      %v3500 = vpack.c.b16 %v3354, %v3353
      %v3501 = vpack.c.b16 %v3356, %v3355
      %v3502 = vpack.c.b16 %v3358, %v3357
      %v3503 = vpack.c.b16 %v3360, %v3359
      %v3504 = vpack.c.b16 %v3362, %v3361
      %v3505 = vpack.c.b16 %v3364, %v3363
      %v3506 = vpack.c.b16 %v3366, %v3365
      %v3507 = vpack.c.b16 %v3368, %v3367
      %v3508 = vpack.c.b16 %v3370, %v3369
      %v3509 = vpack.c.b16 %v3372, %v3371
      %v3510 = vpack.c.b16 %v3374, %v3373
      %v3511 = vpack.c.b16 %v3376, %v3375
      %v3512 = vpack.c.b16 %v3378, %v3377
      %v3513 = vpack.c.b16 %v3380, %v3379
      %v3514 = vpack.c.b16 %v3382, %v3381
      %v3515 = vpack.c.b16 %v3384, %v3383
      %v3516 = vpack.c.b16 %v3386, %v3385
      %v3517 = vpack.c.b16 %v3388, %v3387
      %v3518 = vpack.c.b16 %v3390, %v3389
      %3647 = vmatprep.subr.bf16.mxu0 0
      %3648 = vmatpush1.bf16.msra.mxu0 %v3398
      %3649 = vmatprep.subr.bf16.mxu0 0
      %3650 = vmatpush1.bf16.msra.mxu0 %v3397
      %3651 = vmatprep.subr.bf16.mxu0 0
      %3652 = vmatpush1.bf16.msra.mxu0 %v3396
      %3653 = vmatprep.subr.bf16.mxu0 0
      %3654 = vmatpush1.bf16.msra.mxu0 %v3395
      %3655 = vmatprep.subr.bf16.mxu0 0
      %3656 = vmatpush1.bf16.msra.mxu0 %v3394
      %3657 = vmatprep.subr.bf16.mxu0 0
      %3658 = vmatpush1.bf16.msra.mxu0 %v3393
      %3659 = vmatprep.subr.bf16.mxu0 0
      %3660 = vmatpush1.bf16.msra.mxu0 %v3392
      %3661 = vmatprep.subr.bf16.mxu0 0
      %3662 = vmatpush1.bf16.msra.mxu0 %v3391
      %3663 = vmatprep.subr.bf16.mxu0 0
      %3664 = vmatpush2.bf16.msra.mxu0 %v3406
      %3665 = vmatprep.subr.bf16.mxu0 0
      %3666 = vmatpush2.bf16.msra.mxu0 %v3405
      %3667 = vmatprep.subr.bf16.mxu0 0
      %3668 = vmatpush2.bf16.msra.mxu0 %v3404
      %3669 = vmatprep.subr.bf16.mxu0 0
      %3670 = vmatpush2.bf16.msra.mxu0 %v3403
      %3671 = vmatprep.subr.bf16.mxu0 0
      %3672 = vmatpush2.bf16.msra.mxu0 %v3402
      %3673 = vmatprep.subr.bf16.mxu0 0
      %3674 = vmatpush2.bf16.msra.mxu0 %v3401
      %3675 = vmatprep.subr.bf16.mxu0 0
      %3676 = vmatpush2.bf16.msra.mxu0 %v3400
      %3677 = vmatprep.subr.bf16.mxu0 0
      %3678 = vmatpush2.bf16.msra.mxu0 %v3399
      %3679 = vmatprep.mubr.bf16.mxu0 %v2848
      %3680 = vmatmul.mubr.bf16.gmra.mxu0 %v2847
      %v3681 = vpop.f32.mrf.mxu0
      %v3682 = vadd.f32 %v2781, %v3681
      %v3683 = vpop.f32.mrf.mxu0
      %v3684 = vpop.f32.mrf.mxu0
      %v3685 = vadd.f32 %v2781, %v3684
      %v3686 = vpop.f32.mrf.mxu0
      %3687 = vdwg.mxu0
      %3688 = vmatprep.subr.bf16.mxu0 0
      %3689 = vmatpush1.bf16.msra.mxu0 %v3414
      %3690 = vmatprep.subr.bf16.mxu0 0
      %3691 = vmatpush1.bf16.msra.mxu0 %v3413
      %3692 = vmatprep.subr.bf16.mxu0 0
      %3693 = vmatpush1.bf16.msra.mxu0 %v3412
      %3694 = vmatprep.subr.bf16.mxu0 0
      %3695 = vmatpush1.bf16.msra.mxu0 %v3411
      %3696 = vmatprep.subr.bf16.mxu0 0
      %3697 = vmatpush1.bf16.msra.mxu0 %v3410
      %3698 = vmatprep.subr.bf16.mxu0 0
      %3699 = vmatpush1.bf16.msra.mxu0 %v3409
      %3700 = vmatprep.subr.bf16.mxu0 0
      %3701 = vmatpush1.bf16.msra.mxu0 %v3408
      %3702 = vmatprep.subr.bf16.mxu0 0
      %3703 = vmatpush1.bf16.msra.mxu0 %v3407
      %3704 = vmatprep.subr.bf16.mxu0 0
      %3705 = vmatpush2.bf16.msra.mxu0 %v3422
      %3706 = vmatprep.subr.bf16.mxu0 0
      %3707 = vmatpush2.bf16.msra.mxu0 %v3421
      %3708 = vmatprep.subr.bf16.mxu0 0
      %3709 = vmatpush2.bf16.msra.mxu0 %v3420
      %3710 = vmatprep.subr.bf16.mxu0 0
      %3711 = vmatpush2.bf16.msra.mxu0 %v3419
      %3712 = vmatprep.subr.bf16.mxu0 0
      %3713 = vmatpush2.bf16.msra.mxu0 %v3418
      %3714 = vmatprep.subr.bf16.mxu0 0
      %3715 = vmatpush2.bf16.msra.mxu0 %v3417
      %3716 = vmatprep.subr.bf16.mxu0 0
      %3717 = vmatpush2.bf16.msra.mxu0 %v3416
      %3718 = vmatprep.subr.bf16.mxu0 0
      %3719 = vmatpush2.bf16.msra.mxu0 %v3415
      %3720 = vmatprep.mubr.bf16.mxu0 %v2850
      %3721 = vmatmul.mubr.bf16.gmra.mxu0 %v2849
      %v3722 = vpop.f32.mrf.mxu0
      %v3723 = vadd.f32 %v3682, %v3722
      %v3724 = vpop.f32.mrf.mxu0
      %v3725 = vpop.f32.mrf.mxu0
      %v3726 = vadd.f32 %v3685, %v3725
      %v3727 = vpop.f32.mrf.mxu0
      %3728 = vdwg.mxu0
      %3729 = vmatprep.subr.bf16.mxu0 0
      %3730 = vmatpush1.bf16.msra.mxu0 %v3430
      %3731 = vmatprep.subr.bf16.mxu0 0
      %3732 = vmatpush1.bf16.msra.mxu0 %v3429
      %3733 = vmatprep.subr.bf16.mxu0 0
      %3734 = vmatpush1.bf16.msra.mxu0 %v3428
      %3735 = vmatprep.subr.bf16.mxu0 0
      %3736 = vmatpush1.bf16.msra.mxu0 %v3427
      %3737 = vmatprep.subr.bf16.mxu0 0
      %3738 = vmatpush1.bf16.msra.mxu0 %v3426
      %3739 = vmatprep.subr.bf16.mxu0 0
      %3740 = vmatpush1.bf16.msra.mxu0 %v3425
      %3741 = vmatprep.subr.bf16.mxu0 0
      %3742 = vmatpush1.bf16.msra.mxu0 %v3424
      %3743 = vmatprep.subr.bf16.mxu0 0
      %3744 = vmatpush1.bf16.msra.mxu0 %v3423
      %3745 = vmatprep.subr.bf16.mxu0 0
      %3746 = vmatpush2.bf16.msra.mxu0 %v3438
      %3747 = vmatprep.subr.bf16.mxu0 0
      %3748 = vmatpush2.bf16.msra.mxu0 %v3437
      %3749 = vmatprep.subr.bf16.mxu0 0
      %3750 = vmatpush2.bf16.msra.mxu0 %v3436
      %3751 = vmatprep.subr.bf16.mxu0 0
      %3752 = vmatpush2.bf16.msra.mxu0 %v3435
      %3753 = vmatprep.subr.bf16.mxu0 0
      %3754 = vmatpush2.bf16.msra.mxu0 %v3434
      %3755 = vmatprep.subr.bf16.mxu0 0
      %3756 = vmatpush2.bf16.msra.mxu0 %v3433
      %3757 = vmatprep.subr.bf16.mxu0 0
      %3758 = vmatpush2.bf16.msra.mxu0 %v3432
      %3759 = vmatprep.subr.bf16.mxu0 0
      %3760 = vmatpush2.bf16.msra.mxu0 %v3431
      %3761 = vmatprep.mubr.bf16.mxu0 %v2852
      %3762 = vmatmul.mubr.bf16.gmra.mxu0 %v2851
      %v3763 = vpop.f32.mrf.mxu0
      %v3764 = vadd.f32 %v3723, %v3763
      %v3765 = vpop.f32.mrf.mxu0
      %v3766 = vpop.f32.mrf.mxu0
      %v3767 = vadd.f32 %v3726, %v3766
      %v3768 = vpop.f32.mrf.mxu0
      %3769 = vdwg.mxu0
      %3770 = vmatprep.subr.bf16.mxu0 0
      %3771 = vmatpush1.bf16.msra.mxu0 %v3446
      %3772 = vmatprep.subr.bf16.mxu0 0
      %3773 = vmatpush1.bf16.msra.mxu0 %v3445
      %3774 = vmatprep.subr.bf16.mxu0 0
      %3775 = vmatpush1.bf16.msra.mxu0 %v3444
      %3776 = vmatprep.subr.bf16.mxu0 0
      %3777 = vmatpush1.bf16.msra.mxu0 %v3443
      %3778 = vmatprep.subr.bf16.mxu0 0
      %3779 = vmatpush1.bf16.msra.mxu0 %v3442
      %3780 = vmatprep.subr.bf16.mxu0 0
      %3781 = vmatpush1.bf16.msra.mxu0 %v3441
      %3782 = vmatprep.subr.bf16.mxu0 0
      %3783 = vmatpush1.bf16.msra.mxu0 %v3440
      %3784 = vmatprep.subr.bf16.mxu0 0
      %3785 = vmatpush1.bf16.msra.mxu0 %v3439
      %3786 = vmatprep.subr.bf16.mxu0 0
      %3787 = vmatpush2.bf16.msra.mxu0 %v3454
      %3788 = vmatprep.subr.bf16.mxu0 0
      %3789 = vmatpush2.bf16.msra.mxu0 %v3453
      %3790 = vmatprep.subr.bf16.mxu0 0
      %3791 = vmatpush2.bf16.msra.mxu0 %v3452
      %3792 = vmatprep.subr.bf16.mxu0 0
      %3793 = vmatpush2.bf16.msra.mxu0 %v3451
      %3794 = vmatprep.subr.bf16.mxu0 0
      %3795 = vmatpush2.bf16.msra.mxu0 %v3450
      %3796 = vmatprep.subr.bf16.mxu0 0
      %3797 = vmatpush2.bf16.msra.mxu0 %v3449
      %3798 = vmatprep.subr.bf16.mxu0 0
      %3799 = vmatpush2.bf16.msra.mxu0 %v3448
      %3800 = vmatprep.subr.bf16.mxu0 0
      %3801 = vmatpush2.bf16.msra.mxu0 %v3447
      %3802 = vmatprep.mubr.bf16.mxu0 %v2854
      %3803 = vmatmul.mubr.bf16.gmra.mxu0 %v2853
      %v3804 = vpop.f32.mrf.mxu0
      %v3805 = vadd.f32 %v3764, %v3804
      %v3806 = vpop.f32.mrf.mxu0
      %v3807 = vpop.f32.mrf.mxu0
      %v3808 = vadd.f32 %v3767, %v3807
      %v3809 = vpop.f32.mrf.mxu0
      %3810 = vdwg.mxu0
      %3811 = vmatprep.subr.bf16.mxu0 0
      %3812 = vmatpush1.bf16.msra.mxu0 %v3462
      %3813 = vmatprep.subr.bf16.mxu0 0
      %3814 = vmatpush1.bf16.msra.mxu0 %v3461
      %3815 = vmatprep.subr.bf16.mxu0 0
      %3816 = vmatpush1.bf16.msra.mxu0 %v3460
      %3817 = vmatprep.subr.bf16.mxu0 0
      %3818 = vmatpush1.bf16.msra.mxu0 %v3459
      %3819 = vmatprep.subr.bf16.mxu0 0
      %3820 = vmatpush1.bf16.msra.mxu0 %v3458
      %3821 = vmatprep.subr.bf16.mxu0 0
      %3822 = vmatpush1.bf16.msra.mxu0 %v3457
      %3823 = vmatprep.subr.bf16.mxu0 0
      %3824 = vmatpush1.bf16.msra.mxu0 %v3456
      %3825 = vmatprep.subr.bf16.mxu0 0
      %3826 = vmatpush1.bf16.msra.mxu0 %v3455
      %3827 = vmatprep.subr.bf16.mxu0 0
      %3828 = vmatpush2.bf16.msra.mxu0 %v3470
      %3829 = vmatprep.subr.bf16.mxu0 0
      %3830 = vmatpush2.bf16.msra.mxu0 %v3469
      %3831 = vmatprep.subr.bf16.mxu0 0
      %3832 = vmatpush2.bf16.msra.mxu0 %v3468
      %3833 = vmatprep.subr.bf16.mxu0 0
      %3834 = vmatpush2.bf16.msra.mxu0 %v3467
      %3835 = vmatprep.subr.bf16.mxu0 0
      %3836 = vmatpush2.bf16.msra.mxu0 %v3466
      %3837 = vmatprep.subr.bf16.mxu0 0
      %3838 = vmatpush2.bf16.msra.mxu0 %v3465
      %3839 = vmatprep.subr.bf16.mxu0 0
      %3840 = vmatpush2.bf16.msra.mxu0 %v3464
      %3841 = vmatprep.subr.bf16.mxu0 0
      %3842 = vmatpush2.bf16.msra.mxu0 %v3463
      %3843 = vmatprep.mubr.bf16.mxu0 %v2856
      %3844 = vmatmul.mubr.bf16.gmra.mxu0 %v2855
      %v3845 = vpop.f32.mrf.mxu0
      %v3846 = vadd.f32 %v3805, %v3845
      %v3847 = vpop.f32.mrf.mxu0
      %v3848 = vpop.f32.mrf.mxu0
      %v3849 = vadd.f32 %v3808, %v3848
      %v3850 = vpop.f32.mrf.mxu0
      %3851 = vdwg.mxu0
      %3852 = vmatprep.subr.bf16.mxu0 0
      %3853 = vmatpush1.bf16.msra.mxu0 %v3478
      %3854 = vmatprep.subr.bf16.mxu0 0
      %3855 = vmatpush1.bf16.msra.mxu0 %v3477
      %3856 = vmatprep.subr.bf16.mxu0 0
      %3857 = vmatpush1.bf16.msra.mxu0 %v3476
      %3858 = vmatprep.subr.bf16.mxu0 0
      %3859 = vmatpush1.bf16.msra.mxu0 %v3475
      %3860 = vmatprep.subr.bf16.mxu0 0
      %3861 = vmatpush1.bf16.msra.mxu0 %v3474
      %3862 = vmatprep.subr.bf16.mxu0 0
      %3863 = vmatpush1.bf16.msra.mxu0 %v3473
      %3864 = vmatprep.subr.bf16.mxu0 0
      %3865 = vmatpush1.bf16.msra.mxu0 %v3472
      %3866 = vmatprep.subr.bf16.mxu0 0
      %3867 = vmatpush1.bf16.msra.mxu0 %v3471
      %3868 = vmatprep.subr.bf16.mxu0 0
      %3869 = vmatpush2.bf16.msra.mxu0 %v3486
      %3870 = vmatprep.subr.bf16.mxu0 0
      %3871 = vmatpush2.bf16.msra.mxu0 %v3485
      %3872 = vmatprep.subr.bf16.mxu0 0
      %3873 = vmatpush2.bf16.msra.mxu0 %v3484
      %3874 = vmatprep.subr.bf16.mxu0 0
      %3875 = vmatpush2.bf16.msra.mxu0 %v3483
      %3876 = vmatprep.subr.bf16.mxu0 0
      %3877 = vmatpush2.bf16.msra.mxu0 %v3482
      %3878 = vmatprep.subr.bf16.mxu0 0
      %3879 = vmatpush2.bf16.msra.mxu0 %v3481
      %3880 = vmatprep.subr.bf16.mxu0 0
      %3881 = vmatpush2.bf16.msra.mxu0 %v3480
      %3882 = vmatprep.subr.bf16.mxu0 0
      %3883 = vmatpush2.bf16.msra.mxu0 %v3479
      %3884 = vmatprep.mubr.bf16.mxu0 %v2858
      %3885 = vmatmul.mubr.bf16.gmra.mxu0 %v2857
      %v3886 = vpop.f32.mrf.mxu0
      %v3887 = vadd.f32 %v3846, %v3886
      %v3888 = vpop.f32.mrf.mxu0
      %v3889 = vpop.f32.mrf.mxu0
      %v3890 = vadd.f32 %v3849, %v3889
      %v3891 = vpop.f32.mrf.mxu0
      %3892 = vdwg.mxu0
      %3893 = vmatprep.subr.bf16.mxu0 0
      %3894 = vmatpush1.bf16.msra.mxu0 %v3494
      %3895 = vmatprep.subr.bf16.mxu0 0
      %3896 = vmatpush1.bf16.msra.mxu0 %v3493
      %3897 = vmatprep.subr.bf16.mxu0 0
      %3898 = vmatpush1.bf16.msra.mxu0 %v3492
      %3899 = vmatprep.subr.bf16.mxu0 0
      %3900 = vmatpush1.bf16.msra.mxu0 %v3491
      %3901 = vmatprep.subr.bf16.mxu0 0
      %3902 = vmatpush1.bf16.msra.mxu0 %v3490
      %3903 = vmatprep.subr.bf16.mxu0 0
      %3904 = vmatpush1.bf16.msra.mxu0 %v3489
      %3905 = vmatprep.subr.bf16.mxu0 0
      %3906 = vmatpush1.bf16.msra.mxu0 %v3488
      %3907 = vmatprep.subr.bf16.mxu0 0
      %3908 = vmatpush1.bf16.msra.mxu0 %v3487
      %3909 = vmatprep.subr.bf16.mxu0 0
      %3910 = vmatpush2.bf16.msra.mxu0 %v3502
      %3911 = vmatprep.subr.bf16.mxu0 0
      %3912 = vmatpush2.bf16.msra.mxu0 %v3501
      %3913 = vmatprep.subr.bf16.mxu0 0
      %3914 = vmatpush2.bf16.msra.mxu0 %v3500
      %3915 = vmatprep.subr.bf16.mxu0 0
      %3916 = vmatpush2.bf16.msra.mxu0 %v3499
      %3917 = vmatprep.subr.bf16.mxu0 0
      %3918 = vmatpush2.bf16.msra.mxu0 %v3498
      %3919 = vmatprep.subr.bf16.mxu0 0
      %3920 = vmatpush2.bf16.msra.mxu0 %v3497
      %3921 = vmatprep.subr.bf16.mxu0 0
      %3922 = vmatpush2.bf16.msra.mxu0 %v3496
      %3923 = vmatprep.subr.bf16.mxu0 0
      %3924 = vmatpush2.bf16.msra.mxu0 %v3495
      %3925 = vmatprep.mubr.bf16.mxu0 %v2860
      %3926 = vmatmul.mubr.bf16.gmra.mxu0 %v2859
      %v3927 = vpop.f32.mrf.mxu0
      %v3928 = vadd.f32 %v3887, %v3927
      %v3929 = vpop.f32.mrf.mxu0
      %v3930 = vpop.f32.mrf.mxu0
      %v3931 = vadd.f32 %v3890, %v3930
      %v3932 = vpop.f32.mrf.mxu0
      %3933 = vdwg.mxu0
      %3934 = vmatprep.subr.bf16.mxu0 0
      %3935 = vmatpush1.bf16.msra.mxu0 %v3510
      %3936 = vmatprep.subr.bf16.mxu0 0
      %3937 = vmatpush1.bf16.msra.mxu0 %v3509
      %3938 = vmatprep.subr.bf16.mxu0 0
      %3939 = vmatpush1.bf16.msra.mxu0 %v3508
      %3940 = vmatprep.subr.bf16.mxu0 0
      %3941 = vmatpush1.bf16.msra.mxu0 %v3507
      %3942 = vmatprep.subr.bf16.mxu0 0
      %3943 = vmatpush1.bf16.msra.mxu0 %v3506
      %3944 = vmatprep.subr.bf16.mxu0 0
      %3945 = vmatpush1.bf16.msra.mxu0 %v3505
      %3946 = vmatprep.subr.bf16.mxu0 0
      %3947 = vmatpush1.bf16.msra.mxu0 %v3504
      %3948 = vmatprep.subr.bf16.mxu0 0
      %3949 = vmatpush1.bf16.msra.mxu0 %v3503
      %3950 = vmatprep.subr.bf16.mxu0 0
      %3951 = vmatpush2.bf16.msra.mxu0 %v3518
      %3952 = vmatprep.subr.bf16.mxu0 0
      %3953 = vmatpush2.bf16.msra.mxu0 %v3517
      %3954 = vmatprep.subr.bf16.mxu0 0
      %3955 = vmatpush2.bf16.msra.mxu0 %v3516
      %3956 = vmatprep.subr.bf16.mxu0 0
      %3957 = vmatpush2.bf16.msra.mxu0 %v3515
      %3958 = vmatprep.subr.bf16.mxu0 0
      %3959 = vmatpush2.bf16.msra.mxu0 %v3514
      %3960 = vmatprep.subr.bf16.mxu0 0
      %3961 = vmatpush2.bf16.msra.mxu0 %v3513
      %3962 = vmatprep.subr.bf16.mxu0 0
      %3963 = vmatpush2.bf16.msra.mxu0 %v3512
      %3964 = vmatprep.subr.bf16.mxu0 0
      %3965 = vmatpush2.bf16.msra.mxu0 %v3511
      %3966 = vmatprep.mubr.bf16.mxu0 %v2862
      %3967 = vmatmul.mubr.bf16.gmra.mxu0 %v2861
      %v3968 = vpop.f32.mrf.mxu0
      %v3969 = vadd.f32 %v3928, %v3968
      %v3970 = vpop.f32.mrf.mxu0
      %v3971 = vpop.f32.mrf.mxu0
      %v3972 = vadd.f32 %v3931, %v3971
      %v3973 = vpop.f32.mrf.mxu0
      %3974 = vdwg.mxu0
      %v3975 = vadd.f32 %v1824, %v3969
      %v3976 = vadd.f32 %v1825, %v3972
      %v3977 = vsel %vm730, %v3975, 0.0
      %3978 = vadd.xlane.f32.xlu0 %v3977
      %v3979 = vpop.xlane.xlu0 %3978
      %v3980 = vsel %vm730, %v3976, 0.0
      %3981 = vadd.xlane.f32.xlu0 %v3980
      %v3982 = vpop.xlane.xlu0 %3981
      %v3983 = vmul.f32 %v3979, %v1787
      %v3984 = vmul.f32 %v3982, %v1787
      %v3985 = vsub.f32 %v3975, %v3983
      %v3986 = vsub.f32 %v3976, %v3984
      %v3987 = vmul.f32 %v3985, %v3985
      %v3988 = vmul.f32 %v3986, %v3986
      %v3989 = vsel %vm730, %v3987, 0.0
      %3990 = vadd.xlane.f32.xlu0 %v3989
      %v3991 = vpop.xlane.xlu0 %3990
      %v3992 = vsel %vm730, %v3988, 0.0
      %3993 = vadd.xlane.f32.xlu0 %v3992
      %v3994 = vpop.xlane.xlu0 %3993
      %v3995 = vmul.f32 %v3991, %v1787
      %v3996 = vmul.f32 %v3994, %v1787
      %v3997 = vadd.f32 %v3995, 1e-05
      %v3998 = vadd.f32 %v3996, 1e-05
      %v3999 = vrsqrt.pop %v3997
      %v4000 = vrsqrt.pop %v3998
      %v4001 = vmul.f32 %v3985, %v3999
      %v4002 = vmul.f32 %v3986, %v4000
      %v4003 = vld [vmem:[%s678] sm:$0x1]
      %v4005 = vlaneseq
      %v4006 = vshrl.u32 %v4005, 7
      %v4007 = vsub.s32 0, %v4006
      %v4008 = vrot.slane %v4003, %v4007
      %v4010 = vmul.f32 %v4001, %v4008
      %v4011 = vmul.f32 %v4002, %v4008
      %v4012 = vld [vmem:[%s681] sm:$0x1]
      %v4014 = vlaneseq
      %v4015 = vshrl.u32 %v4014, 7
      %v4016 = vsub.s32 0, %v4015
      %v4017 = vrot.slane %v4012, %v4016
      %v4019 = vadd.f32 %v4010, %v4017
      %v4020 = vadd.f32 %v4011, %v4017
      %4021 = vst.msk [vmem:[#allocation2] sm:$0xff] %vm730, %v4019
      %4022 = vst.msk [vmem:[#allocation2 + $0x8] sm:$0xff] %vm730, %v4020
      %p4023 = scmp.eq.s32.totalorder %s27, 1
      // Predicated region
      $region89: #{baseline_classifier_forward.1} parent=83 // pred_check
        %p4024 = pneg %p4023
      $region90: #{baseline_classifier_forward.1} parent=83 // pred_check_branch
        %4026 = sbr.rel (%p4024) target = $region92
      $region91: #{baseline_classifier_forward.1} parent=83 // pred_region
        %v4027 = vpack.c.bf16 %v4019, %v4019
        %v4028 = vpack.c.bf16 %v4020, %v4020
        %v4029 = vld [vmem:[%s13] sm:$0xf]
        %v4030 = vld [vmem:[%s13 + $0x4] sm:$0xf]
        %v4031 = vld [vmem:[%s13 + $0x8] sm:$0xf]
        %v4032 = vld [vmem:[%s13 + $0xc] sm:$0xf]
        %v4033 = vld [vmem:[%s14] sm:$0xf]
        %v4034 = vld [vmem:[%s14 + $0x4] sm:$0xf]
        %v4035 = vld [vmem:[%s14 + $0x8] sm:$0xf]
        %v4036 = vld [vmem:[%s14 + $0xc] sm:$0xf]
        %v4039 = vunpack.c.l.b16 %v4027
        %v4040 = vunpack.c.l.b16 %v4028
        %v4041 = vrot.slane %v4039, 7
        %v4042 = vrot.slane %v4040, 6
        %vm4043 = vcmask 1041409
        %v4044 = vsel %vm4043, %v4042, %v4041
        %v4045 = vpack.c.b16 %v4044, %v4044
        %v4050 = vunpack.c.l.b16 %v4033
        %v4051 = vunpack.c.l.b16 %v4034
        %v4052 = vunpack.c.l.b16 %v4035
        %v4053 = vunpack.c.l.b16 %v4036
        %v4054 = vpack.c.b16 %v4051, %v4050
        %v4055 = vpack.c.b16 %v4053, %v4052
        %v4059 = vsel %vm730, %v4045, 0
        %4061 = vmatprep.subr.bf16.mxu0 0
        %4062 = vmatpush1.bf16.msra.mxu0 0
        %4063 = vmatprep.subr.bf16.mxu0 0
        %4064 = vmatpush1.bf16.msra.mxu0 0
        %4065 = vmatprep.subr.bf16.mxu0 0
        %4066 = vmatpush1.bf16.msra.mxu0 0
        %4067 = vmatprep.subr.bf16.mxu0 0
        %4068 = vmatpush1.bf16.msra.mxu0 0
        %4069 = vmatprep.subr.bf16.mxu0 0
        %4070 = vmatpush1.bf16.msra.mxu0 0
        %4071 = vmatprep.subr.bf16.mxu0 0
        %4072 = vmatpush1.bf16.msra.mxu0 0
        %4073 = vmatprep.subr.bf16.mxu0 0
        %4074 = vmatpush1.bf16.msra.mxu0 %v4055
        %4075 = vmatprep.subr.bf16.mxu0 0
        %4076 = vmatpush1.bf16.msra.mxu0 %v4054
        %4077 = vmatprep.subr.bf16.mxu0 0
        %4078 = vmatpush2.bf16.msra.mxu0 0
        %4079 = vmatprep.subr.bf16.mxu0 0
        %4080 = vmatpush2.bf16.msra.mxu0 0
        %4081 = vmatprep.subr.bf16.mxu0 0
        %4082 = vmatpush2.bf16.msra.mxu0 0
        %4083 = vmatprep.subr.bf16.mxu0 0
        %4084 = vmatpush2.bf16.msra.mxu0 0
        %4085 = vmatprep.subr.bf16.mxu0 0
        %4086 = vmatpush2.bf16.msra.mxu0 0
        %4087 = vmatprep.subr.bf16.mxu0 0
        %4088 = vmatpush2.bf16.msra.mxu0 0
        %4089 = vmatprep.subr.bf16.mxu0 0
        %4090 = vmatpush2.bf16.msra.mxu0 0
        %4091 = vmatprep.subr.bf16.mxu0 0
        %4092 = vmatpush2.bf16.msra.mxu0 0
        %4093 = vmatprep.mubr.bf16.mxu0 0
        %4094 = vmatmul.mubr.bf16.gmra.mxu0 %v4059
        %v4095 = vpop.f32.mrf.mxu0
        %v4096 = vadd.f32 0.0, %v4095
        %v4097 = vpop.f32.mrf.mxu0
        %v4098 = vpop.f32.mrf.mxu0
        %v4099 = vpop.f32.mrf.mxu0
        %4100 = vdwg.mxu0
        %v4103 = vunpack.c.l.s4 1966171168
        %v4104 = vunpack.c.0.s8 %v4103
        %v4105 = vlaneseq
        %v4106 = vshrl.u32 %v4105, 7
        %v4107 = vsub.s32 %v4104, %v4106
        %v4108 = vrot.slane %v4096, %v4107
        %v4109 = vcombine.high %v4108, %v4108
        %v4111 = vunpack.c.l.s4 1966171168
        %v4112 = vunpack.c.0.s8 %v4111
        %v4113 = vlaneseq
        %v4114 = vshrl.u32 %v4113, 7
        %v4115 = vsub.s32 %v4112, %v4114
        %v4116 = vrot.slane %v4108, %v4115
        %v4118 = vunpack.c.l.s4 1966171168
        %v4119 = vunpack.c.0.s8 %v4118
        %v4120 = vlaneseq
        %v4121 = vshrl.u32 %v4120, 7
        %v4122 = vsub.s32 %v4119, %v4121
        %v4123 = vrot.slane %v4109, %v4122
        %v4124 = vlaneseq
        %v4125 = vshrl.u32 %v4124, 7
        %v4126 = vsub.s32 0, %v4125
        %v4127 = vrot.slane %v4116, %v4126
        %v4128 = vlaneseq
        %v4129 = vshrl.u32 %v4128, 7
        %v4130 = vsub.s32 0, %v4129
        %v4131 = vrot.slane %v4123, %v4130
        %v4134 = vpack.c.b16 %v4040, %v4039
        %v4139 = vunpack.c.l.b16 %v4029
        %v4140 = vunpack.c.l.b16 %v4030
        %v4141 = vunpack.c.l.b16 %v4031
        %v4142 = vunpack.c.l.b16 %v4032
        %v4143 = vpack.c.b16 %v4140, %v4139
        %v4144 = vpack.c.b16 %v4142, %v4141
        %v4148 = vsel %vm730, %v4134, 0
        %4150 = vmatprep.subr.bf16.mxu0 0
        %4151 = vmatpush1.bf16.msra.mxu0 0
        %4152 = vmatprep.subr.bf16.mxu0 0
        %4153 = vmatpush1.bf16.msra.mxu0 0
        %4154 = vmatprep.subr.bf16.mxu0 0
        %4155 = vmatpush1.bf16.msra.mxu0 0
        %4156 = vmatprep.subr.bf16.mxu0 0
        %4157 = vmatpush1.bf16.msra.mxu0 0
        %4158 = vmatprep.subr.bf16.mxu0 0
        %4159 = vmatpush1.bf16.msra.mxu0 0
        %4160 = vmatprep.subr.bf16.mxu0 0
        %4161 = vmatpush1.bf16.msra.mxu0 0
        %4162 = vmatprep.subr.bf16.mxu0 0
        %4163 = vmatpush1.bf16.msra.mxu0 %v4144
        %4164 = vmatprep.subr.bf16.mxu0 0
        %4165 = vmatpush1.bf16.msra.mxu0 %v4143
        %4166 = vmatprep.subr.bf16.mxu0 0
        %4167 = vmatpush2.bf16.msra.mxu0 0
        %4168 = vmatprep.subr.bf16.mxu0 0
        %4169 = vmatpush2.bf16.msra.mxu0 0
        %4170 = vmatprep.subr.bf16.mxu0 0
        %4171 = vmatpush2.bf16.msra.mxu0 0
        %4172 = vmatprep.subr.bf16.mxu0 0
        %4173 = vmatpush2.bf16.msra.mxu0 0
        %4174 = vmatprep.subr.bf16.mxu0 0
        %4175 = vmatpush2.bf16.msra.mxu0 0
        %4176 = vmatprep.subr.bf16.mxu0 0
        %4177 = vmatpush2.bf16.msra.mxu0 0
        %4178 = vmatprep.subr.bf16.mxu0 0
        %4179 = vmatpush2.bf16.msra.mxu0 0
        %4180 = vmatprep.subr.bf16.mxu0 0
        %4181 = vmatpush2.bf16.msra.mxu0 0
        %4182 = vmatprep.mubr.bf16.mxu0 0
        %4183 = vmatmul.mubr.bf16.gmra.mxu0 %v4148
        %v4184 = vpop.f32.mrf.mxu0
        %v4185 = vadd.f32 %v4127, %v4184
        %v4186 = vpop.f32.mrf.mxu0
        %v4187 = vpop.f32.mrf.mxu0
        %v4188 = vadd.f32 %v4131, %v4187
        %v4189 = vpop.f32.mrf.mxu0
        %4190 = vdwg.mxu0
        %v4191 = vld [vmem:[%s15] sm:$0x1]
        %v4193 = vlaneseq
        %v4194 = vshrl.u32 %v4193, 7
        %v4195 = vsub.s32 0, %v4194
        %v4196 = vrot.slane %v4191, %v4195
        %v4198 = vadd.f32 %v4185, %v4196
        %v4199 = vadd.f32 %v4188, %v4196
        %vm4200 = vcmask 23552
        %4201 = vst.msk [vmem:[%s16] sm:$0xff] %vm4200, %v4198
        %4202 = vst.msk [vmem:[%s16 + $0x8] sm:$0xff] %vm4200, %v4199
      $region92: #{baseline_classifier_forward.1} parent=83 // pred_fallthru
        _
      // Predicated region
      $region93: #{baseline_classifier_forward.1} parent=83 // pred_check
        %p4203 = pneg %p436
      $region94: #{baseline_classifier_forward.1} parent=83 // pred_check_branch
        %4205 = sbr.rel (%p4203) target = $region96
      $region95: #{baseline_classifier_forward.1} parent=83 // pred_region
        _
      $region96: #{baseline_classifier_forward.1} parent=83 // pred_fallthru
        _
      // Predicated region
      $region97: #{baseline_classifier_forward.1} parent=83 // pred_check
        %p4206 = pneg %p436
      $region98: #{baseline_classifier_forward.1} parent=83 // pred_check_branch
        %4208 = sbr.rel (%p4206) target = $region100
      $region99: #{baseline_classifier_forward.1} parent=83 // pred_region
        _
      $region100: #{baseline_classifier_forward.1} parent=83 // pred_fallthru
        _
    $region84: #{baseline_classifier_forward.1} parent=5 // pred_fallthru
      _
    %p4209 = scmp.le.s32.totalorder 2, %s22
    // Predicated region
    $region101: #{baseline_classifier_forward.1} parent=5 // pred_check
      %p4210 = pneg %p4209
    $region102: #{baseline_classifier_forward.1} parent=5 // pred_check_branch
      %4212 = sbr.rel (%p4210) target = $region104
    $region103: #{baseline_classifier_forward.1} parent=5 // pred_region
      %s4213 = ssub.s32 %s22, 2
    $region104: #{baseline_classifier_forward.1} parent=5 // pred_fallthru
      _
  $region6: #{baseline_classifier_forward.1} parent=0 // loop_footer
    %s26 = sadd.s32 1, %s22
  $region7: #{baseline_classifier_forward.1} parent=0 // loop_footer_branch
    %21 = sbr.rel target = $region3
  $region8: #{baseline_classifier_forward.1} parent=0 // loop_exit
    _

</llo_original>
